<compile_context>
chip_gen: v7x
topology: tpu7x:2x2x1
jax: 0.10.0
libtpu: 0.0.40
codegen_flags: <defaults>
</compile_context>

<pallas_src>
import functools
import math

import jax
import jax.numpy as jnp
from jax import lax
from jax.experimental import pallas as pl
from jax.experimental.pallas import tpu as pltpu


def _attend(q, k_ref, v_ref, wo_ref, bo_ref, num_heads):
    """Per-head attention + fused output projection.

    q      : (TQ, E) queries (1/sqrt(head_dim) already folded into the weights)
    k_ref  : (S_kv, E) VMEM scratch ref with projected keys
    v_ref  : (S_kv, E) VMEM scratch ref with projected values
    wo_ref : (E, E)  pre-transposed output weight
    bo_ref : (1, E)  output bias
    returns (TQ, E) float32
    """
    TQ, E = q.shape
    D = E // num_heads
    out = jnp.zeros((TQ, E), jnp.float32)
    for h in range(num_heads):                      # num_heads is static
        sl = slice(h * D, (h + 1) * D)
        kh = k_ref[:, sl]                           # (S_kv, D)
        vh = v_ref[:, sl]                           # (S_kv, D)
        # Contract head_dim of q and k directly (no explicit transpose).
        s = lax.dot_general(q[:, sl], kh, (((1,), (1,)), ((), ())),
                            preferred_element_type=jnp.float32)        # (TQ, S_kv)
        m = jnp.max(s, axis=-1, keepdims=True)
        e = jnp.exp(s - m)                          # f32 softmax numerics (v5e-safe)
        l = jnp.sum(e, axis=-1, keepdims=True)
        # Unnormalized p @ v first, then normalize the (TQ, D) context: the
        # reciprocal/mul cost drops from O(TQ*S_kv) to O(TQ*D), so the exact
        # reciprocal is negligible (approx=True available if ever VALU-bound).
        acc = jnp.dot(e.astype(vh.dtype), vh, preferred_element_type=jnp.float32)
        ctx = acc * pl.reciprocal(l, approx=False)
        # Accumulate directly into the output projection (no head concat).
        out = out + jnp.dot(ctx.astype(wo_ref.dtype), wo_ref[sl, :],
                            preferred_element_type=jnp.float32)
    return out + bo_ref[0]


def mha_self_kernel(x_ref, wqkv_ref, bqkv_ref, wo_ref, bo_ref, o_ref,
                    q_scr, k_scr, v_scr, *, num_heads):
    """Self-attention fast path: one (1, S, E) input block per batch element.

    Grid = (batch, query_tiles).  At query-tile 0 the fused QKV projection for
    the whole sequence is computed once into VMEM scratch; later tiles reuse it.
    """
    i = pl.program_id(1)
    E = x_ref.shape[2]
    TQ = o_ref.shape[1]

    @pl.when(i == 0)
    def _project_qkv():
        x = x_ref[0]                                                   # (S, E)
        qkv = jnp.dot(x, wqkv_ref[...],
                      preferred_element_type=jnp.float32) + bqkv_ref[0]
        q_scr[...] = qkv[:, :E].astype(q_scr.dtype)        # scale folded into W_q
        k_scr[...] = qkv[:, E:2 * E].astype(k_scr.dtype)
        v_scr[...] = qkv[:, 2 * E:].astype(v_scr.dtype)

    row0 = pl.multiple_of(i * TQ, TQ)
    q = q_scr[pl.ds(row0, TQ), :]                                      # (TQ, E)
    out = _attend(q, k_scr, v_scr, wo_ref, bo_ref, num_heads)
    o_ref[0] = out.astype(o_ref.dtype)


def mha_cross_kernel(xq_ref, xk_ref, xv_ref, wqkv_ref, bqkv_ref, wo_ref, bo_ref,
                     o_ref, k_scr, v_scr, *, num_heads):
    """General path (distinct query / key / value tensors)."""
    i = pl.program_id(1)
    E = xq_ref.shape[2]

    @pl.when(i == 0)
    def _project_kv():
        k = jnp.dot(xk_ref[0], wqkv_ref[:, E:2 * E],
                    preferred_element_type=jnp.float32) + bqkv_ref[0, E:2 * E]
        v = jnp.dot(xv_ref[0], wqkv_ref[:, 2 * E:],
                    preferred_element_type=jnp.float32) + bqkv_ref[0, 2 * E:]
        k_scr[...] = k.astype(k_scr.dtype)
        v_scr[...] = v.astype(v_scr.dtype)

    q = (jnp.dot(xq_ref[0], wqkv_ref[:, :E],
                 preferred_element_type=jnp.float32) + bqkv_ref[0, :E]
         ).astype(k_scr.dtype)                                         # (TQ, E)
    out = _attend(q, k_scr, v_scr, wo_ref, bo_ref, num_heads)
    o_ref[0] = out.astype(o_ref.dtype)


def _pick_q_tile(seq_len):
    # Prefer 64 (gives >= 2 grid steps per batch at S >= 128 and keeps the
    # second-to-last dim a multiple of 8); fall back to any clean divisor.
    for t in (64, 128, 32, 16, 8):
        if seq_len % t == 0:
            return t
    return seq_len


def multi_head_attention(query, key, value, params, num_heads):
    """params: torch-convention weights W_* (E, E) and biases b_* (E,)."""
    B, Sq, E = query.shape
    assert E % num_heads == 0, "embed_dim must be divisible by num_heads"
    D = E // num_heads
    scale = 1.0 / math.sqrt(D)

    # Fused, pre-transposed QKV weight (in, 3*out).  The 1/sqrt(head_dim)
    # score scale is folded into the query weight & bias -> free at runtime.
    wqkv = jnp.concatenate(
        [params["W_q"].T * scale, params["W_k"].T, params["W_v"].T], axis=1)   # (E, 3E)
    bqkv = jnp.concatenate(
        [params["b_q"] * scale, params["b_k"], params["b_v"]]).reshape(1, 3 * E)
    wo = params["W_o"].T                                                       # (E, E)
    bo = params["b_o"].reshape(1, E)

    TQ = _pick_q_tile(Sq)
    grid = (B, Sq // TQ)
    self_attention = (query is key) and (key is value)

    wqkv_spec = pl.BlockSpec((E, 3 * E), lambda b, i: (0, 0))
    bqkv_spec = pl.BlockSpec((1, 3 * E), lambda b, i: (0, 0))
    wo_spec = pl.BlockSpec((E, E), lambda b, i: (0, 0))
    bo_spec = pl.BlockSpec((1, E), lambda b, i: (0, 0))
    out_spec = pl.BlockSpec((1, TQ, E), lambda b, i: (b, i, 0))

    itm = jnp.dtype(query.dtype).itemsize
    w_itm = jnp.dtype(wqkv.dtype).itemsize
    w_bytes = (E * 3 * E + 3 * E + E * E + E) * w_itm

    if self_attention:
        kernel = functools.partial(mha_self_kernel, num_heads=num_heads)
        in_specs = [pl.BlockSpec((1, Sq, E), lambda b, i: (b, 0, 0)),   # x once
                    wqkv_spec, bqkv_spec, wo_spec, bo_spec]
        scratch = [pltpu.VMEM((Sq, E), query.dtype) for _ in range(3)]
        args = (query, wqkv, bqkv, wo, bo)
        block_bytes = Sq * E * itm + w_bytes + TQ * E * itm
        scratch_bytes = 3 * Sq * E * itm
    else:
        Skv = key.shape[1]
        kernel = functools.partial(mha_cross_kernel, num_heads=num_heads)
        in_specs = [pl.BlockSpec((1, TQ, E), lambda b, i: (b, i, 0)),
                    pl.BlockSpec((1, Skv, E), lambda b, i: (b, 0, 0)),
                    pl.BlockSpec((1, Skv, E), lambda b, i: (b, 0, 0)),
                    wqkv_spec, bqkv_spec, wo_spec, bo_spec]
        scratch = [pltpu.VMEM((Skv, E), key.dtype),
                   pltpu.VMEM((Skv, E), value.dtype)]
        args = (query, key, value, wqkv, bqkv, wo, bo)
        block_bytes = (TQ * E + 2 * Skv * E) * itm + w_bytes + TQ * E * itm
        scratch_bytes = 2 * Skv * E * itm

    # Size the scoped VMEM limit to the actual working set (double-buffered
    # blocks + scratch + headroom); defaults are only 16 MiB (v5e) / 32 MiB (v6e).
    vmem_limit = int(min(max(4 * block_bytes + scratch_bytes + (16 << 20), 32 << 20),
                         100 << 20))

    return pl.pallas_call(
        kernel,
        out_shape=jax.ShapeDtypeStruct((B, Sq, E), query.dtype),
        grid=grid,
        in_specs=in_specs,
        out_specs=out_spec,
        scratch_shapes=scratch,
        compiler_params=pltpu.CompilerParams(
            dimension_semantics=("parallel", "arbitrary"),
            vmem_limit_bytes=vmem_limit,
        ),
    )(*args)


def mha_reference(query, key, value, params, num_heads):
    """Pure-JAX reference matching the PyTorch forward exactly (no mask)."""
    B, Sq, E = query.shape
    D = E // num_heads
    hi = lax.Precision.HIGHEST

    def lin(x, w, b):
        return jnp.einsum("bse,oe->bso", x, w, precision=hi) + b

    def split(x):
        return x.reshape(x.shape[0], x.shape[1], num_heads, D).transpose(0, 2, 1, 3)

    q = split(lin(query, params["W_q"], params["b_q"]))
    k = split(lin(key, params["W_k"], params["b_k"]))
    v = split(lin(value, params["W_v"], params["b_v"]))
    s = jnp.einsum("bhqd,bhkd->bhqk", q, k, precision=hi) / jnp.sqrt(jnp.float32(D))
    p = jax.nn.softmax(s, axis=-1)
    ctx = jnp.einsum("bhqk,bhkd->bhqd", p, v, precision=hi)
    ctx = ctx.transpose(0, 2, 1, 3).reshape(B, Sq, E)
    return lin(ctx, params["W_o"], params["b_o"])


if __name__ == "__main__":
    B, S, E, H = 2, 128, 128, 4   # lane-dense demo shapes (E % 128 == 0)

    key0 = jax.random.PRNGKey(0)
    ks = jax.random.split(key0, 12)
    bound = 1.0 / math.sqrt(E)

    def u(k, shape):
        return jax.random.uniform(k, shape, jnp.float32, -bound, bound)

    params = {
        "W_q": u(ks[0], (E, E)), "b_q": u(ks[1], (E,)),
        "W_k": u(ks[2], (E, E)), "b_k": u(ks[3], (E,)),
        "W_v": u(ks[4], (E, E)), "b_v": u(ks[5], (E,)),
        "W_o": u(ks[6], (E, E)), "b_o": u(ks[7], (E,)),
    }

    # 1) Self-attention (query = key = value): single-input fused-QKV fast path.
    x = jax.random.normal(ks[8], (B, S, E), jnp.float32)
    out = jax.block_until_ready(multi_head_attention(x, x, x, params, H))
    ref = mha_reference(x, x, x, params, H)
    assert out.shape == (B, S, E)
    assert jnp.allclose(out, ref, atol=2e-4, rtol=2e-4), "self-attention mismatch"

    # 2) Cross-attention (distinct tensors): general path.
    q_in = jax.random.normal(ks[9], (B, 64, E), jnp.float32)
    k_in = jax.random.normal(ks[10], (B, S, E), jnp.float32)
    v_in = jax.random.normal(ks[11], (B, S, E), jnp.float32)
    out_x = jax.block_until_ready(multi_head_attention(q_in, k_in, v_in, params, H))
    ref_x = mha_reference(q_in, k_in, v_in, params, H)
    assert out_x.shape == (B, 64, E)
    assert jnp.allclose(out_x, ref_x, atol=2e-4, rtol=2e-4), "cross-attention mismatch"

    print("KERNEL_OK")
</pallas_src>

<mosaic_0001>
module attributes {stable_mosaic.version = 11 : i64} {
  func.func @mha_self_kernel(%arg0: i32, %arg1: i32, %arg2: memref<1x128x128xf32, #tpu.memory_space<vmem>>, %arg3: memref<128x384xf32, #tpu.memory_space<vmem>>, %arg4: memref<1x384xf32, #tpu.memory_space<vmem>>, %arg5: memref<128x128xf32, #tpu.memory_space<vmem>>, %arg6: memref<1x128xf32, #tpu.memory_space<vmem>>, %arg7: memref<1x64x128xf32, #tpu.memory_space<vmem>>, %arg8: memref<128x128xf32, #tpu.memory_space<vmem>>, %arg9: memref<128x128xf32, #tpu.memory_space<vmem>>, %arg10: memref<128x128xf32, #tpu.memory_space<vmem>>) attributes {dimension_semantics = [#tpu.dimension_semantics<parallel>, #tpu.dimension_semantics<arbitrary>], iteration_bounds = array<i64: 2, 2>, scalar_prefetch = 0 : i64, scratch_operands = 3 : i64, tpu.core_type = #tpu.core_type<tc>, window_params = [{transform_indices = @transform_0, window_bounds = array<i64: 1, 128, 128>}, {pipeline_mode = #tpu.pipeline_mode<synchronous>, transform_indices = @transform_1, window_bounds = array<i64: 128, 384>}, {pipeline_mode = #tpu.pipeline_mode<synchronous>, transform_indices = @transform_2, window_bounds = array<i64: 1, 384>}, {pipeline_mode = #tpu.pipeline_mode<synchronous>, transform_indices = @transform_3, window_bounds = array<i64: 128, 128>}, {pipeline_mode = #tpu.pipeline_mode<synchronous>, transform_indices = @transform_4, window_bounds = array<i64: 1, 128>}, {transform_indices = @transform_5, window_bounds = array<i64: 1, 64, 128>}]} {
    %c0_i32 = arith.constant 0 : i32
    %0 = arith.cmpi eq, %arg1, %c0_i32 : i32
    %1 = arith.extui %0 : i1 to i32
    %c0_i32_0 = arith.constant 0 : i32
    %2 = arith.cmpi ne, %1, %c0_i32_0 : i32
    scf.if %2 {
      %c0_47 = arith.constant 0 : index
      %c0_48 = arith.constant 0 : index
      %c0_49 = arith.constant 0 : index
      %88 = vector.load %arg2[%c0_47, %c0_48, %c0_49] : memref<1x128x128xf32, #tpu.memory_space<vmem>>, vector<1x128x128xf32>
      %89 = vector.shape_cast %88 : vector<1x128x128xf32> to vector<128x128xf32>
      %c0_50 = arith.constant 0 : index
      %c0_51 = arith.constant 0 : index
      %90 = vector.load %arg3[%c0_50, %c0_51] : memref<128x384xf32, #tpu.memory_space<vmem>>, vector<128x384xf32>
      %cst_52 = arith.constant dense<0.000000e+00> : vector<128x384xf32>
      %91 = tpu.matmul %89, %90, %cst_52 {dimension_numbers = #tpu.dot_dimension_numbers<[1], [0], [0], [1], [0, 0, 1, 1], [], []>} : vector<128x128xf32>, vector<128x384xf32>, vector<128x384xf32> -> vector<128x384xf32>
      %c0_53 = arith.constant 0 : index
      %c0_54 = arith.constant 0 : index
      %92 = vector.load %arg4[%c0_53, %c0_54] : memref<1x384xf32, #tpu.memory_space<vmem>>, vector<1x384xf32>
      %93 = vector.shape_cast %92 : vector<1x384xf32> to vector<384xf32>
      %94 = vector.shape_cast %93 : vector<384xf32> to vector<1x384xf32>
      %95 = vector.broadcast %94 : vector<1x384xf32> to vector<128x384xf32>
      %96 = arith.addf %91, %95 : vector<128x384xf32>
      %97 = vector.extract_strided_slice %96 {offsets = [0, 0], sizes = [128, 128], strides = [1, 1]} : vector<128x384xf32> to vector<128x128xf32>
      %c0_55 = arith.constant 0 : index
      %c0_56 = arith.constant 0 : index
      %98 = vector.load %arg8[%c0_55, %c0_56] : memref<128x128xf32, #tpu.memory_space<vmem>>, vector<128x128xf32>
      tpu.vector_store %arg8[%c0_55, %c0_56], %97 {strides = array<i32>} : memref<128x128xf32, #tpu.memory_space<vmem>>, vector<128x128xf32>,
      %99 = vector.extract_strided_slice %96 {offsets = [0, 128], sizes = [128, 128], strides = [1, 1]} : vector<128x384xf32> to vector<128x128xf32>
      %c0_57 = arith.constant 0 : index
      %c0_58 = arith.constant 0 : index
      %100 = vector.load %arg9[%c0_57, %c0_58] : memref<128x128xf32, #tpu.memory_space<vmem>>, vector<128x128xf32>
      tpu.vector_store %arg9[%c0_57, %c0_58], %99 {strides = array<i32>} : memref<128x128xf32, #tpu.memory_space<vmem>>, vector<128x128xf32>,
      %101 = vector.extract_strided_slice %96 {offsets = [0, 256], sizes = [128, 128], strides = [1, 1]} : vector<128x384xf32> to vector<128x128xf32>
      %c0_59 = arith.constant 0 : index
      %c0_60 = arith.constant 0 : index
      %102 = vector.load %arg10[%c0_59, %c0_60] : memref<128x128xf32, #tpu.memory_space<vmem>>, vector<128x128xf32>
      tpu.vector_store %arg10[%c0_59, %c0_60], %101 {strides = array<i32>} : memref<128x128xf32, #tpu.memory_space<vmem>>, vector<128x128xf32>,
    } else {
    }
    %c64_i32 = arith.constant 64 : i32
    %3 = arith.muli %arg1, %c64_i32 : i32
    %4 = tpu.assume_multiple %3, 64 : i32
    %5 = arith.index_cast %4 : i32 to index
    %c0 = arith.constant 0 : index
    %6 = vector.load %arg8[%5, %c0] : memref<128x128xf32, #tpu.memory_space<vmem>>, vector<64x128xf32>
    %cst = arith.constant 0.000000e+00 : f32
    %7 = vector.broadcast %cst : f32 to vector<64x128xf32>
    %c0_1 = arith.constant 0 : index
    %c0_2 = arith.constant 0 : index
    %8 = vector.load %arg9[%c0_1, %c0_2] : memref<128x128xf32, #tpu.memory_space<vmem>>, vector<128x32xf32>
    %c0_3 = arith.constant 0 : index
    %c0_4 = arith.constant 0 : index
    %9 = vector.load %arg10[%c0_3, %c0_4] : memref<128x128xf32, #tpu.memory_space<vmem>>, vector<128x32xf32>
    %10 = vector.extract_strided_slice %6 {offsets = [0, 0], sizes = [64, 32], strides = [1, 1]} : vector<64x128xf32> to vector<64x32xf32>
    %cst_5 = arith.constant dense<0.000000e+00> : vector<64x128xf32>
    %11 = tpu.matmul %10, %8, %cst_5 {dimension_numbers = #tpu.dot_dimension_numbers<[1], [1], [0], [0], [0, 0, 1, 0], [], []>} : vector<64x32xf32>, vector<128x32xf32>, vector<64x128xf32> -> vector<64x128xf32>
    %cst_6 = arith.constant dense<0xFF800000> : vector<64xf32>
    %12 = vector.multi_reduction <maximumf>, %11, %cst_6 [1] : vector<64x128xf32> to vector<64xf32>
    %13 = vector.shape_cast %12 : vector<64xf32> to vector<64x1xf32>
    %14 = vector.broadcast %13 : vector<64x1xf32> to vector<64x128xf32>
    %15 = arith.subf %11, %14 : vector<64x128xf32>
    %16 = math.exp %15 : vector<64x128xf32>
    %cst_7 = arith.constant dense<0.000000e+00> : vector<64xf32>
    %17 = vector.multi_reduction <add>, %16, %cst_7 [1] : vector<64x128xf32> to vector<64xf32>
    %18 = vector.shape_cast %17 : vector<64xf32> to vector<64x1xf32>
    %cst_8 = arith.constant dense<0.000000e+00> : vector<64x32xf32>
    %19 = tpu.matmul %16, %9, %cst_8 {dimension_numbers = #tpu.dot_dimension_numbers<[1], [0], [0], [1], [0, 0, 1, 1], [], []>} : vector<64x128xf32>, vector<128x32xf32>, vector<64x32xf32> -> vector<64x32xf32>
    %20 = tpu.reciprocal %18 : vector<64x1xf32> -> vector<64x1xf32>
    %21 = vector.broadcast %20 : vector<64x1xf32> to vector<64x32xf32>
    %22 = arith.mulf %19, %21 : vector<64x32xf32>
    %c0_9 = arith.constant 0 : index
    %c0_10 = arith.constant 0 : index
    %23 = vector.load %arg5[%c0_9, %c0_10] : memref<128x128xf32, #tpu.memory_space<vmem>>, vector<32x128xf32>
    %cst_11 = arith.constant dense<0.000000e+00> : vector<64x128xf32>
    %24 = tpu.matmul %22, %23, %cst_11 {dimension_numbers = #tpu.dot_dimension_numbers<[1], [0], [0], [1], [0, 0, 1, 1], [], []>} : vector<64x32xf32>, vector<32x128xf32>, vector<64x128xf32> -> vector<64x128xf32>
    %25 = arith.addf %7, %24 : vector<64x128xf32>
    %c0_12 = arith.constant 0 : index
    %c32 = arith.constant 32 : index
    %26 = vector.load %arg9[%c0_12, %c32] : memref<128x128xf32, #tpu.memory_space<vmem>>, vector<128x32xf32>
    %c0_13 = arith.constant 0 : index
    %c32_14 = arith.constant 32 : index
    %27 = vector.load %arg10[%c0_13, %c32_14] : memref<128x128xf32, #tpu.memory_space<vmem>>, vector<128x32xf32>
    %28 = vector.extract_strided_slice %6 {offsets = [0, 32], sizes = [64, 32], strides = [1, 1]} : vector<64x128xf32> to vector<64x32xf32>
    %cst_15 = arith.constant dense<0.000000e+00> : vector<64x128xf32>
    %29 = tpu.matmul %28, %26, %cst_15 {dimension_numbers = #tpu.dot_dimension_numbers<[1], [1], [0], [0], [0, 0, 1, 0], [], []>} : vector<64x32xf32>, vector<128x32xf32>, vector<64x128xf32> -> vector<64x128xf32>
    %cst_16 = arith.constant dense<0xFF800000> : vector<64xf32>
    %30 = vector.multi_reduction <maximumf>, %29, %cst_16 [1] : vector<64x128xf32> to vector<64xf32>
    %31 = vector.shape_cast %30 : vector<64xf32> to vector<64x1xf32>
    %32 = vector.broadcast %31 : vector<64x1xf32> to vector<64x128xf32>
    %33 = arith.subf %29, %32 : vector<64x128xf32>
    %34 = math.exp %33 : vector<64x128xf32>
    %cst_17 = arith.constant dense<0.000000e+00> : vector<64xf32>
    %35 = vector.multi_reduction <add>, %34, %cst_17 [1] : vector<64x128xf32> to vector<64xf32>
    %36 = vector.shape_cast %35 : vector<64xf32> to vector<64x1xf32>
    %cst_18 = arith.constant dense<0.000000e+00> : vector<64x32xf32>
    %37 = tpu.matmul %34, %27, %cst_18 {dimension_numbers = #tpu.dot_dimension_numbers<[1], [0], [0], [1], [0, 0, 1, 1], [], []>} : vector<64x128xf32>, vector<128x32xf32>, vector<64x32xf32> -> vector<64x32xf32>
    %38 = tpu.reciprocal %36 : vector<64x1xf32> -> vector<64x1xf32>
    %39 = vector.broadcast %38 : vector<64x1xf32> to vector<64x32xf32>
    %40 = arith.mulf %37, %39 : vector<64x32xf32>
    %c32_19 = arith.constant 32 : index
    %c0_20 = arith.constant 0 : index
    %41 = vector.load %arg5[%c32_19, %c0_20] : memref<128x128xf32, #tpu.memory_space<vmem>>, vector<32x128xf32>
    %cst_21 = arith.constant dense<0.000000e+00> : vector<64x128xf32>
    %42 = tpu.matmul %40, %41, %cst_21 {dimension_numbers = #tpu.dot_dimension_numbers<[1], [0], [0], [1], [0, 0, 1, 1], [], []>} : vector<64x32xf32>, vector<32x128xf32>, vector<64x128xf32> -> vector<64x128xf32>
    %43 = arith.addf %25, %42 : vector<64x128xf32>
    %c0_22 = arith.constant 0 : index
    %c64 = arith.constant 64 : index
    %44 = vector.load %arg9[%c0_22, %c64] : memref<128x128xf32, #tpu.memory_space<vmem>>, vector<128x32xf32>
    %c0_23 = arith.constant 0 : index
    %c64_24 = arith.constant 64 : index
    %45 = vector.load %arg10[%c0_23, %c64_24] : memref<128x128xf32, #tpu.memory_space<vmem>>, vector<128x32xf32>
    %46 = vector.extract_strided_slice %6 {offsets = [0, 64], sizes = [64, 32], strides = [1, 1]} : vector<64x128xf32> to vector<64x32xf32>
    %cst_25 = arith.constant dense<0.000000e+00> : vector<64x128xf32>
    %47 = tpu.matmul %46, %44, %cst_25 {dimension_numbers = #tpu.dot_dimension_numbers<[1], [1], [0], [0], [0, 0, 1, 0], [], []>} : vector<64x32xf32>, vector<128x32xf32>, vector<64x128xf32> -> vector<64x128xf32>
    %cst_26 = arith.constant dense<0xFF800000> : vector<64xf32>
    %48 = vector.multi_reduction <maximumf>, %47, %cst_26 [1] : vector<64x128xf32> to vector<64xf32>
    %49 = vector.shape_cast %48 : vector<64xf32> to vector<64x1xf32>
    %50 = vector.broadcast %49 : vector<64x1xf32> to vector<64x128xf32>
    %51 = arith.subf %47, %50 : vector<64x128xf32>
    %52 = math.exp %51 : vector<64x128xf32>
    %cst_27 = arith.constant dense<0.000000e+00> : vector<64xf32>
    %53 = vector.multi_reduction <add>, %52, %cst_27 [1] : vector<64x128xf32> to vector<64xf32>
    %54 = vector.shape_cast %53 : vector<64xf32> to vector<64x1xf32>
    %cst_28 = arith.constant dense<0.000000e+00> : vector<64x32xf32>
    %55 = tpu.matmul %52, %45, %cst_28 {dimension_numbers = #tpu.dot_dimension_numbers<[1], [0], [0], [1], [0, 0, 1, 1], [], []>} : vector<64x128xf32>, vector<128x32xf32>, vector<64x32xf32> -> vector<64x32xf32>
    %56 = tpu.reciprocal %54 : vector<64x1xf32> -> vector<64x1xf32>
    %57 = vector.broadcast %56 : vector<64x1xf32> to vector<64x32xf32>
    %58 = arith.mulf %55, %57 : vector<64x32xf32>
    %c64_29 = arith.constant 64 : index
    %c0_30 = arith.constant 0 : index
    %59 = vector.load %arg5[%c64_29, %c0_30] : memref<128x128xf32, #tpu.memory_space<vmem>>, vector<32x128xf32>
    %cst_31 = arith.constant dense<0.000000e+00> : vector<64x128xf32>
    %60 = tpu.matmul %58, %59, %cst_31 {dimension_numbers = #tpu.dot_dimension_numbers<[1], [0], [0], [1], [0, 0, 1, 1], [], []>} : vector<64x32xf32>, vector<32x128xf32>, vector<64x128xf32> -> vector<64x128xf32>
    %61 = arith.addf %43, %60 : vector<64x128xf32>
    %c0_32 = arith.constant 0 : index
    %c96 = arith.constant 96 : index
    %62 = vector.load %arg9[%c0_32, %c96] : memref<128x128xf32, #tpu.memory_space<vmem>>, vector<128x32xf32>
    %c0_33 = arith.constant 0 : index
    %c96_34 = arith.constant 96 : index
    %63 = vector.load %arg10[%c0_33, %c96_34] : memref<128x128xf32, #tpu.memory_space<vmem>>, vector<128x32xf32>
    %64 = vector.extract_strided_slice %6 {offsets = [0, 96], sizes = [64, 32], strides = [1, 1]} : vector<64x128xf32> to vector<64x32xf32>
    %cst_35 = arith.constant dense<0.000000e+00> : vector<64x128xf32>
    %65 = tpu.matmul %64, %62, %cst_35 {dimension_numbers = #tpu.dot_dimension_numbers<[1], [1], [0], [0], [0, 0, 1, 0], [], []>} : vector<64x32xf32>, vector<128x32xf32>, vector<64x128xf32> -> vector<64x128xf32>
    %cst_36 = arith.constant dense<0xFF800000> : vector<64xf32>
    %66 = vector.multi_reduction <maximumf>, %65, %cst_36 [1] : vector<64x128xf32> to vector<64xf32>
    %67 = vector.shape_cast %66 : vector<64xf32> to vector<64x1xf32>
    %68 = vector.broadcast %67 : vector<64x1xf32> to vector<64x128xf32>
    %69 = arith.subf %65, %68 : vector<64x128xf32>
    %70 = math.exp %69 : vector<64x128xf32>
    %cst_37 = arith.constant dense<0.000000e+00> : vector<64xf32>
    %71 = vector.multi_reduction <add>, %70, %cst_37 [1] : vector<64x128xf32> to vector<64xf32>
    %72 = vector.shape_cast %71 : vector<64xf32> to vector<64x1xf32>
    %cst_38 = arith.constant dense<0.000000e+00> : vector<64x32xf32>
    %73 = tpu.matmul %70, %63, %cst_38 {dimension_numbers = #tpu.dot_dimension_numbers<[1], [0], [0], [1], [0, 0, 1, 1], [], []>} : vector<64x128xf32>, vector<128x32xf32>, vector<64x32xf32> -> vector<64x32xf32>
    %74 = tpu.reciprocal %72 : vector<64x1xf32> -> vector<64x1xf32>
    %75 = vector.broadcast %74 : vector<64x1xf32> to vector<64x32xf32>
    %76 = arith.mulf %73, %75 : vector<64x32xf32>
    %c96_39 = arith.constant 96 : index
    %c0_40 = arith.constant 0 : index
    %77 = vector.load %arg5[%c96_39, %c0_40] : memref<128x128xf32, #tpu.memory_space<vmem>>, vector<32x128xf32>
    %cst_41 = arith.constant dense<0.000000e+00> : vector<64x128xf32>
    %78 = tpu.matmul %76, %77, %cst_41 {dimension_numbers = #tpu.dot_dimension_numbers<[1], [0], [0], [1], [0, 0, 1, 1], [], []>} : vector<64x32xf32>, vector<32x128xf32>, vector<64x128xf32> -> vector<64x128xf32>
    %79 = arith.addf %61, %78 : vector<64x128xf32>
    %c0_42 = arith.constant 0 : index
    %c0_43 = arith.constant 0 : index
    %80 = vector.load %arg6[%c0_42, %c0_43] : memref<1x128xf32, #tpu.memory_space<vmem>>, vector<1x128xf32>
    %81 = vector.shape_cast %80 : vector<1x128xf32> to vector<128xf32>
    %82 = vector.shape_cast %81 : vector<128xf32> to vector<1x128xf32>
    %83 = vector.broadcast %82 : vector<1x128xf32> to vector<64x128xf32>
    %84 = arith.addf %79, %83 : vector<64x128xf32>
    %c0_44 = arith.constant 0 : index
    %c0_45 = arith.constant 0 : index
    %c0_46 = arith.constant 0 : index
    %85 = vector.load %arg7[%c0_44, %c0_45, %c0_46] : memref<1x64x128xf32, #tpu.memory_space<vmem>>, vector<1x64x128xf32>
    %86 = vector.shape_cast %85 : vector<1x64x128xf32> to vector<64x128xf32>
    %87 = vector.shape_cast %84 : vector<64x128xf32> to vector<1x64x128xf32>
    tpu.vector_store %arg7[%c0_44, %c0_45, %c0_46], %87 {strides = array<i32>} : memref<1x64x128xf32, #tpu.memory_space<vmem>>, vector<1x64x128xf32>,
    return
  }
  func.func @transform_0(%arg0: i32, %arg1: i32) -> (i32, i32, i32) {
    %c0_i32 = arith.constant 0 : i32
    %c0_i32_0 = arith.constant 0 : i32
    %c0_i32_1 = arith.constant 0 : i32
    return %arg0, %c0_i32, %c0_i32_0 : i32, i32, i32
  }
  func.func @transform_1(%arg0: i32, %arg1: i32) -> (i32, i32) {
    %c0_i32 = arith.constant 0 : i32
    %c0_i32_0 = arith.constant 0 : i32
    %c0_i32_1 = arith.constant 0 : i32
    return %c0_i32, %c0_i32_0 : i32, i32
  }
  func.func @transform_2(%arg0: i32, %arg1: i32) -> (i32, i32) {
    %c0_i32 = arith.constant 0 : i32
    %c0_i32_0 = arith.constant 0 : i32
    %c0_i32_1 = arith.constant 0 : i32
    return %c0_i32, %c0_i32_0 : i32, i32
  }
  func.func @transform_3(%arg0: i32, %arg1: i32) -> (i32, i32) {
    %c0_i32 = arith.constant 0 : i32
    %c0_i32_0 = arith.constant 0 : i32
    %c0_i32_1 = arith.constant 0 : i32
    return %c0_i32, %c0_i32_0 : i32, i32
  }
  func.func @transform_4(%arg0: i32, %arg1: i32) -> (i32, i32) {
    %c0_i32 = arith.constant 0 : i32
    %c0_i32_0 = arith.constant 0 : i32
    %c0_i32_1 = arith.constant 0 : i32
    return %c0_i32, %c0_i32_0 : i32, i32
  }
  func.func @transform_5(%arg0: i32, %arg1: i32) -> (i32, i32, i32) {
    %c0_i32 = arith.constant 0 : i32
    %c0_i32_0 = arith.constant 0 : i32
    return %arg0, %arg1, %c0_i32 : i32, i32, i32
  }
}

</mosaic_0001>

<llo_original>
// kernel: tpu_custom_call.1
$region0: #{tpu_custom_call.1}
  #allocation0 [shape = 'u32[]', space=smem, size = 0x4, offset = 0x4, fixed_abs, tag = 'smem constant byte address 0x4 - core index']
  #allocation1 [shape = 'u32[144,128]{1,0:T(1,128)}', space=vmem, size = 0x12000, scoped, tag = 'internal scratch']
  #allocation2 [shape = 'f32[128,128]{1,0:T(8,128)}', space=vmem, size = 0x10000, scoped, tag = 'scratch operand']
  #allocation3 [shape = 'f32[128,128]{1,0:T(8,128)}', space=vmem, size = 0x10000, scoped, tag = 'scratch operand']
  #allocation4 [shape = 'f32[128,128]{1,0:T(8,128)}', space=vmem, size = 0x10000, scoped, tag = 'scratch operand']
  %s0 = inlined_call_operand.hbm [shape: f32[2,128,128], index: 0, kind: input, shape index: {}]
  %s1 = inlined_call_operand.hbm [shape: f32[128,384], index: 1, kind: input, shape index: {}]
  %s2 = inlined_call_operand.vmem [shape: f32[1,384], index: 2, kind: input, shape index: {}]
  %s3 = inlined_call_operand.hbm [shape: f32[128,128], index: 3, kind: input, shape index: {}]
  %s4 = inlined_call_operand.vmem [shape: f32[1,128], index: 4, kind: input, shape index: {}]
  %s5 = inlined_call_operand.hbm [shape: f32[2,128,128], index: 5, kind: output, shape index: {}]
  %s6 = sld [smem:[#allocation0]]
  $region69: #{tpu_custom_call.1} parent=0
    _
  %s8 = ssub.s32 1, %s6
  %s9 = scalar_select 0, %s8, %s6
  $region1: #{tpu_custom_call.1} parent=0
    #allocation5 [shape = 'u8[131072]{0}', space=vmem, size = 0x20000, scoped, tag = 'input window, operand 0']
    #allocation6 [shape = 's32[2]{0}', space=sflag, size = 0x8, scoped, tag = 'scoped memory for tpu_custom_call.1']
    #allocation7 [shape = 's32[2]{0}', space=sflag, size = 0x8, scoped, tag = 'scoped memory for tpu_custom_call.1']
    #allocation8 [shape = 'u8[196608]{0}', space=vmem, size = 0x30000, scoped, tag = 'input window, operand 1, single buffered']
    #allocation9 [shape = 's32[1]{0}', space=sflag, size = 0x4, scoped, tag = 'scoped memory for tpu_custom_call.1']
    #allocation10 [shape = 'u8[65536]{0}', space=vmem, size = 0x10000, scoped, tag = 'input window, operand 3, single buffered']
    #allocation11 [shape = 'u8[65536]{0}', space=vmem, size = 0x10000, scoped, tag = 'output window, operand 0']
    %10 = vsyncpa [#allocation6], 0
    %s11 = scalar_lea.sflag [#allocation6], 1
    %12 = vsyncpa %s11, 0
    %13 = vsyncpa [#allocation9], 0
    %14 = vsyncpa [#allocation7], 0
    %s15 = scalar_lea.sflag [#allocation7], 1
    %16 = vsyncpa %s15, 0
    loop: start=0, step=1, limit=6
    $region2: #{tpu_custom_call.1} parent=1 // loop_pre_header
      _
    $region3: #{tpu_custom_call.1} parent=1 // loop_header
      %s18 = sphi 0, %s22
      %p19 = scmp.ge.s32.totalorder %s18, 6
      %s25 = sphi 0, %s37
      %s26 = sphi 0, %s33
      %s27 = sphi 0, %s25
      %s28 = sphi 0, %s26
      %s29 = sphi 0, %s27
      %s30 = sphi 0, %s28
      %s40 = sphi 0, %s42
      %s43 = sphi 0, %s40
      %s44 = sphi 0, %s43
      %s60 = sphi 0, %s44
      %s64 = sphi 0, %s64
      %s66 = sphi 0, %s64
      %s67 = sphi 0, %s66
      %s81 = sphi 0, %s67
      %s85 = sphi 0, %s85
      %s87 = sphi 0, %s85
      %s88 = sphi 0, %s87
      %s102 = sphi 0, %s88
      %s106 = sphi 0, %s106
      %s108 = sphi 0, %s106
      %s109 = sphi 0, %s108
      %s123 = sphi 0, %s109
      %s127 = sphi 0, %s127
      %s129 = sphi 0, %s127
      %s130 = sphi 0, %s129
      %s144 = sphi 0, %s130
      %s152 = sphi 0, %s154
      %s155 = sphi 0, %s152
      %s156 = sphi 0, %s155
      %s172 = sphi 0, %s156
    $region4: #{tpu_custom_call.1} parent=1 // loop_header_branch
      %21 = sbr.rel (%p19) target = $region8
    $region5: #{tpu_custom_call.1} parent=1 // loop_body
      %s23 = ssub.s32 %s18, 1
      %s24 = ssub.s32 %s18, 2
      %s31 = sadd.s32 1, %s26
      %p32 = scmp.ge.s32.totalorder %s31, 2
      %s33 = scalar_select %p32, 0, %s31
      %s34 = sadd.s32 1, %s25
      %s35 = scalar_select %p32, %s34, %s25
      %p36 = scmp.ge.s32.totalorder %s35, 2
      %s37 = scalar_select %p36, 0, %s35
      %s38 = ssub.s32 %s25, %s37
      %p39 = scmp.eq.s32.totalorder %s38, 0
      %s41 = sadd.s32 %s40, 1
      %s42 = scalar_select %p39, %s40, %s41
      %p45 = pneg %p39
      %p46 = scmp.eq.s32.totalorder %s18, 3
      %p47 = por %p45, %p46
      %p48 = scmp.ne.s32.totalorder %s40, %s43
      %p49 = scmp.eq.s32.totalorder %s18, 0
      %p50 = por %p48, %p49
      %p51 = scmp.ne.s32.totalorder %s40, %s43
      %p52 = scmp.eq.s32.totalorder %s23, 3
      %p53 = por %p51, %p52
      %p54 = scmp.ne.s32.totalorder %s43, %s44
      %p55 = scmp.eq.s32.totalorder %s23, 0
      %p56 = por %p54, %p55
      %p57 = scmp.ne.s32.totalorder %s43, %s44
      %p58 = scmp.eq.s32.totalorder %s24, 3
      %p59 = por %p57, %p58
      %p61 = scmp.ne.s32.totalorder %s44, %s60
      %p62 = scmp.eq.s32.totalorder %s24, 0
      %p63 = por %p61, %p62
      %s65 = sadd.s32 %s64, 1
      %p68 = scmp.eq.s32.totalorder %s18, 3
      %p69 = scmp.ne.s32.totalorder %s64, %s66
      %p70 = scmp.eq.s32.totalorder %s18, 0
      %p71 = por %p69, %p70
      %p72 = scmp.ne.s32.totalorder %s64, %s66
      %p73 = scmp.eq.s32.totalorder %s23, 3
      %p74 = por %p72, %p73
      %p75 = scmp.ne.s32.totalorder %s66, %s67
      %p76 = scmp.eq.s32.totalorder %s23, 0
      %p77 = por %p75, %p76
      %p78 = scmp.ne.s32.totalorder %s66, %s67
      %p79 = scmp.eq.s32.totalorder %s24, 3
      %p80 = por %p78, %p79
      %p82 = scmp.ne.s32.totalorder %s67, %s81
      %p83 = scmp.eq.s32.totalorder %s24, 0
      %p84 = por %p82, %p83
      %s86 = sadd.s32 %s85, 1
      %p89 = scmp.eq.s32.totalorder %s18, 3
      %p90 = scmp.ne.s32.totalorder %s85, %s87
      %p91 = scmp.eq.s32.totalorder %s18, 0
      %p92 = por %p90, %p91
      %p93 = scmp.ne.s32.totalorder %s85, %s87
      %p94 = scmp.eq.s32.totalorder %s23, 3
      %p95 = por %p93, %p94
      %p96 = scmp.ne.s32.totalorder %s87, %s88
      %p97 = scmp.eq.s32.totalorder %s23, 0
      %p98 = por %p96, %p97
      %p99 = scmp.ne.s32.totalorder %s87, %s88
      %p100 = scmp.eq.s32.totalorder %s24, 3
      %p101 = por %p99, %p100
      %p103 = scmp.ne.s32.totalorder %s88, %s102
      %p104 = scmp.eq.s32.totalorder %s24, 0
      %p105 = por %p103, %p104
      %s107 = sadd.s32 %s106, 1
      %p110 = scmp.eq.s32.totalorder %s18, 3
      %p111 = scmp.ne.s32.totalorder %s106, %s108
      %p112 = scmp.eq.s32.totalorder %s18, 0
      %p113 = por %p111, %p112
      %p114 = scmp.ne.s32.totalorder %s106, %s108
      %p115 = scmp.eq.s32.totalorder %s23, 3
      %p116 = por %p114, %p115
      %p117 = scmp.ne.s32.totalorder %s108, %s109
      %p118 = scmp.eq.s32.totalorder %s23, 0
      %p119 = por %p117, %p118
      %p120 = scmp.ne.s32.totalorder %s108, %s109
      %p121 = scmp.eq.s32.totalorder %s24, 3
      %p122 = por %p120, %p121
      %p124 = scmp.ne.s32.totalorder %s109, %s123
      %p125 = scmp.eq.s32.totalorder %s24, 0
      %p126 = por %p124, %p125
      %s128 = sadd.s32 %s127, 1
      %p131 = scmp.eq.s32.totalorder %s18, 3
      %p132 = scmp.ne.s32.totalorder %s127, %s129
      %p133 = scmp.eq.s32.totalorder %s18, 0
      %p134 = por %p132, %p133
      %p135 = scmp.ne.s32.totalorder %s127, %s129
      %p136 = scmp.eq.s32.totalorder %s23, 3
      %p137 = por %p135, %p136
      %p138 = scmp.ne.s32.totalorder %s129, %s130
      %p139 = scmp.eq.s32.totalorder %s23, 0
      %p140 = por %p138, %p139
      %p141 = scmp.ne.s32.totalorder %s129, %s130
      %p142 = scmp.eq.s32.totalorder %s24, 3
      %p143 = por %p141, %p142
      %p145 = scmp.ne.s32.totalorder %s130, %s144
      %p146 = scmp.eq.s32.totalorder %s24, 0
      %p147 = por %p145, %p146
      %s148 = ssub.s32 %s25, %s37
      %s149 = ssub.s32 %s26, %s33
      %s150 = sor.u32 %s148, %s149
      %p151 = scmp.eq.s32.totalorder %s150, 0
      %s153 = sadd.s32 %s152, 1
      %s154 = scalar_select %p151, %s152, %s153
      %p157 = pneg %p151
      %p158 = scmp.eq.s32.totalorder %s18, 3
      %p159 = por %p157, %p158
      %p160 = scmp.ne.s32.totalorder %s152, %s155
      %p161 = scmp.eq.s32.totalorder %s18, 0
      %p162 = por %p160, %p161
      %p163 = scmp.ne.s32.totalorder %s152, %s155
      %p164 = scmp.eq.s32.totalorder %s23, 3
      %p165 = por %p163, %p164
      %p166 = scmp.ne.s32.totalorder %s155, %s156
      %p167 = scmp.eq.s32.totalorder %s23, 0
      %p168 = por %p166, %p167
      %p169 = scmp.ne.s32.totalorder %s155, %s156
      %p170 = scmp.eq.s32.totalorder %s24, 3
      %p171 = por %p169, %p170
      %p173 = scmp.ne.s32.totalorder %s156, %s172
      %p174 = scmp.eq.s32.totalorder %s24, 0
      %p175 = por %p173, %p174
      %p176 = scmp.le.s32.totalorder 1, %s18
      %p177 = scmp.lt.s32.totalorder %s18, 5
      %p178 = pnand %p176, %p177
      %p179 = pneg %p178
      // Predicated region
      $region9: #{tpu_custom_call.1} parent=5 // pred_check
        _
      $region10: #{tpu_custom_call.1} parent=5 // pred_check_branch
        %181 = sbr.rel (%p178) target = $region12
      $region11: #{tpu_custom_call.1} parent=5 // pred_region
        %s182 = ssub.s32 %s18, 1
        // Predicated region
        $region13: #{tpu_custom_call.1} parent=11 // pred_check
          %p183 = pneg %p77
        $region14: #{tpu_custom_call.1} parent=11 // pred_check_branch
          %185 = sbr.rel (%p183) target = $region16
        $region15: #{tpu_custom_call.1} parent=11 // pred_region
          %s187 = ssub.s32 6144, 6144
          %188 = vsyncadd [#allocation9], %s187
          %s189 = sshll.u32 [#allocation8], 4
          %s190 = int_to_ptr.vmem [resolvable:$true] %s189
          %195 = dma.hbm_to_vmem [thread:$0]  %s1, 6144, %s190, [#allocation9], 384, 384, 24
        $region16: #{tpu_custom_call.1} parent=11 // pred_fallthru
          _
        // Predicated region
        $region17: #{tpu_custom_call.1} parent=11 // pred_check
          %p196 = pneg %p98
        $region18: #{tpu_custom_call.1} parent=11 // pred_check_branch
          %198 = sbr.rel (%p196) target = $region20
        $region19: #{tpu_custom_call.1} parent=11 // pred_region
          _
        $region20: #{tpu_custom_call.1} parent=11 // pred_fallthru
          _
        // Predicated region
        $region21: #{tpu_custom_call.1} parent=11 // pred_check
          %p199 = pneg %p119
        $region22: #{tpu_custom_call.1} parent=11 // pred_check_branch
          %201 = sbr.rel (%p199) target = $region24
        $region23: #{tpu_custom_call.1} parent=11 // pred_region
          %s203 = ssub.s32 2048, 2048
          %204 = vsyncadd [#allocation9], %s203
          %s205 = sshll.u32 [#allocation10], 4
          %s206 = int_to_ptr.vmem [resolvable:$true] %s205
          %211 = dma.hbm_to_vmem [thread:$0]  %s3, 2048, %s206, [#allocation9], 128, 128, 8
        $region24: #{tpu_custom_call.1} parent=11 // pred_fallthru
          _
        // Predicated region
        $region25: #{tpu_custom_call.1} parent=11 // pred_check
          %p212 = pneg %p140
        $region26: #{tpu_custom_call.1} parent=11 // pred_check_branch
          %214 = sbr.rel (%p212) target = $region28
        $region27: #{tpu_custom_call.1} parent=11 // pred_region
          _
        $region28: #{tpu_custom_call.1} parent=11 // pred_fallthru
          _
      $region12: #{tpu_custom_call.1} parent=5 // pred_fallthru
        _
      %p215 = scmp.lt.s32.totalorder %s18, 4
      // Predicated region
      $region29: #{tpu_custom_call.1} parent=5 // pred_check
        %p216 = pneg %p215
      $region30: #{tpu_custom_call.1} parent=5 // pred_check_branch
        %218 = sbr.rel (%p216) target = $region32
      $region31: #{tpu_custom_call.1} parent=5 // pred_region
        // Predicated region
        $region33: #{tpu_custom_call.1} parent=31 // pred_check
          %p219 = pneg %p50
        $region34: #{tpu_custom_call.1} parent=31 // pred_check_branch
          %221 = sbr.rel (%p219) target = $region36
        $region35: #{tpu_custom_call.1} parent=31 // pred_region
          %s222 = sand.u32 %s40, 1
          %s223 = scalar_lea.sflag [#allocation6], %s222
          %s224 = sand.u32 %s40, 1
          %s225 = smul.addr %s224, 128
          %s226 = scalar_lea.vmem [#allocation5], %s225
          %s228 = ssub.s32 2048, 2048
          %229 = vsyncadd %s223, %s228
          %s230 = smul.addr %s25, 16
          %s231 = smul.addr %s230, 128
          %s232 = scalar_lea.hbm %s0, %s231
          %s233 = sshll.u32 %s226, 4
          %s234 = int_to_ptr.vmem [resolvable:$true] %s233
          %239 = dma.hbm_to_vmem [thread:$0]  %s232, 2048, %s234, %s223, 128, 128, 8
        $region36: #{tpu_custom_call.1} parent=31 // pred_fallthru
          _
      $region32: #{tpu_custom_call.1} parent=5 // pred_fallthru
        _
      %p240 = scmp.le.s32.totalorder 1, %s18
      %p241 = scmp.lt.s32.totalorder %s18, 5
      %p242 = pnand %p240, %p241
      %p243 = pneg %p242
      // Predicated region
      $region37: #{tpu_custom_call.1} parent=5 // pred_check
        _
      $region38: #{tpu_custom_call.1} parent=5 // pred_check_branch
        %245 = sbr.rel (%p242) target = $region40
      $region39: #{tpu_custom_call.1} parent=5 // pred_region
        %s246 = ssub.s32 %s18, 1
        %s247 = sand.u32 %s43, 1
        %s248 = scalar_lea.sflag [#allocation6], %s247
        %s249 = sand.u32 %s43, 1
        %s250 = smul.addr %s249, 128
        %s251 = scalar_lea.vmem [#allocation5], %s250
        // Predicated region
        $region41: #{tpu_custom_call.1} parent=39 // pred_check
          %p252 = pneg %p56
        $region42: #{tpu_custom_call.1} parent=39 // pred_check_branch
          %254 = sbr.rel (%p252) target = $region44
        $region43: #{tpu_custom_call.1} parent=39 // pred_region
          %255 = dma.done %s248, 2048
        $region44: #{tpu_custom_call.1} parent=39 // pred_fallthru
          _
        // Predicated region
        $region45: #{tpu_custom_call.1} parent=39 // pred_check
          %p256 = pneg %p77
        $region46: #{tpu_custom_call.1} parent=39 // pred_check_branch
          %258 = sbr.rel (%p256) target = $region48
        $region47: #{tpu_custom_call.1} parent=39 // pred_region
          %259 = dma.done [#allocation9], 6144
        $region48: #{tpu_custom_call.1} parent=39 // pred_fallthru
          _
        // Predicated region
        $region49: #{tpu_custom_call.1} parent=39 // pred_check
          %p260 = pneg %p119
        $region50: #{tpu_custom_call.1} parent=39 // pred_check_branch
          %262 = sbr.rel (%p260) target = $region52
        $region51: #{tpu_custom_call.1} parent=39 // pred_region
          %263 = dma.done [#allocation9], 2048
        $region52: #{tpu_custom_call.1} parent=39 // pred_fallthru
          _
        %s264 = sand.u32 %s43, 1
        %s265 = scalar_lea.sflag [#allocation6], %s264
        %s266 = sand.u32 %s43, 1
        %s267 = smul.addr %s266, 128
        %s268 = scalar_lea.vmem [#allocation5], %s267
        %p269 = pneg %p56
        %p270 = pneg %p53
        %p271 = pneg %p77
        %p272 = pneg %p74
        %p273 = pneg %p98
        %p274 = pneg %p95
        %p275 = pneg %p119
        %p276 = pneg %p116
        %p277 = pneg %p140
        %p278 = pneg %p137
        %p279 = pneg %p168
        %p280 = pneg %p165
        %s281 = sand.u32 %s155, 1
        %s282 = scalar_lea.sflag [#allocation7], %s281
        %s283 = sand.u32 %s155, 1
        %s284 = smul.addr %s283, 64
        %s285 = scalar_lea.vmem [#allocation11], %s284
        %s286 = smul.u32 8, %s28
        %p287 = scmp.eq.s32.totalorder %s28, 0
        // Predicated region
        $region53: #{tpu_custom_call.1} parent=39 // pred_check
          %p288 = pneg %p287
        $region54: #{tpu_custom_call.1} parent=39 // pred_check_branch
          %290 = sbr.rel (%p288) target = $region56
        $region55: #{tpu_custom_call.1} parent=39 // pred_region
          %v291 = vld [vmem:[%s251] sm:$0xff]
          %v292 = vld [vmem:[%s251 + $0x8] sm:$0xff]
          %v293 = vld [vmem:[%s251 + $0x10] sm:$0xff]
          %v294 = vld [vmem:[%s251 + $0x18] sm:$0xff]
          %v295 = vld [vmem:[%s251 + $0x20] sm:$0xff]
          %v296 = vld [vmem:[%s251 + $0x28] sm:$0xff]
          %v297 = vld [vmem:[%s251 + $0x30] sm:$0xff]
          %v298 = vld [vmem:[%s251 + $0x38] sm:$0xff]
          %v299 = vld [vmem:[%s251 + $0x40] sm:$0xff]
          %v300 = vld [vmem:[%s251 + $0x48] sm:$0xff]
          %v301 = vld [vmem:[%s251 + $0x50] sm:$0xff]
          %v302 = vld [vmem:[%s251 + $0x58] sm:$0xff]
          %v303 = vld [vmem:[%s251 + $0x60] sm:$0xff]
          %v304 = vld [vmem:[%s251 + $0x68] sm:$0xff]
          %v305 = vld [vmem:[%s251 + $0x70] sm:$0xff]
          %v306 = vld [vmem:[%s251 + $0x78] sm:$0xff]
          %v307 = vld [vmem:[#allocation8] sm:$0xff]
          %v308 = vld [vmem:[#allocation8 + $0x8] sm:$0xff]
          %v309 = vld [vmem:[#allocation8 + $0x10] sm:$0xff]
          %v310 = vld [vmem:[#allocation8 + $0x18] sm:$0xff]
          %v311 = vld [vmem:[#allocation8 + $0x20] sm:$0xff]
          %v312 = vld [vmem:[#allocation8 + $0x28] sm:$0xff]
          %v313 = vld [vmem:[#allocation8 + $0x30] sm:$0xff]
          %v314 = vld [vmem:[#allocation8 + $0x38] sm:$0xff]
          %v315 = vld [vmem:[#allocation8 + $0x40] sm:$0xff]
          %v316 = vld [vmem:[#allocation8 + $0x48] sm:$0xff]
          %v317 = vld [vmem:[#allocation8 + $0x50] sm:$0xff]
          %v318 = vld [vmem:[#allocation8 + $0x58] sm:$0xff]
          %v319 = vld [vmem:[#allocation8 + $0x60] sm:$0xff]
          %v320 = vld [vmem:[#allocation8 + $0x68] sm:$0xff]
          %v321 = vld [vmem:[#allocation8 + $0x70] sm:$0xff]
          %v322 = vld [vmem:[#allocation8 + $0x78] sm:$0xff]
          %v323 = vld [vmem:[#allocation8 + $0x80] sm:$0xff]
          %v324 = vld [vmem:[#allocation8 + $0x88] sm:$0xff]
          %v325 = vld [vmem:[#allocation8 + $0x90] sm:$0xff]
          %v326 = vld [vmem:[#allocation8 + $0x98] sm:$0xff]
          %v327 = vld [vmem:[#allocation8 + $0xa0] sm:$0xff]
          %v328 = vld [vmem:[#allocation8 + $0xa8] sm:$0xff]
          %v329 = vld [vmem:[#allocation8 + $0xb0] sm:$0xff]
          %v330 = vld [vmem:[#allocation8 + $0xb8] sm:$0xff]
          %v331 = vld [vmem:[#allocation8 + $0xc0] sm:$0xff]
          %v332 = vld [vmem:[#allocation8 + $0xc8] sm:$0xff]
          %v333 = vld [vmem:[#allocation8 + $0xd0] sm:$0xff]
          %v334 = vld [vmem:[#allocation8 + $0xd8] sm:$0xff]
          %v335 = vld [vmem:[#allocation8 + $0xe0] sm:$0xff]
          %v336 = vld [vmem:[#allocation8 + $0xe8] sm:$0xff]
          %v337 = vld [vmem:[#allocation8 + $0xf0] sm:$0xff]
          %v338 = vld [vmem:[#allocation8 + $0xf8] sm:$0xff]
          %v339 = vld [vmem:[#allocation8 + $0x100] sm:$0xff]
          %v340 = vld [vmem:[#allocation8 + $0x108] sm:$0xff]
          %v341 = vld [vmem:[#allocation8 + $0x110] sm:$0xff]
          %v342 = vld [vmem:[#allocation8 + $0x118] sm:$0xff]
          %v343 = vld [vmem:[#allocation8 + $0x120] sm:$0xff]
          %v344 = vld [vmem:[#allocation8 + $0x128] sm:$0xff]
          %v345 = vld [vmem:[#allocation8 + $0x130] sm:$0xff]
          %v346 = vld [vmem:[#allocation8 + $0x138] sm:$0xff]
          %v347 = vld [vmem:[#allocation8 + $0x140] sm:$0xff]
          %v348 = vld [vmem:[#allocation8 + $0x148] sm:$0xff]
          %v349 = vld [vmem:[#allocation8 + $0x150] sm:$0xff]
          %v350 = vld [vmem:[#allocation8 + $0x158] sm:$0xff]
          %v351 = vld [vmem:[#allocation8 + $0x160] sm:$0xff]
          %v352 = vld [vmem:[#allocation8 + $0x168] sm:$0xff]
          %v353 = vld [vmem:[#allocation8 + $0x170] sm:$0xff]
          %v354 = vld [vmem:[#allocation8 + $0x178] sm:$0xff]
          %v355 = vld [vmem:[%s2] sm:$0x7]
          %v357 = vlaneseq
          %v358 = vshrl.u32 %v357, 7
          %v359 = vsub.s32 0, %v358
          %v360 = vrot.slane %v355, %v359
          %v361 = vlaneseq
          %v362 = vshrl.u32 %v361, 7
          %v363 = vsub.s32 1, %v362
          %v364 = vrot.slane %v355, %v363
          %v365 = vlaneseq
          %v366 = vshrl.u32 %v365, 7
          %v367 = vsub.s32 2, %v366
          %v368 = vrot.slane %v355, %v367
          %372 = vmatprep.subr.mxu0 %v308
          %373 = vmatpush1.msra.mxu0 %v307
          %374 = vmatprep.subr.mxu0 %v311
          %375 = vmatpush1.msra.mxu0 %v310
          %376 = vmatprep.subr.mxu0 %v314
          %377 = vmatpush1.msra.mxu0 %v313
          %378 = vmatprep.subr.mxu0 %v317
          %379 = vmatpush1.msra.mxu0 %v316
          %380 = vmatprep.subr.mxu0 %v320
          %381 = vmatpush1.msra.mxu0 %v319
          %382 = vmatprep.subr.mxu0 %v323
          %383 = vmatpush1.msra.mxu0 %v322
          %384 = vmatprep.subr.mxu0 %v326
          %385 = vmatpush1.msra.mxu0 %v325
          %386 = vmatprep.subr.mxu0 %v329
          %387 = vmatpush1.msra.mxu0 %v328
          %388 = vmatprep.subr.mxu0 %v332
          %389 = vmatpush1.msra.mxu0 %v331
          %390 = vmatprep.subr.mxu0 %v335
          %391 = vmatpush1.msra.mxu0 %v334
          %392 = vmatprep.subr.mxu0 %v338
          %393 = vmatpush1.msra.mxu0 %v337
          %394 = vmatprep.subr.mxu0 %v341
          %395 = vmatpush1.msra.mxu0 %v340
          %396 = vmatprep.subr.mxu0 %v344
          %397 = vmatpush1.msra.mxu0 %v343
          %398 = vmatprep.subr.mxu0 %v347
          %399 = vmatpush1.msra.mxu0 %v346
          %400 = vmatprep.subr.mxu0 %v350
          %401 = vmatpush1.msra.mxu0 %v349
          %402 = vmatprep.subr.mxu0 %v353
          %403 = vmatpush1.msra.mxu0 %v352
          %404 = vmatprep.subr.mxu0 0.0
          %405 = vmatpush1.msra.mxu0 0.0
          %406 = vmatprep.subr.mxu0 0.0
          %407 = vmatpush1.msra.mxu0 0.0
          %408 = vmatprep.subr.mxu0 0.0
          %409 = vmatpush1.msra.mxu0 0.0
          %410 = vmatprep.subr.mxu0 0.0
          %411 = vmatpush1.msra.mxu0 0.0
          %412 = vmatprep.subr.mxu0 0.0
          %413 = vmatpush1.msra.mxu0 0.0
          %414 = vmatprep.subr.mxu0 0.0
          %415 = vmatpush1.msra.mxu0 0.0
          %416 = vmatprep.subr.mxu0 0.0
          %417 = vmatpush1.msra.mxu0 0.0
          %418 = vmatprep.subr.mxu0 0.0
          %419 = vmatpush1.msra.mxu0 0.0
          %420 = vmatprep.subr.mxu0 0.0
          %421 = vmatpush1.msra.mxu0 0.0
          %422 = vmatprep.subr.mxu0 0.0
          %423 = vmatpush1.msra.mxu0 0.0
          %424 = vmatprep.subr.mxu0 0.0
          %425 = vmatpush1.msra.mxu0 0.0
          %426 = vmatprep.subr.mxu0 0.0
          %427 = vmatpush1.msra.mxu0 0.0
          %428 = vmatprep.subr.mxu0 0.0
          %429 = vmatpush1.msra.mxu0 0.0
          %430 = vmatprep.subr.mxu0 0.0
          %431 = vmatpush1.msra.mxu0 0.0
          %432 = vmatprep.subr.mxu0 0.0
          %433 = vmatpush1.msra.mxu0 0.0
          %434 = vmatprep.subr.mxu0 0.0
          %435 = vmatpush1.msra.mxu0 0.0
          %436 = vmatprep.mubr.f32.mxu0 0.0
          %437 = vmatmul.mubr.f32.gmra.mrb[0].mxu0 %v291
          %v438 = vpop.f32.mrb[0].mxu0
          %v439 = vadd.f32 %v360, %v438
          %v440 = vpop.f32.mrb[0].mxu0
          %v441 = vadd.f32 %v364, %v440
          %442 = vmatprep.mubr.f32.mxu0 0.0
          %443 = vmatmul.mubr.f32.gmra.mrb[0].mxu0 %v292
          %v444 = vpop.f32.mrb[0].mxu0
          %v445 = vadd.f32 %v360, %v444
          %v446 = vpop.f32.mrb[0].mxu0
          %v447 = vadd.f32 %v364, %v446
          %448 = vmatprep.mubr.f32.mxu0 0.0
          %449 = vmatmul.mubr.f32.gmra.mrb[0].mxu0 %v293
          %v450 = vpop.f32.mrb[0].mxu0
          %v451 = vadd.f32 %v360, %v450
          %v452 = vpop.f32.mrb[0].mxu0
          %v453 = vadd.f32 %v364, %v452
          %454 = vmatprep.mubr.f32.mxu0 0.0
          %455 = vmatmul.mubr.f32.gmra.mrb[0].mxu0 %v294
          %v456 = vpop.f32.mrb[0].mxu0
          %v457 = vadd.f32 %v360, %v456
          %v458 = vpop.f32.mrb[0].mxu0
          %v459 = vadd.f32 %v364, %v458
          %460 = vmatprep.mubr.f32.mxu0 0.0
          %461 = vmatmul.mubr.f32.gmra.mrb[0].mxu0 %v295
          %v462 = vpop.f32.mrb[0].mxu0
          %v463 = vadd.f32 %v360, %v462
          %v464 = vpop.f32.mrb[0].mxu0
          %v465 = vadd.f32 %v364, %v464
          %466 = vmatprep.mubr.f32.mxu0 0.0
          %467 = vmatmul.mubr.f32.gmra.mrb[0].mxu0 %v296
          %v468 = vpop.f32.mrb[0].mxu0
          %v469 = vadd.f32 %v360, %v468
          %v470 = vpop.f32.mrb[0].mxu0
          %v471 = vadd.f32 %v364, %v470
          %472 = vmatprep.mubr.f32.mxu0 0.0
          %473 = vmatmul.mubr.f32.gmra.mrb[0].mxu0 %v297
          %v474 = vpop.f32.mrb[0].mxu0
          %v475 = vadd.f32 %v360, %v474
          %v476 = vpop.f32.mrb[0].mxu0
          %v477 = vadd.f32 %v364, %v476
          %478 = vmatprep.mubr.f32.mxu0 0.0
          %479 = vmatmul.mubr.f32.gmra.mrb[0].mxu0 %v298
          %v480 = vpop.f32.mrb[0].mxu0
          %v481 = vadd.f32 %v360, %v480
          %v482 = vpop.f32.mrb[0].mxu0
          %v483 = vadd.f32 %v364, %v482
          %484 = vmatprep.mubr.f32.mxu0 0.0
          %485 = vmatmul.mubr.f32.gmra.mrb[0].mxu0 %v299
          %v486 = vpop.f32.mrb[0].mxu0
          %v487 = vadd.f32 %v360, %v486
          %v488 = vpop.f32.mrb[0].mxu0
          %v489 = vadd.f32 %v364, %v488
          %490 = vmatprep.mubr.f32.mxu0 0.0
          %491 = vmatmul.mubr.f32.gmra.mrb[0].mxu0 %v300
          %v492 = vpop.f32.mrb[0].mxu0
          %v493 = vadd.f32 %v360, %v492
          %v494 = vpop.f32.mrb[0].mxu0
          %v495 = vadd.f32 %v364, %v494
          %496 = vmatprep.mubr.f32.mxu0 0.0
          %497 = vmatmul.mubr.f32.gmra.mrb[0].mxu0 %v301
          %v498 = vpop.f32.mrb[0].mxu0
          %v499 = vadd.f32 %v360, %v498
          %v500 = vpop.f32.mrb[0].mxu0
          %v501 = vadd.f32 %v364, %v500
          %502 = vmatprep.mubr.f32.mxu0 0.0
          %503 = vmatmul.mubr.f32.gmra.mrb[0].mxu0 %v302
          %v504 = vpop.f32.mrb[0].mxu0
          %v505 = vadd.f32 %v360, %v504
          %v506 = vpop.f32.mrb[0].mxu0
          %v507 = vadd.f32 %v364, %v506
          %508 = vmatprep.mubr.f32.mxu0 0.0
          %509 = vmatmul.mubr.f32.gmra.mrb[0].mxu0 %v303
          %v510 = vpop.f32.mrb[0].mxu0
          %v511 = vadd.f32 %v360, %v510
          %v512 = vpop.f32.mrb[0].mxu0
          %v513 = vadd.f32 %v364, %v512
          %514 = vmatprep.mubr.f32.mxu0 0.0
          %515 = vmatmul.mubr.f32.gmra.mrb[0].mxu0 %v304
          %v516 = vpop.f32.mrb[0].mxu0
          %v517 = vadd.f32 %v360, %v516
          %v518 = vpop.f32.mrb[0].mxu0
          %v519 = vadd.f32 %v364, %v518
          %520 = vmatprep.mubr.f32.mxu0 0.0
          %521 = vmatmul.mubr.f32.gmra.mrb[0].mxu0 %v305
          %v522 = vpop.f32.mrb[0].mxu0
          %v523 = vadd.f32 %v360, %v522
          %v524 = vpop.f32.mrb[0].mxu0
          %v525 = vadd.f32 %v364, %v524
          %526 = vmatprep.mubr.f32.mxu0 0.0
          %527 = vmatmul.mubr.f32.gmra.mrb[0].mxu0 %v306
          %v528 = vpop.f32.mrb[0].mxu0
          %v529 = vadd.f32 %v360, %v528
          %v530 = vpop.f32.mrb[0].mxu0
          %v531 = vadd.f32 %v364, %v530
          %532 = vdwg.mxu0
          %533 = vmatprep.subr.mxu0 0.0
          %534 = vmatpush1.msra.mxu0 %v309
          %535 = vmatprep.subr.mxu0 0.0
          %536 = vmatpush1.msra.mxu0 %v312
          %537 = vmatprep.subr.mxu0 0.0
          %538 = vmatpush1.msra.mxu0 %v315
          %539 = vmatprep.subr.mxu0 0.0
          %540 = vmatpush1.msra.mxu0 %v318
          %541 = vmatprep.subr.mxu0 0.0
          %542 = vmatpush1.msra.mxu0 %v321
          %543 = vmatprep.subr.mxu0 0.0
          %544 = vmatpush1.msra.mxu0 %v324
          %545 = vmatprep.subr.mxu0 0.0
          %546 = vmatpush1.msra.mxu0 %v327
          %547 = vmatprep.subr.mxu0 0.0
          %548 = vmatpush1.msra.mxu0 %v330
          %549 = vmatprep.subr.mxu0 0.0
          %550 = vmatpush1.msra.mxu0 %v333
          %551 = vmatprep.subr.mxu0 0.0
          %552 = vmatpush1.msra.mxu0 %v336
          %553 = vmatprep.subr.mxu0 0.0
          %554 = vmatpush1.msra.mxu0 %v339
          %555 = vmatprep.subr.mxu0 0.0
          %556 = vmatpush1.msra.mxu0 %v342
          %557 = vmatprep.subr.mxu0 0.0
          %558 = vmatpush1.msra.mxu0 %v345
          %559 = vmatprep.subr.mxu0 0.0
          %560 = vmatpush1.msra.mxu0 %v348
          %561 = vmatprep.subr.mxu0 0.0
          %562 = vmatpush1.msra.mxu0 %v351
          %563 = vmatprep.subr.mxu0 0.0
          %564 = vmatpush1.msra.mxu0 %v354
          %565 = vmatprep.subr.mxu0 0.0
          %566 = vmatpush1.msra.mxu0 0.0
          %567 = vmatprep.subr.mxu0 0.0
          %568 = vmatpush1.msra.mxu0 0.0
          %569 = vmatprep.subr.mxu0 0.0
          %570 = vmatpush1.msra.mxu0 0.0
          %571 = vmatprep.subr.mxu0 0.0
          %572 = vmatpush1.msra.mxu0 0.0
          %573 = vmatprep.subr.mxu0 0.0
          %574 = vmatpush1.msra.mxu0 0.0
          %575 = vmatprep.subr.mxu0 0.0
          %576 = vmatpush1.msra.mxu0 0.0
          %577 = vmatprep.subr.mxu0 0.0
          %578 = vmatpush1.msra.mxu0 0.0
          %579 = vmatprep.subr.mxu0 0.0
          %580 = vmatpush1.msra.mxu0 0.0
          %581 = vmatprep.subr.mxu0 0.0
          %582 = vmatpush1.msra.mxu0 0.0
          %583 = vmatprep.subr.mxu0 0.0
          %584 = vmatpush1.msra.mxu0 0.0
          %585 = vmatprep.subr.mxu0 0.0
          %586 = vmatpush1.msra.mxu0 0.0
          %587 = vmatprep.subr.mxu0 0.0
          %588 = vmatpush1.msra.mxu0 0.0
          %589 = vmatprep.subr.mxu0 0.0
          %590 = vmatpush1.msra.mxu0 0.0
          %591 = vmatprep.subr.mxu0 0.0
          %592 = vmatpush1.msra.mxu0 0.0
          %593 = vmatprep.subr.mxu0 0.0
          %594 = vmatpush1.msra.mxu0 0.0
          %595 = vmatprep.subr.mxu0 0.0
          %596 = vmatpush1.msra.mxu0 0.0
          %597 = vmatprep.mubr.f32.mxu0 0.0
          %598 = vmatmul.mubr.f32.gmra.mrb[0].mxu0 %v291
          %v599 = vpop.f32.mrb[0].mxu0
          %v600 = vadd.f32 %v368, %v599
          %v601 = vpop.f32.mrb[0].mxu0
          %602 = vmatprep.mubr.f32.mxu0 0.0
          %603 = vmatmul.mubr.f32.gmra.mrb[0].mxu0 %v292
          %v604 = vpop.f32.mrb[0].mxu0
          %v605 = vadd.f32 %v368, %v604
          %v606 = vpop.f32.mrb[0].mxu0
          %607 = vmatprep.mubr.f32.mxu0 0.0
          %608 = vmatmul.mubr.f32.gmra.mrb[0].mxu0 %v293
          %v609 = vpop.f32.mrb[0].mxu0
          %v610 = vadd.f32 %v368, %v609
          %v611 = vpop.f32.mrb[0].mxu0
          %612 = vmatprep.mubr.f32.mxu0 0.0
          %613 = vmatmul.mubr.f32.gmra.mrb[0].mxu0 %v294
          %v614 = vpop.f32.mrb[0].mxu0
          %v615 = vadd.f32 %v368, %v614
          %v616 = vpop.f32.mrb[0].mxu0
          %617 = vmatprep.mubr.f32.mxu0 0.0
          %618 = vmatmul.mubr.f32.gmra.mrb[0].mxu0 %v295
          %v619 = vpop.f32.mrb[0].mxu0
          %v620 = vadd.f32 %v368, %v619
          %v621 = vpop.f32.mrb[0].mxu0
          %622 = vmatprep.mubr.f32.mxu0 0.0
          %623 = vmatmul.mubr.f32.gmra.mrb[0].mxu0 %v296
          %v624 = vpop.f32.mrb[0].mxu0
          %v625 = vadd.f32 %v368, %v624
          %v626 = vpop.f32.mrb[0].mxu0
          %627 = vmatprep.mubr.f32.mxu0 0.0
          %628 = vmatmul.mubr.f32.gmra.mrb[0].mxu0 %v297
          %v629 = vpop.f32.mrb[0].mxu0
          %v630 = vadd.f32 %v368, %v629
          %v631 = vpop.f32.mrb[0].mxu0
          %632 = vmatprep.mubr.f32.mxu0 0.0
          %633 = vmatmul.mubr.f32.gmra.mrb[0].mxu0 %v298
          %v634 = vpop.f32.mrb[0].mxu0
          %v635 = vadd.f32 %v368, %v634
          %v636 = vpop.f32.mrb[0].mxu0
          %637 = vmatprep.mubr.f32.mxu0 0.0
          %638 = vmatmul.mubr.f32.gmra.mrb[0].mxu0 %v299
          %v639 = vpop.f32.mrb[0].mxu0
          %v640 = vadd.f32 %v368, %v639
          %v641 = vpop.f32.mrb[0].mxu0
          %642 = vmatprep.mubr.f32.mxu0 0.0
          %643 = vmatmul.mubr.f32.gmra.mrb[0].mxu0 %v300
          %v644 = vpop.f32.mrb[0].mxu0
          %v645 = vadd.f32 %v368, %v644
          %v646 = vpop.f32.mrb[0].mxu0
          %647 = vmatprep.mubr.f32.mxu0 0.0
          %648 = vmatmul.mubr.f32.gmra.mrb[0].mxu0 %v301
          %v649 = vpop.f32.mrb[0].mxu0
          %v650 = vadd.f32 %v368, %v649
          %v651 = vpop.f32.mrb[0].mxu0
          %652 = vmatprep.mubr.f32.mxu0 0.0
          %653 = vmatmul.mubr.f32.gmra.mrb[0].mxu0 %v302
          %v654 = vpop.f32.mrb[0].mxu0
          %v655 = vadd.f32 %v368, %v654
          %v656 = vpop.f32.mrb[0].mxu0
          %657 = vmatprep.mubr.f32.mxu0 0.0
          %658 = vmatmul.mubr.f32.gmra.mrb[0].mxu0 %v303
          %v659 = vpop.f32.mrb[0].mxu0
          %v660 = vadd.f32 %v368, %v659
          %v661 = vpop.f32.mrb[0].mxu0
          %662 = vmatprep.mubr.f32.mxu0 0.0
          %663 = vmatmul.mubr.f32.gmra.mrb[0].mxu0 %v304
          %v664 = vpop.f32.mrb[0].mxu0
          %v665 = vadd.f32 %v368, %v664
          %v666 = vpop.f32.mrb[0].mxu0
          %667 = vmatprep.mubr.f32.mxu0 0.0
          %668 = vmatmul.mubr.f32.gmra.mrb[0].mxu0 %v305
          %v669 = vpop.f32.mrb[0].mxu0
          %v670 = vadd.f32 %v368, %v669
          %v671 = vpop.f32.mrb[0].mxu0
          %672 = vmatprep.mubr.f32.mxu0 0.0
          %673 = vmatmul.mubr.f32.gmra.mrb[0].mxu0 %v306
          %v674 = vpop.f32.mrb[0].mxu0
          %v675 = vadd.f32 %v368, %v674
          %v676 = vpop.f32.mrb[0].mxu0
          %677 = vdwg.mxu0
          %678 = vst [vmem:[#allocation2] sm:$0xff] %v439
          %679 = vst [vmem:[#allocation2 + $0x8] sm:$0xff] %v445
          %680 = vst [vmem:[#allocation2 + $0x10] sm:$0xff] %v451
          %681 = vst [vmem:[#allocation2 + $0x18] sm:$0xff] %v457
          %682 = vst [vmem:[#allocation2 + $0x20] sm:$0xff] %v463
          %683 = vst [vmem:[#allocation2 + $0x28] sm:$0xff] %v469
          %684 = vst [vmem:[#allocation2 + $0x30] sm:$0xff] %v475
          %685 = vst [vmem:[#allocation2 + $0x38] sm:$0xff] %v481
          %686 = vst [vmem:[#allocation2 + $0x40] sm:$0xff] %v487
          %687 = vst [vmem:[#allocation2 + $0x48] sm:$0xff] %v493
          %688 = vst [vmem:[#allocation2 + $0x50] sm:$0xff] %v499
          %689 = vst [vmem:[#allocation2 + $0x58] sm:$0xff] %v505
          %690 = vst [vmem:[#allocation2 + $0x60] sm:$0xff] %v511
          %691 = vst [vmem:[#allocation2 + $0x68] sm:$0xff] %v517
          %692 = vst [vmem:[#allocation2 + $0x70] sm:$0xff] %v523
          %693 = vst [vmem:[#allocation2 + $0x78] sm:$0xff] %v529
          %694 = vst [vmem:[#allocation3] sm:$0xff] %v441
          %695 = vst [vmem:[#allocation3 + $0x8] sm:$0xff] %v447
          %696 = vst [vmem:[#allocation3 + $0x10] sm:$0xff] %v453
          %697 = vst [vmem:[#allocation3 + $0x18] sm:$0xff] %v459
          %698 = vst [vmem:[#allocation3 + $0x20] sm:$0xff] %v465
          %699 = vst [vmem:[#allocation3 + $0x28] sm:$0xff] %v471
          %700 = vst [vmem:[#allocation3 + $0x30] sm:$0xff] %v477
          %701 = vst [vmem:[#allocation3 + $0x38] sm:$0xff] %v483
          %702 = vst [vmem:[#allocation3 + $0x40] sm:$0xff] %v489
          %703 = vst [vmem:[#allocation3 + $0x48] sm:$0xff] %v495
          %704 = vst [vmem:[#allocation3 + $0x50] sm:$0xff] %v501
          %705 = vst [vmem:[#allocation3 + $0x58] sm:$0xff] %v507
          %706 = vst [vmem:[#allocation3 + $0x60] sm:$0xff] %v513
          %707 = vst [vmem:[#allocation3 + $0x68] sm:$0xff] %v519
          %708 = vst [vmem:[#allocation3 + $0x70] sm:$0xff] %v525
          %709 = vst [vmem:[#allocation3 + $0x78] sm:$0xff] %v531
          %710 = vst [vmem:[#allocation4] sm:$0xff] %v600
          %711 = vst [vmem:[#allocation4 + $0x8] sm:$0xff] %v605
          %712 = vst [vmem:[#allocation4 + $0x10] sm:$0xff] %v610
          %713 = vst [vmem:[#allocation4 + $0x18] sm:$0xff] %v615
          %714 = vst [vmem:[#allocation4 + $0x20] sm:$0xff] %v620
          %715 = vst [vmem:[#allocation4 + $0x28] sm:$0xff] %v625
          %716 = vst [vmem:[#allocation4 + $0x30] sm:$0xff] %v630
          %717 = vst [vmem:[#allocation4 + $0x38] sm:$0xff] %v635
          %718 = vst [vmem:[#allocation4 + $0x40] sm:$0xff] %v640
          %719 = vst [vmem:[#allocation4 + $0x48] sm:$0xff] %v645
          %720 = vst [vmem:[#allocation4 + $0x50] sm:$0xff] %v650
          %721 = vst [vmem:[#allocation4 + $0x58] sm:$0xff] %v655
          %722 = vst [vmem:[#allocation4 + $0x60] sm:$0xff] %v660
          %723 = vst [vmem:[#allocation4 + $0x68] sm:$0xff] %v665
          %724 = vst [vmem:[#allocation4 + $0x70] sm:$0xff] %v670
          %725 = vst [vmem:[#allocation4 + $0x78] sm:$0xff] %v675
        $region56: #{tpu_custom_call.1} parent=39 // pred_fallthru
          _
        %s726 = smul.u32 %s28, 64
        %s727 = scalar_lea.vmem [#allocation2], %s726
        %v728 = vld [vmem:[%s727] sm:$0xff]
        %v729 = vld [vmem:[%s727 + $0x8] sm:$0xff]
        %v730 = vld [vmem:[%s727 + $0x10] sm:$0xff]
        %v731 = vld [vmem:[%s727 + $0x18] sm:$0xff]
        %v732 = vld [vmem:[%s727 + $0x20] sm:$0xff]
        %v733 = vld [vmem:[%s727 + $0x28] sm:$0xff]
        %v734 = vld [vmem:[%s727 + $0x30] sm:$0xff]
        %v735 = vld [vmem:[%s727 + $0x38] sm:$0xff]
        %v736 = vld [vmem:[#allocation3] sm:$0xff]
        %v737 = vld [vmem:[#allocation3 + $0x8] sm:$0xff]
        %v738 = vld [vmem:[#allocation3 + $0x10] sm:$0xff]
        %v739 = vld [vmem:[#allocation3 + $0x18] sm:$0xff]
        %v740 = vld [vmem:[#allocation3 + $0x20] sm:$0xff]
        %v741 = vld [vmem:[#allocation3 + $0x28] sm:$0xff]
        %v742 = vld [vmem:[#allocation3 + $0x30] sm:$0xff]
        %v743 = vld [vmem:[#allocation3 + $0x38] sm:$0xff]
        %v744 = vld [vmem:[#allocation3 + $0x40] sm:$0xff]
        %v745 = vld [vmem:[#allocation3 + $0x48] sm:$0xff]
        %v746 = vld [vmem:[#allocation3 + $0x50] sm:$0xff]
        %v747 = vld [vmem:[#allocation3 + $0x58] sm:$0xff]
        %v748 = vld [vmem:[#allocation3 + $0x60] sm:$0xff]
        %v749 = vld [vmem:[#allocation3 + $0x68] sm:$0xff]
        %v750 = vld [vmem:[#allocation3 + $0x70] sm:$0xff]
        %v751 = vld [vmem:[#allocation3 + $0x78] sm:$0xff]
        %v752 = vld [vmem:[#allocation4] sm:$0xff]
        %v753 = vld [vmem:[#allocation4 + $0x8] sm:$0xff]
        %v754 = vld [vmem:[#allocation4 + $0x10] sm:$0xff]
        %v755 = vld [vmem:[#allocation4 + $0x18] sm:$0xff]
        %v756 = vld [vmem:[#allocation4 + $0x20] sm:$0xff]
        %v757 = vld [vmem:[#allocation4 + $0x28] sm:$0xff]
        %v758 = vld [vmem:[#allocation4 + $0x30] sm:$0xff]
        %v759 = vld [vmem:[#allocation4 + $0x38] sm:$0xff]
        %v760 = vld [vmem:[#allocation4 + $0x40] sm:$0xff]
        %v761 = vld [vmem:[#allocation4 + $0x48] sm:$0xff]
        %v762 = vld [vmem:[#allocation4 + $0x50] sm:$0xff]
        %v763 = vld [vmem:[#allocation4 + $0x58] sm:$0xff]
        %v764 = vld [vmem:[#allocation4 + $0x60] sm:$0xff]
        %v765 = vld [vmem:[#allocation4 + $0x68] sm:$0xff]
        %v766 = vld [vmem:[#allocation4 + $0x70] sm:$0xff]
        %v767 = vld [vmem:[#allocation4 + $0x78] sm:$0xff]
        %vm768 = vcmask 261120
        %v770 = vsel %vm768, %v728, 0
        %v773 = vsel %vm768, %v729, 0
        %v776 = vsel %vm768, %v730, 0
        %v779 = vsel %vm768, %v731, 0
        %v782 = vsel %vm768, %v732, 0
        %v785 = vsel %vm768, %v733, 0
        %v788 = vsel %vm768, %v734, 0
        %v791 = vsel %vm768, %v735, 0
        %v794 = vsel %vm768, %v736, 0
        %v797 = vsel %vm768, %v737, 0
        %v800 = vsel %vm768, %v738, 0
        %v803 = vsel %vm768, %v739, 0
        %v806 = vsel %vm768, %v740, 0
        %v809 = vsel %vm768, %v741, 0
        %v812 = vsel %vm768, %v742, 0
        %v815 = vsel %vm768, %v743, 0
        %v818 = vsel %vm768, %v744, 0
        %v821 = vsel %vm768, %v745, 0
        %v824 = vsel %vm768, %v746, 0
        %v827 = vsel %vm768, %v747, 0
        %v830 = vsel %vm768, %v748, 0
        %v833 = vsel %vm768, %v749, 0
        %v836 = vsel %vm768, %v750, 0
        %v839 = vsel %vm768, %v751, 0
        %841 = vmatprep.subr.mxu0 0.0
        %842 = vmatpush1.xpose.msra.mxu0 %v794
        %843 = vmatprep.subr.mxu0 0.0
        %844 = vmatpush1.xpose.msra.mxu0 %v797
        %845 = vmatprep.subr.mxu0 0.0
        %846 = vmatpush1.xpose.msra.mxu0 %v800
        %847 = vmatprep.subr.mxu0 0.0
        %848 = vmatpush1.xpose.msra.mxu0 %v803
        %849 = vmatprep.subr.mxu0 0.0
        %850 = vmatpush1.xpose.msra.mxu0 %v806
        %851 = vmatprep.subr.mxu0 0.0
        %852 = vmatpush1.xpose.msra.mxu0 %v809
        %853 = vmatprep.subr.mxu0 0.0
        %854 = vmatpush1.xpose.msra.mxu0 %v812
        %855 = vmatprep.subr.mxu0 0.0
        %856 = vmatpush1.xpose.msra.mxu0 %v815
        %857 = vmatprep.subr.mxu0 0.0
        %858 = vmatpush1.xpose.msra.mxu0 %v818
        %859 = vmatprep.subr.mxu0 0.0
        %860 = vmatpush1.xpose.msra.mxu0 %v821
        %861 = vmatprep.subr.mxu0 0.0
        %862 = vmatpush1.xpose.msra.mxu0 %v824
        %863 = vmatprep.subr.mxu0 0.0
        %864 = vmatpush1.xpose.msra.mxu0 %v827
        %865 = vmatprep.subr.mxu0 0.0
        %866 = vmatpush1.xpose.msra.mxu0 %v830
        %867 = vmatprep.subr.mxu0 0.0
        %868 = vmatpush1.xpose.msra.mxu0 %v833
        %869 = vmatprep.subr.mxu0 0.0
        %870 = vmatpush1.xpose.msra.mxu0 %v836
        %871 = vmatprep.subr.mxu0 0.0
        %872 = vmatpush1.xpose.msra.mxu0 %v839
        %873 = vmatprep.subr.mxu0 0.0
        %874 = vmatpush1.xpose.msra.mxu0 0.0
        %875 = vmatprep.subr.mxu0 0.0
        %876 = vmatpush1.xpose.msra.mxu0 0.0
        %877 = vmatprep.subr.mxu0 0.0
        %878 = vmatpush1.xpose.msra.mxu0 0.0
        %879 = vmatprep.subr.mxu0 0.0
        %880 = vmatpush1.xpose.msra.mxu0 0.0
        %881 = vmatprep.subr.mxu0 0.0
        %882 = vmatpush1.xpose.msra.mxu0 0.0
        %883 = vmatprep.subr.mxu0 0.0
        %884 = vmatpush1.xpose.msra.mxu0 0.0
        %885 = vmatprep.subr.mxu0 0.0
        %886 = vmatpush1.xpose.msra.mxu0 0.0
        %887 = vmatprep.subr.mxu0 0.0
        %888 = vmatpush1.xpose.msra.mxu0 0.0
        %889 = vmatprep.subr.mxu0 0.0
        %890 = vmatpush1.xpose.msra.mxu0 0.0
        %891 = vmatprep.subr.mxu0 0.0
        %892 = vmatpush1.xpose.msra.mxu0 0.0
        %893 = vmatprep.subr.mxu0 0.0
        %894 = vmatpush1.xpose.msra.mxu0 0.0
        %895 = vmatprep.subr.mxu0 0.0
        %896 = vmatpush1.xpose.msra.mxu0 0.0
        %897 = vmatprep.subr.mxu0 0.0
        %898 = vmatpush1.xpose.msra.mxu0 0.0
        %899 = vmatprep.subr.mxu0 0.0
        %900 = vmatpush1.xpose.msra.mxu0 0.0
        %901 = vmatprep.subr.mxu0 0.0
        %902 = vmatpush1.xpose.msra.mxu0 0.0
        %903 = vmatprep.subr.mxu0 0.0
        %904 = vmatpush1.xpose.msra.mxu0 0.0
        %905 = vmatprep.mubr.f32.mxu0 0.0
        %906 = vmatmul.mubr.f32.gmra.mrb[0].mxu0 %v770
        %v907 = vpop.f32.mrb[0].mxu0
        %v908 = vadd.f32 0.0, %v907
        %v909 = vpop.f32.mrb[0].mxu0
        %910 = vmatprep.mubr.f32.mxu0 0.0
        %911 = vmatmul.mubr.f32.gmra.mrb[0].mxu0 %v773
        %v912 = vpop.f32.mrb[0].mxu0
        %v913 = vadd.f32 0.0, %v912
        %v914 = vpop.f32.mrb[0].mxu0
        %915 = vmatprep.mubr.f32.mxu0 0.0
        %916 = vmatmul.mubr.f32.gmra.mrb[0].mxu0 %v776
        %v917 = vpop.f32.mrb[0].mxu0
        %v918 = vadd.f32 0.0, %v917
        %v919 = vpop.f32.mrb[0].mxu0
        %920 = vmatprep.mubr.f32.mxu0 0.0
        %921 = vmatmul.mubr.f32.gmra.mrb[0].mxu0 %v779
        %v922 = vpop.f32.mrb[0].mxu0
        %v923 = vadd.f32 0.0, %v922
        %v924 = vpop.f32.mrb[0].mxu0
        %925 = vmatprep.mubr.f32.mxu0 0.0
        %926 = vmatmul.mubr.f32.gmra.mrb[0].mxu0 %v782
        %v927 = vpop.f32.mrb[0].mxu0
        %v928 = vadd.f32 0.0, %v927
        %v929 = vpop.f32.mrb[0].mxu0
        %930 = vmatprep.mubr.f32.mxu0 0.0
        %931 = vmatmul.mubr.f32.gmra.mrb[0].mxu0 %v785
        %v932 = vpop.f32.mrb[0].mxu0
        %v933 = vadd.f32 0.0, %v932
        %v934 = vpop.f32.mrb[0].mxu0
        %935 = vmatprep.mubr.f32.mxu0 0.0
        %936 = vmatmul.mubr.f32.gmra.mrb[0].mxu0 %v788
        %v937 = vpop.f32.mrb[0].mxu0
        %v938 = vadd.f32 0.0, %v937
        %v939 = vpop.f32.mrb[0].mxu0
        %940 = vmatprep.mubr.f32.mxu0 0.0
        %941 = vmatmul.mubr.f32.gmra.mrb[0].mxu0 %v791
        %v942 = vpop.f32.mrb[0].mxu0
        %v943 = vadd.f32 0.0, %v942
        %v944 = vpop.f32.mrb[0].mxu0
        %945 = vdwg.mxu0
        %946 = vmax.xlane.f32.xlu0 %v908
        %v947 = vpop.xlane.xlu0 %946
        %948 = vmax.xlane.f32.xlu0 %v913
        %v949 = vpop.xlane.xlu0 %948
        %950 = vmax.xlane.f32.xlu0 %v918
        %v951 = vpop.xlane.xlu0 %950
        %952 = vmax.xlane.f32.xlu0 %v923
        %v953 = vpop.xlane.xlu0 %952
        %954 = vmax.xlane.f32.xlu0 %v928
        %v955 = vpop.xlane.xlu0 %954
        %956 = vmax.xlane.f32.xlu0 %v933
        %v957 = vpop.xlane.xlu0 %956
        %958 = vmax.xlane.f32.xlu0 %v938
        %v959 = vpop.xlane.xlu0 %958
        %960 = vmax.xlane.f32.xlu0 %v943
        %v961 = vpop.xlane.xlu0 %960
        %v962 = vsub.f32 %v908, %v947
        %v963 = vsub.f32 %v913, %v949
        %v964 = vsub.f32 %v918, %v951
        %v965 = vsub.f32 %v923, %v953
        %v966 = vsub.f32 %v928, %v955
        %v967 = vsub.f32 %v933, %v957
        %v968 = vsub.f32 %v938, %v959
        %v969 = vsub.f32 %v943, %v961
        %v970 = vmul.f32 %v962, 1.442695
        %v971 = vpow.pop %v970
        %v972 = vmul.f32 %v963, 1.442695
        %v973 = vpow.pop %v972
        %v974 = vmul.f32 %v964, 1.442695
        %v975 = vpow.pop %v974
        %v976 = vmul.f32 %v965, 1.442695
        %v977 = vpow.pop %v976
        %v978 = vmul.f32 %v966, 1.442695
        %v979 = vpow.pop %v978
        %v980 = vmul.f32 %v967, 1.442695
        %v981 = vpow.pop %v980
        %v982 = vmul.f32 %v968, 1.442695
        %v983 = vpow.pop %v982
        %v984 = vmul.f32 %v969, 1.442695
        %v985 = vpow.pop %v984
        %986 = vadd.xlane.f32.xlu0 %v971
        %v987 = vpop.xlane.xlu0 %986
        %988 = vadd.xlane.f32.xlu0 %v973
        %v989 = vpop.xlane.xlu0 %988
        %990 = vadd.xlane.f32.xlu0 %v975
        %v991 = vpop.xlane.xlu0 %990
        %992 = vadd.xlane.f32.xlu0 %v977
        %v993 = vpop.xlane.xlu0 %992
        %994 = vadd.xlane.f32.xlu0 %v979
        %v995 = vpop.xlane.xlu0 %994
        %996 = vadd.xlane.f32.xlu0 %v981
        %v997 = vpop.xlane.xlu0 %996
        %998 = vadd.xlane.f32.xlu0 %v983
        %v999 = vpop.xlane.xlu0 %998
        %1000 = vadd.xlane.f32.xlu0 %v985
        %v1001 = vpop.xlane.xlu0 %1000
        %1002 = vmatprep.subr.mxu0 0.0
        %1003 = vmatpush1.msra.mxu0 %v752
        %1004 = vmatprep.subr.mxu0 0.0
        %1005 = vmatpush1.msra.mxu0 %v753
        %1006 = vmatprep.subr.mxu0 0.0
        %1007 = vmatpush1.msra.mxu0 %v754
        %1008 = vmatprep.subr.mxu0 0.0
        %1009 = vmatpush1.msra.mxu0 %v755
        %1010 = vmatprep.subr.mxu0 0.0
        %1011 = vmatpush1.msra.mxu0 %v756
        %1012 = vmatprep.subr.mxu0 0.0
        %1013 = vmatpush1.msra.mxu0 %v757
        %1014 = vmatprep.subr.mxu0 0.0
        %1015 = vmatpush1.msra.mxu0 %v758
        %1016 = vmatprep.subr.mxu0 0.0
        %1017 = vmatpush1.msra.mxu0 %v759
        %1018 = vmatprep.subr.mxu0 0.0
        %1019 = vmatpush1.msra.mxu0 %v760
        %1020 = vmatprep.subr.mxu0 0.0
        %1021 = vmatpush1.msra.mxu0 %v761
        %1022 = vmatprep.subr.mxu0 0.0
        %1023 = vmatpush1.msra.mxu0 %v762
        %1024 = vmatprep.subr.mxu0 0.0
        %1025 = vmatpush1.msra.mxu0 %v763
        %1026 = vmatprep.subr.mxu0 0.0
        %1027 = vmatpush1.msra.mxu0 %v764
        %1028 = vmatprep.subr.mxu0 0.0
        %1029 = vmatpush1.msra.mxu0 %v765
        %1030 = vmatprep.subr.mxu0 0.0
        %1031 = vmatpush1.msra.mxu0 %v766
        %1032 = vmatprep.subr.mxu0 0.0
        %1033 = vmatpush1.msra.mxu0 %v767
        %1034 = vmatprep.subr.mxu0 0.0
        %1035 = vmatpush1.msra.mxu0 0.0
        %1036 = vmatprep.subr.mxu0 0.0
        %1037 = vmatpush1.msra.mxu0 0.0
        %1038 = vmatprep.subr.mxu0 0.0
        %1039 = vmatpush1.msra.mxu0 0.0
        %1040 = vmatprep.subr.mxu0 0.0
        %1041 = vmatpush1.msra.mxu0 0.0
        %1042 = vmatprep.subr.mxu0 0.0
        %1043 = vmatpush1.msra.mxu0 0.0
        %1044 = vmatprep.subr.mxu0 0.0
        %1045 = vmatpush1.msra.mxu0 0.0
        %1046 = vmatprep.subr.mxu0 0.0
        %1047 = vmatpush1.msra.mxu0 0.0
        %1048 = vmatprep.subr.mxu0 0.0
        %1049 = vmatpush1.msra.mxu0 0.0
        %1050 = vmatprep.subr.mxu0 0.0
        %1051 = vmatpush1.msra.mxu0 0.0
        %1052 = vmatprep.subr.mxu0 0.0
        %1053 = vmatpush1.msra.mxu0 0.0
        %1054 = vmatprep.subr.mxu0 0.0
        %1055 = vmatpush1.msra.mxu0 0.0
        %1056 = vmatprep.subr.mxu0 0.0
        %1057 = vmatpush1.msra.mxu0 0.0
        %1058 = vmatprep.subr.mxu0 0.0
        %1059 = vmatpush1.msra.mxu0 0.0
        %1060 = vmatprep.subr.mxu0 0.0
        %1061 = vmatpush1.msra.mxu0 0.0
        %1062 = vmatprep.subr.mxu0 0.0
        %1063 = vmatpush1.msra.mxu0 0.0
        %1064 = vmatprep.subr.mxu0 0.0
        %1065 = vmatpush1.msra.mxu0 0.0
        %1066 = vmatprep.mubr.f32.mxu0 0.0
        %1067 = vmatmul.mubr.f32.gmra.mrb[0].mxu0 %v971
        %v1068 = vpop.f32.mrb[0].mxu0
        %v1069 = vadd.f32 0.0, %v1068
        %v1070 = vpop.f32.mrb[0].mxu0
        %1071 = vmatprep.mubr.f32.mxu0 0.0
        %1072 = vmatmul.mubr.f32.gmra.mrb[0].mxu0 %v973
        %v1073 = vpop.f32.mrb[0].mxu0
        %v1074 = vadd.f32 0.0, %v1073
        %v1075 = vpop.f32.mrb[0].mxu0
        %1076 = vmatprep.mubr.f32.mxu0 0.0
        %1077 = vmatmul.mubr.f32.gmra.mrb[0].mxu0 %v975
        %v1078 = vpop.f32.mrb[0].mxu0
        %v1079 = vadd.f32 0.0, %v1078
        %v1080 = vpop.f32.mrb[0].mxu0
        %1081 = vmatprep.mubr.f32.mxu0 0.0
        %1082 = vmatmul.mubr.f32.gmra.mrb[0].mxu0 %v977
        %v1083 = vpop.f32.mrb[0].mxu0
        %v1084 = vadd.f32 0.0, %v1083
        %v1085 = vpop.f32.mrb[0].mxu0
        %1086 = vmatprep.mubr.f32.mxu0 0.0
        %1087 = vmatmul.mubr.f32.gmra.mrb[0].mxu0 %v979
        %v1088 = vpop.f32.mrb[0].mxu0
        %v1089 = vadd.f32 0.0, %v1088
        %v1090 = vpop.f32.mrb[0].mxu0
        %1091 = vmatprep.mubr.f32.mxu0 0.0
        %1092 = vmatmul.mubr.f32.gmra.mrb[0].mxu0 %v981
        %v1093 = vpop.f32.mrb[0].mxu0
        %v1094 = vadd.f32 0.0, %v1093
        %v1095 = vpop.f32.mrb[0].mxu0
        %1096 = vmatprep.mubr.f32.mxu0 0.0
        %1097 = vmatmul.mubr.f32.gmra.mrb[0].mxu0 %v983
        %v1098 = vpop.f32.mrb[0].mxu0
        %v1099 = vadd.f32 0.0, %v1098
        %v1100 = vpop.f32.mrb[0].mxu0
        %1101 = vmatprep.mubr.f32.mxu0 0.0
        %1102 = vmatmul.mubr.f32.gmra.mrb[0].mxu0 %v985
        %v1103 = vpop.f32.mrb[0].mxu0
        %v1104 = vadd.f32 0.0, %v1103
        %v1105 = vpop.f32.mrb[0].mxu0
        %1106 = vdwg.mxu0
        %v1107 = vrcp.pop %v987
        %v1108 = vrcp.pop %v989
        %v1109 = vrcp.pop %v991
        %v1110 = vrcp.pop %v993
        %v1111 = vrcp.pop %v995
        %v1112 = vrcp.pop %v997
        %v1113 = vrcp.pop %v999
        %v1114 = vrcp.pop %v1001
        %v1115 = vmul.f32 %v1069, %v1107
        %v1116 = vmul.f32 %v1074, %v1108
        %v1117 = vmul.f32 %v1079, %v1109
        %v1118 = vmul.f32 %v1084, %v1110
        %v1119 = vmul.f32 %v1089, %v1111
        %v1120 = vmul.f32 %v1094, %v1112
        %v1121 = vmul.f32 %v1099, %v1113
        %v1122 = vmul.f32 %v1104, %v1114
        %v1123 = vld [vmem:[#allocation10] sm:$0xff]
        %v1124 = vld [vmem:[#allocation10 + $0x8] sm:$0xff]
        %v1125 = vld [vmem:[#allocation10 + $0x10] sm:$0xff]
        %v1126 = vld [vmem:[#allocation10 + $0x18] sm:$0xff]
        %1127 = vrot.lane.b32.xlu0 %v728, 96
        %v1128 = vpop.permute.xlu0 %1127
        %1129 = vrot.lane.b32.xlu0 %v729, 96
        %v1130 = vpop.permute.xlu0 %1129
        %1131 = vrot.lane.b32.xlu0 %v730, 96
        %v1132 = vpop.permute.xlu0 %1131
        %1133 = vrot.lane.b32.xlu0 %v731, 96
        %v1134 = vpop.permute.xlu0 %1133
        %1135 = vrot.lane.b32.xlu0 %v732, 96
        %v1136 = vpop.permute.xlu0 %1135
        %1137 = vrot.lane.b32.xlu0 %v733, 96
        %v1138 = vpop.permute.xlu0 %1137
        %1139 = vrot.lane.b32.xlu0 %v734, 96
        %v1140 = vpop.permute.xlu0 %1139
        %1141 = vrot.lane.b32.xlu0 %v735, 96
        %v1142 = vpop.permute.xlu0 %1141
        %1143 = vrot.lane.b32.xlu0 %v736, 96
        %v1144 = vpop.permute.xlu0 %1143
        %1145 = vrot.lane.b32.xlu0 %v737, 96
        %v1146 = vpop.permute.xlu0 %1145
        %1147 = vrot.lane.b32.xlu0 %v738, 96
        %v1148 = vpop.permute.xlu0 %1147
        %1149 = vrot.lane.b32.xlu0 %v739, 96
        %v1150 = vpop.permute.xlu0 %1149
        %1151 = vrot.lane.b32.xlu0 %v740, 96
        %v1152 = vpop.permute.xlu0 %1151
        %1153 = vrot.lane.b32.xlu0 %v741, 96
        %v1154 = vpop.permute.xlu0 %1153
        %1155 = vrot.lane.b32.xlu0 %v742, 96
        %v1156 = vpop.permute.xlu0 %1155
        %1157 = vrot.lane.b32.xlu0 %v743, 96
        %v1158 = vpop.permute.xlu0 %1157
        %1159 = vrot.lane.b32.xlu0 %v744, 96
        %v1160 = vpop.permute.xlu0 %1159
        %1161 = vrot.lane.b32.xlu0 %v745, 96
        %v1162 = vpop.permute.xlu0 %1161
        %1163 = vrot.lane.b32.xlu0 %v746, 96
        %v1164 = vpop.permute.xlu0 %1163
        %1165 = vrot.lane.b32.xlu0 %v747, 96
        %v1166 = vpop.permute.xlu0 %1165
        %1167 = vrot.lane.b32.xlu0 %v748, 96
        %v1168 = vpop.permute.xlu0 %1167
        %1169 = vrot.lane.b32.xlu0 %v749, 96
        %v1170 = vpop.permute.xlu0 %1169
        %1171 = vrot.lane.b32.xlu0 %v750, 96
        %v1172 = vpop.permute.xlu0 %1171
        %1173 = vrot.lane.b32.xlu0 %v751, 96
        %v1174 = vpop.permute.xlu0 %1173
        %v1175 = vsel %vm768, %v1128, 0
        %v1177 = vsel %vm768, %v1130, 0
        %v1179 = vsel %vm768, %v1132, 0
        %v1181 = vsel %vm768, %v1134, 0
        %v1183 = vsel %vm768, %v1136, 0
        %v1185 = vsel %vm768, %v1138, 0
        %v1187 = vsel %vm768, %v1140, 0
        %v1189 = vsel %vm768, %v1142, 0
        %v1191 = vsel %vm768, %v1144, 0
        %v1193 = vsel %vm768, %v1146, 0
        %v1195 = vsel %vm768, %v1148, 0
        %v1197 = vsel %vm768, %v1150, 0
        %v1199 = vsel %vm768, %v1152, 0
        %v1201 = vsel %vm768, %v1154, 0
        %v1203 = vsel %vm768, %v1156, 0
        %v1205 = vsel %vm768, %v1158, 0
        %v1207 = vsel %vm768, %v1160, 0
        %v1209 = vsel %vm768, %v1162, 0
        %v1211 = vsel %vm768, %v1164, 0
        %v1213 = vsel %vm768, %v1166, 0
        %v1215 = vsel %vm768, %v1168, 0
        %v1217 = vsel %vm768, %v1170, 0
        %v1219 = vsel %vm768, %v1172, 0
        %v1221 = vsel %vm768, %v1174, 0
        %1223 = vmatprep.subr.mxu0 0.0
        %1224 = vmatpush1.xpose.msra.mxu0 %v1191
        %1225 = vmatprep.subr.mxu0 0.0
        %1226 = vmatpush1.xpose.msra.mxu0 %v1193
        %1227 = vmatprep.subr.mxu0 0.0
        %1228 = vmatpush1.xpose.msra.mxu0 %v1195
        %1229 = vmatprep.subr.mxu0 0.0
        %1230 = vmatpush1.xpose.msra.mxu0 %v1197
        %1231 = vmatprep.subr.mxu0 0.0
        %1232 = vmatpush1.xpose.msra.mxu0 %v1199
        %1233 = vmatprep.subr.mxu0 0.0
        %1234 = vmatpush1.xpose.msra.mxu0 %v1201
        %1235 = vmatprep.subr.mxu0 0.0
        %1236 = vmatpush1.xpose.msra.mxu0 %v1203
        %1237 = vmatprep.subr.mxu0 0.0
        %1238 = vmatpush1.xpose.msra.mxu0 %v1205
        %1239 = vmatprep.subr.mxu0 0.0
        %1240 = vmatpush1.xpose.msra.mxu0 %v1207
        %1241 = vmatprep.subr.mxu0 0.0
        %1242 = vmatpush1.xpose.msra.mxu0 %v1209
        %1243 = vmatprep.subr.mxu0 0.0
        %1244 = vmatpush1.xpose.msra.mxu0 %v1211
        %1245 = vmatprep.subr.mxu0 0.0
        %1246 = vmatpush1.xpose.msra.mxu0 %v1213
        %1247 = vmatprep.subr.mxu0 0.0
        %1248 = vmatpush1.xpose.msra.mxu0 %v1215
        %1249 = vmatprep.subr.mxu0 0.0
        %1250 = vmatpush1.xpose.msra.mxu0 %v1217
        %1251 = vmatprep.subr.mxu0 0.0
        %1252 = vmatpush1.xpose.msra.mxu0 %v1219
        %1253 = vmatprep.subr.mxu0 0.0
        %1254 = vmatpush1.xpose.msra.mxu0 %v1221
        %1255 = vmatprep.subr.mxu0 0.0
        %1256 = vmatpush1.xpose.msra.mxu0 0.0
        %1257 = vmatprep.subr.mxu0 0.0
        %1258 = vmatpush1.xpose.msra.mxu0 0.0
        %1259 = vmatprep.subr.mxu0 0.0
        %1260 = vmatpush1.xpose.msra.mxu0 0.0
        %1261 = vmatprep.subr.mxu0 0.0
        %1262 = vmatpush1.xpose.msra.mxu0 0.0
        %1263 = vmatprep.subr.mxu0 0.0
        %1264 = vmatpush1.xpose.msra.mxu0 0.0
        %1265 = vmatprep.subr.mxu0 0.0
        %1266 = vmatpush1.xpose.msra.mxu0 0.0
        %1267 = vmatprep.subr.mxu0 0.0
        %1268 = vmatpush1.xpose.msra.mxu0 0.0
        %1269 = vmatprep.subr.mxu0 0.0
        %1270 = vmatpush1.xpose.msra.mxu0 0.0
        %1271 = vmatprep.subr.mxu0 0.0
        %1272 = vmatpush1.xpose.msra.mxu0 0.0
        %1273 = vmatprep.subr.mxu0 0.0
        %1274 = vmatpush1.xpose.msra.mxu0 0.0
        %1275 = vmatprep.subr.mxu0 0.0
        %1276 = vmatpush1.xpose.msra.mxu0 0.0
        %1277 = vmatprep.subr.mxu0 0.0
        %1278 = vmatpush1.xpose.msra.mxu0 0.0
        %1279 = vmatprep.subr.mxu0 0.0
        %1280 = vmatpush1.xpose.msra.mxu0 0.0
        %1281 = vmatprep.subr.mxu0 0.0
        %1282 = vmatpush1.xpose.msra.mxu0 0.0
        %1283 = vmatprep.subr.mxu0 0.0
        %1284 = vmatpush1.xpose.msra.mxu0 0.0
        %1285 = vmatprep.subr.mxu0 0.0
        %1286 = vmatpush1.xpose.msra.mxu0 0.0
        %1287 = vmatprep.mubr.f32.mxu0 0.0
        %1288 = vmatmul.mubr.f32.gmra.mrb[0].mxu0 %v1175
        %v1289 = vpop.f32.mrb[0].mxu0
        %v1290 = vadd.f32 0.0, %v1289
        %v1291 = vpop.f32.mrb[0].mxu0
        %1292 = vmatprep.mubr.f32.mxu0 0.0
        %1293 = vmatmul.mubr.f32.gmra.mrb[0].mxu0 %v1177
        %v1294 = vpop.f32.mrb[0].mxu0
        %v1295 = vadd.f32 0.0, %v1294
        %v1296 = vpop.f32.mrb[0].mxu0
        %1297 = vmatprep.mubr.f32.mxu0 0.0
        %1298 = vmatmul.mubr.f32.gmra.mrb[0].mxu0 %v1179
        %v1299 = vpop.f32.mrb[0].mxu0
        %v1300 = vadd.f32 0.0, %v1299
        %v1301 = vpop.f32.mrb[0].mxu0
        %1302 = vmatprep.mubr.f32.mxu0 0.0
        %1303 = vmatmul.mubr.f32.gmra.mrb[0].mxu0 %v1181
        %v1304 = vpop.f32.mrb[0].mxu0
        %v1305 = vadd.f32 0.0, %v1304
        %v1306 = vpop.f32.mrb[0].mxu0
        %1307 = vmatprep.mubr.f32.mxu0 0.0
        %1308 = vmatmul.mubr.f32.gmra.mrb[0].mxu0 %v1183
        %v1309 = vpop.f32.mrb[0].mxu0
        %v1310 = vadd.f32 0.0, %v1309
        %v1311 = vpop.f32.mrb[0].mxu0
        %1312 = vmatprep.mubr.f32.mxu0 0.0
        %1313 = vmatmul.mubr.f32.gmra.mrb[0].mxu0 %v1185
        %v1314 = vpop.f32.mrb[0].mxu0
        %v1315 = vadd.f32 0.0, %v1314
        %v1316 = vpop.f32.mrb[0].mxu0
        %1317 = vmatprep.mubr.f32.mxu0 0.0
        %1318 = vmatmul.mubr.f32.gmra.mrb[0].mxu0 %v1187
        %v1319 = vpop.f32.mrb[0].mxu0
        %v1320 = vadd.f32 0.0, %v1319
        %v1321 = vpop.f32.mrb[0].mxu0
        %1322 = vmatprep.mubr.f32.mxu0 0.0
        %1323 = vmatmul.mubr.f32.gmra.mrb[0].mxu0 %v1189
        %v1324 = vpop.f32.mrb[0].mxu0
        %v1325 = vadd.f32 0.0, %v1324
        %v1326 = vpop.f32.mrb[0].mxu0
        %1327 = vdwg.mxu0
        %1328 = vmax.xlane.f32.xlu0 %v1290
        %v1329 = vpop.xlane.xlu0 %1328
        %1330 = vmax.xlane.f32.xlu0 %v1295
        %v1331 = vpop.xlane.xlu0 %1330
        %1332 = vmax.xlane.f32.xlu0 %v1300
        %v1333 = vpop.xlane.xlu0 %1332
        %1334 = vmax.xlane.f32.xlu0 %v1305
        %v1335 = vpop.xlane.xlu0 %1334
        %1336 = vmax.xlane.f32.xlu0 %v1310
        %v1337 = vpop.xlane.xlu0 %1336
        %1338 = vmax.xlane.f32.xlu0 %v1315
        %v1339 = vpop.xlane.xlu0 %1338
        %1340 = vmax.xlane.f32.xlu0 %v1320
        %v1341 = vpop.xlane.xlu0 %1340
        %1342 = vmax.xlane.f32.xlu0 %v1325
        %v1343 = vpop.xlane.xlu0 %1342
        %v1344 = vsub.f32 %v1290, %v1329
        %v1345 = vsub.f32 %v1295, %v1331
        %v1346 = vsub.f32 %v1300, %v1333
        %v1347 = vsub.f32 %v1305, %v1335
        %v1348 = vsub.f32 %v1310, %v1337
        %v1349 = vsub.f32 %v1315, %v1339
        %v1350 = vsub.f32 %v1320, %v1341
        %v1351 = vsub.f32 %v1325, %v1343
        %v1352 = vmul.f32 %v1344, 1.442695
        %v1353 = vpow.pop %v1352
        %v1354 = vmul.f32 %v1345, 1.442695
        %v1355 = vpow.pop %v1354
        %v1356 = vmul.f32 %v1346, 1.442695
        %v1357 = vpow.pop %v1356
        %v1358 = vmul.f32 %v1347, 1.442695
        %v1359 = vpow.pop %v1358
        %v1360 = vmul.f32 %v1348, 1.442695
        %v1361 = vpow.pop %v1360
        %v1362 = vmul.f32 %v1349, 1.442695
        %v1363 = vpow.pop %v1362
        %v1364 = vmul.f32 %v1350, 1.442695
        %v1365 = vpow.pop %v1364
        %v1366 = vmul.f32 %v1351, 1.442695
        %v1367 = vpow.pop %v1366
        %1368 = vadd.xlane.f32.xlu0 %v1353
        %v1369 = vpop.xlane.xlu0 %1368
        %1370 = vadd.xlane.f32.xlu0 %v1355
        %v1371 = vpop.xlane.xlu0 %1370
        %1372 = vadd.xlane.f32.xlu0 %v1357
        %v1373 = vpop.xlane.xlu0 %1372
        %1374 = vadd.xlane.f32.xlu0 %v1359
        %v1375 = vpop.xlane.xlu0 %1374
        %1376 = vadd.xlane.f32.xlu0 %v1361
        %v1377 = vpop.xlane.xlu0 %1376
        %1378 = vadd.xlane.f32.xlu0 %v1363
        %v1379 = vpop.xlane.xlu0 %1378
        %1380 = vadd.xlane.f32.xlu0 %v1365
        %v1381 = vpop.xlane.xlu0 %1380
        %1382 = vadd.xlane.f32.xlu0 %v1367
        %v1383 = vpop.xlane.xlu0 %1382
        %1400 = vrot.lane.b32.xlu0 %v752, 96
        %v1401 = vpop.permute.xlu0 %1400
        %1402 = vrot.lane.b32.xlu0 %v753, 96
        %v1403 = vpop.permute.xlu0 %1402
        %1404 = vrot.lane.b32.xlu0 %v754, 96
        %v1405 = vpop.permute.xlu0 %1404
        %1406 = vrot.lane.b32.xlu0 %v755, 96
        %v1407 = vpop.permute.xlu0 %1406
        %1408 = vrot.lane.b32.xlu0 %v756, 96
        %v1409 = vpop.permute.xlu0 %1408
        %1410 = vrot.lane.b32.xlu0 %v757, 96
        %v1411 = vpop.permute.xlu0 %1410
        %1412 = vrot.lane.b32.xlu0 %v758, 96
        %v1413 = vpop.permute.xlu0 %1412
        %1414 = vrot.lane.b32.xlu0 %v759, 96
        %v1415 = vpop.permute.xlu0 %1414
        %1416 = vrot.lane.b32.xlu0 %v760, 96
        %v1417 = vpop.permute.xlu0 %1416
        %1418 = vrot.lane.b32.xlu0 %v761, 96
        %v1419 = vpop.permute.xlu0 %1418
        %1420 = vrot.lane.b32.xlu0 %v762, 96
        %v1421 = vpop.permute.xlu0 %1420
        %1422 = vrot.lane.b32.xlu0 %v763, 96
        %v1423 = vpop.permute.xlu0 %1422
        %1424 = vrot.lane.b32.xlu0 %v764, 96
        %v1425 = vpop.permute.xlu0 %1424
        %1426 = vrot.lane.b32.xlu0 %v765, 96
        %v1427 = vpop.permute.xlu0 %1426
        %1428 = vrot.lane.b32.xlu0 %v766, 96
        %v1429 = vpop.permute.xlu0 %1428
        %1430 = vrot.lane.b32.xlu0 %v767, 96
        %v1431 = vpop.permute.xlu0 %1430
        %1448 = vmatprep.subr.mxu0 0.0
        %1449 = vmatpush1.msra.mxu0 %v1401
        %1450 = vmatprep.subr.mxu0 0.0
        %1451 = vmatpush1.msra.mxu0 %v1403
        %1452 = vmatprep.subr.mxu0 0.0
        %1453 = vmatpush1.msra.mxu0 %v1405
        %1454 = vmatprep.subr.mxu0 0.0
        %1455 = vmatpush1.msra.mxu0 %v1407
        %1456 = vmatprep.subr.mxu0 0.0
        %1457 = vmatpush1.msra.mxu0 %v1409
        %1458 = vmatprep.subr.mxu0 0.0
        %1459 = vmatpush1.msra.mxu0 %v1411
        %1460 = vmatprep.subr.mxu0 0.0
        %1461 = vmatpush1.msra.mxu0 %v1413
        %1462 = vmatprep.subr.mxu0 0.0
        %1463 = vmatpush1.msra.mxu0 %v1415
        %1464 = vmatprep.subr.mxu0 0.0
        %1465 = vmatpush1.msra.mxu0 %v1417
        %1466 = vmatprep.subr.mxu0 0.0
        %1467 = vmatpush1.msra.mxu0 %v1419
        %1468 = vmatprep.subr.mxu0 0.0
        %1469 = vmatpush1.msra.mxu0 %v1421
        %1470 = vmatprep.subr.mxu0 0.0
        %1471 = vmatpush1.msra.mxu0 %v1423
        %1472 = vmatprep.subr.mxu0 0.0
        %1473 = vmatpush1.msra.mxu0 %v1425
        %1474 = vmatprep.subr.mxu0 0.0
        %1475 = vmatpush1.msra.mxu0 %v1427
        %1476 = vmatprep.subr.mxu0 0.0
        %1477 = vmatpush1.msra.mxu0 %v1429
        %1478 = vmatprep.subr.mxu0 0.0
        %1479 = vmatpush1.msra.mxu0 %v1431
        %1480 = vmatprep.subr.mxu0 0.0
        %1481 = vmatpush1.msra.mxu0 0.0
        %1482 = vmatprep.subr.mxu0 0.0
        %1483 = vmatpush1.msra.mxu0 0.0
        %1484 = vmatprep.subr.mxu0 0.0
        %1485 = vmatpush1.msra.mxu0 0.0
        %1486 = vmatprep.subr.mxu0 0.0
        %1487 = vmatpush1.msra.mxu0 0.0
        %1488 = vmatprep.subr.mxu0 0.0
        %1489 = vmatpush1.msra.mxu0 0.0
        %1490 = vmatprep.subr.mxu0 0.0
        %1491 = vmatpush1.msra.mxu0 0.0
        %1492 = vmatprep.subr.mxu0 0.0
        %1493 = vmatpush1.msra.mxu0 0.0
        %1494 = vmatprep.subr.mxu0 0.0
        %1495 = vmatpush1.msra.mxu0 0.0
        %1496 = vmatprep.subr.mxu0 0.0
        %1497 = vmatpush1.msra.mxu0 0.0
        %1498 = vmatprep.subr.mxu0 0.0
        %1499 = vmatpush1.msra.mxu0 0.0
        %1500 = vmatprep.subr.mxu0 0.0
        %1501 = vmatpush1.msra.mxu0 0.0
        %1502 = vmatprep.subr.mxu0 0.0
        %1503 = vmatpush1.msra.mxu0 0.0
        %1504 = vmatprep.subr.mxu0 0.0
        %1505 = vmatpush1.msra.mxu0 0.0
        %1506 = vmatprep.subr.mxu0 0.0
        %1507 = vmatpush1.msra.mxu0 0.0
        %1508 = vmatprep.subr.mxu0 0.0
        %1509 = vmatpush1.msra.mxu0 0.0
        %1510 = vmatprep.subr.mxu0 0.0
        %1511 = vmatpush1.msra.mxu0 0.0
        %1512 = vmatprep.mubr.f32.mxu0 0.0
        %1513 = vmatmul.mubr.f32.gmra.mrb[0].mxu0 %v1353
        %v1514 = vpop.f32.mrb[0].mxu0
        %v1515 = vadd.f32 0.0, %v1514
        %v1516 = vpop.f32.mrb[0].mxu0
        %1517 = vmatprep.mubr.f32.mxu0 0.0
        %1518 = vmatmul.mubr.f32.gmra.mrb[0].mxu0 %v1355
        %v1519 = vpop.f32.mrb[0].mxu0
        %v1520 = vadd.f32 0.0, %v1519
        %v1521 = vpop.f32.mrb[0].mxu0
        %1522 = vmatprep.mubr.f32.mxu0 0.0
        %1523 = vmatmul.mubr.f32.gmra.mrb[0].mxu0 %v1357
        %v1524 = vpop.f32.mrb[0].mxu0
        %v1525 = vadd.f32 0.0, %v1524
        %v1526 = vpop.f32.mrb[0].mxu0
        %1527 = vmatprep.mubr.f32.mxu0 0.0
        %1528 = vmatmul.mubr.f32.gmra.mrb[0].mxu0 %v1359
        %v1529 = vpop.f32.mrb[0].mxu0
        %v1530 = vadd.f32 0.0, %v1529
        %v1531 = vpop.f32.mrb[0].mxu0
        %1532 = vmatprep.mubr.f32.mxu0 0.0
        %1533 = vmatmul.mubr.f32.gmra.mrb[0].mxu0 %v1361
        %v1534 = vpop.f32.mrb[0].mxu0
        %v1535 = vadd.f32 0.0, %v1534
        %v1536 = vpop.f32.mrb[0].mxu0
        %1537 = vmatprep.mubr.f32.mxu0 0.0
        %1538 = vmatmul.mubr.f32.gmra.mrb[0].mxu0 %v1363
        %v1539 = vpop.f32.mrb[0].mxu0
        %v1540 = vadd.f32 0.0, %v1539
        %v1541 = vpop.f32.mrb[0].mxu0
        %1542 = vmatprep.mubr.f32.mxu0 0.0
        %1543 = vmatmul.mubr.f32.gmra.mrb[0].mxu0 %v1365
        %v1544 = vpop.f32.mrb[0].mxu0
        %v1545 = vadd.f32 0.0, %v1544
        %v1546 = vpop.f32.mrb[0].mxu0
        %1547 = vmatprep.mubr.f32.mxu0 0.0
        %1548 = vmatmul.mubr.f32.gmra.mrb[0].mxu0 %v1367
        %v1549 = vpop.f32.mrb[0].mxu0
        %v1550 = vadd.f32 0.0, %v1549
        %v1551 = vpop.f32.mrb[0].mxu0
        %1552 = vdwg.mxu0
        %v1553 = vrcp.pop %v1369
        %v1554 = vrcp.pop %v1371
        %v1555 = vrcp.pop %v1373
        %v1556 = vrcp.pop %v1375
        %v1557 = vrcp.pop %v1377
        %v1558 = vrcp.pop %v1379
        %v1559 = vrcp.pop %v1381
        %v1560 = vrcp.pop %v1383
        %v1561 = vmul.f32 %v1515, %v1553
        %v1562 = vmul.f32 %v1520, %v1554
        %v1563 = vmul.f32 %v1525, %v1555
        %v1564 = vmul.f32 %v1530, %v1556
        %v1565 = vmul.f32 %v1535, %v1557
        %v1566 = vmul.f32 %v1540, %v1558
        %v1567 = vmul.f32 %v1545, %v1559
        %v1568 = vmul.f32 %v1550, %v1560
        %v1569 = vld [vmem:[#allocation10 + $0x20] sm:$0xff]
        %v1570 = vld [vmem:[#allocation10 + $0x28] sm:$0xff]
        %v1571 = vld [vmem:[#allocation10 + $0x30] sm:$0xff]
        %v1572 = vld [vmem:[#allocation10 + $0x38] sm:$0xff]
        %v1574 = vsel %vm768, %v1561, 0
        %v1577 = vsel %vm768, %v1562, 0
        %v1580 = vsel %vm768, %v1563, 0
        %v1583 = vsel %vm768, %v1564, 0
        %v1586 = vsel %vm768, %v1565, 0
        %v1589 = vsel %vm768, %v1566, 0
        %v1592 = vsel %vm768, %v1567, 0
        %v1595 = vsel %vm768, %v1568, 0
        %1597 = vmatprep.subr.mxu0 0.0
        %1598 = vmatpush1.msra.mxu0 %v1569
        %1599 = vmatprep.subr.mxu0 0.0
        %1600 = vmatpush1.msra.mxu0 %v1570
        %1601 = vmatprep.subr.mxu0 0.0
        %1602 = vmatpush1.msra.mxu0 %v1571
        %1603 = vmatprep.subr.mxu0 0.0
        %1604 = vmatpush1.msra.mxu0 %v1572
        %1605 = vmatprep.subr.mxu0 0.0
        %1606 = vmatpush1.msra.mxu0 0.0
        %1607 = vmatprep.subr.mxu0 0.0
        %1608 = vmatpush1.msra.mxu0 0.0
        %1609 = vmatprep.subr.mxu0 0.0
        %1610 = vmatpush1.msra.mxu0 0.0
        %1611 = vmatprep.subr.mxu0 0.0
        %1612 = vmatpush1.msra.mxu0 0.0
        %1613 = vmatprep.subr.mxu0 0.0
        %1614 = vmatpush1.msra.mxu0 0.0
        %1615 = vmatprep.subr.mxu0 0.0
        %1616 = vmatpush1.msra.mxu0 0.0
        %1617 = vmatprep.subr.mxu0 0.0
        %1618 = vmatpush1.msra.mxu0 0.0
        %1619 = vmatprep.subr.mxu0 0.0
        %1620 = vmatpush1.msra.mxu0 0.0
        %1621 = vmatprep.subr.mxu0 0.0
        %1622 = vmatpush1.msra.mxu0 0.0
        %1623 = vmatprep.subr.mxu0 0.0
        %1624 = vmatpush1.msra.mxu0 0.0
        %1625 = vmatprep.subr.mxu0 0.0
        %1626 = vmatpush1.msra.mxu0 0.0
        %1627 = vmatprep.subr.mxu0 0.0
        %1628 = vmatpush1.msra.mxu0 0.0
        %1629 = vmatprep.subr.mxu0 0.0
        %1630 = vmatpush1.msra.mxu0 0.0
        %1631 = vmatprep.subr.mxu0 0.0
        %1632 = vmatpush1.msra.mxu0 0.0
        %1633 = vmatprep.subr.mxu0 0.0
        %1634 = vmatpush1.msra.mxu0 0.0
        %1635 = vmatprep.subr.mxu0 0.0
        %1636 = vmatpush1.msra.mxu0 0.0
        %1637 = vmatprep.subr.mxu0 0.0
        %1638 = vmatpush1.msra.mxu0 0.0
        %1639 = vmatprep.subr.mxu0 0.0
        %1640 = vmatpush1.msra.mxu0 0.0
        %1641 = vmatprep.subr.mxu0 0.0
        %1642 = vmatpush1.msra.mxu0 0.0
        %1643 = vmatprep.subr.mxu0 0.0
        %1644 = vmatpush1.msra.mxu0 0.0
        %1645 = vmatprep.subr.mxu0 0.0
        %1646 = vmatpush1.msra.mxu0 0.0
        %1647 = vmatprep.subr.mxu0 0.0
        %1648 = vmatpush1.msra.mxu0 0.0
        %1649 = vmatprep.subr.mxu0 0.0
        %1650 = vmatpush1.msra.mxu0 0.0
        %1651 = vmatprep.subr.mxu0 0.0
        %1652 = vmatpush1.msra.mxu0 0.0
        %1653 = vmatprep.subr.mxu0 0.0
        %1654 = vmatpush1.msra.mxu0 0.0
        %1655 = vmatprep.subr.mxu0 0.0
        %1656 = vmatpush1.msra.mxu0 0.0
        %1657 = vmatprep.subr.mxu0 0.0
        %1658 = vmatpush1.msra.mxu0 0.0
        %1659 = vmatprep.subr.mxu0 0.0
        %1660 = vmatpush1.msra.mxu0 0.0
        %1661 = vmatprep.mubr.f32.mxu0 0.0
        %1662 = vmatmul.mubr.f32.gmra.mrb[0].mxu0 %v1574
        %v1663 = vpop.f32.mrb[0].mxu0
        %v1664 = vadd.f32 0.0, %v1663
        %v1665 = vpop.f32.mrb[0].mxu0
        %1666 = vmatprep.mubr.f32.mxu0 0.0
        %1667 = vmatmul.mubr.f32.gmra.mrb[0].mxu0 %v1577
        %v1668 = vpop.f32.mrb[0].mxu0
        %v1669 = vadd.f32 0.0, %v1668
        %v1670 = vpop.f32.mrb[0].mxu0
        %1671 = vmatprep.mubr.f32.mxu0 0.0
        %1672 = vmatmul.mubr.f32.gmra.mrb[0].mxu0 %v1580
        %v1673 = vpop.f32.mrb[0].mxu0
        %v1674 = vadd.f32 0.0, %v1673
        %v1675 = vpop.f32.mrb[0].mxu0
        %1676 = vmatprep.mubr.f32.mxu0 0.0
        %1677 = vmatmul.mubr.f32.gmra.mrb[0].mxu0 %v1583
        %v1678 = vpop.f32.mrb[0].mxu0
        %v1679 = vadd.f32 0.0, %v1678
        %v1680 = vpop.f32.mrb[0].mxu0
        %1681 = vmatprep.mubr.f32.mxu0 0.0
        %1682 = vmatmul.mubr.f32.gmra.mrb[0].mxu0 %v1586
        %v1683 = vpop.f32.mrb[0].mxu0
        %v1684 = vadd.f32 0.0, %v1683
        %v1685 = vpop.f32.mrb[0].mxu0
        %1686 = vmatprep.mubr.f32.mxu0 0.0
        %1687 = vmatmul.mubr.f32.gmra.mrb[0].mxu0 %v1589
        %v1688 = vpop.f32.mrb[0].mxu0
        %v1689 = vadd.f32 0.0, %v1688
        %v1690 = vpop.f32.mrb[0].mxu0
        %1691 = vmatprep.mubr.f32.mxu0 0.0
        %1692 = vmatmul.mubr.f32.gmra.mrb[0].mxu0 %v1592
        %v1693 = vpop.f32.mrb[0].mxu0
        %v1694 = vadd.f32 0.0, %v1693
        %v1695 = vpop.f32.mrb[0].mxu0
        %1696 = vmatprep.mubr.f32.mxu0 0.0
        %1697 = vmatmul.mubr.f32.gmra.mrb[0].mxu0 %v1595
        %v1698 = vpop.f32.mrb[0].mxu0
        %v1699 = vadd.f32 0.0, %v1698
        %v1700 = vpop.f32.mrb[0].mxu0
        %1701 = vdwg.mxu0
        %v1703 = vsel %vm768, %v1115, 0
        %v1706 = vsel %vm768, %v1116, 0
        %v1709 = vsel %vm768, %v1117, 0
        %v1712 = vsel %vm768, %v1118, 0
        %v1715 = vsel %vm768, %v1119, 0
        %v1718 = vsel %vm768, %v1120, 0
        %v1721 = vsel %vm768, %v1121, 0
        %v1724 = vsel %vm768, %v1122, 0
        %1726 = vmatprep.subr.mxu0 0.0
        %1727 = vmatpush1.msra.mxu0 %v1123
        %1728 = vmatprep.subr.mxu0 0.0
        %1729 = vmatpush1.msra.mxu0 %v1124
        %1730 = vmatprep.subr.mxu0 0.0
        %1731 = vmatpush1.msra.mxu0 %v1125
        %1732 = vmatprep.subr.mxu0 0.0
        %1733 = vmatpush1.msra.mxu0 %v1126
        %1734 = vmatprep.subr.mxu0 0.0
        %1735 = vmatpush1.msra.mxu0 0.0
        %1736 = vmatprep.subr.mxu0 0.0
        %1737 = vmatpush1.msra.mxu0 0.0
        %1738 = vmatprep.subr.mxu0 0.0
        %1739 = vmatpush1.msra.mxu0 0.0
        %1740 = vmatprep.subr.mxu0 0.0
        %1741 = vmatpush1.msra.mxu0 0.0
        %1742 = vmatprep.subr.mxu0 0.0
        %1743 = vmatpush1.msra.mxu0 0.0
        %1744 = vmatprep.subr.mxu0 0.0
        %1745 = vmatpush1.msra.mxu0 0.0
        %1746 = vmatprep.subr.mxu0 0.0
        %1747 = vmatpush1.msra.mxu0 0.0
        %1748 = vmatprep.subr.mxu0 0.0
        %1749 = vmatpush1.msra.mxu0 0.0
        %1750 = vmatprep.subr.mxu0 0.0
        %1751 = vmatpush1.msra.mxu0 0.0
        %1752 = vmatprep.subr.mxu0 0.0
        %1753 = vmatpush1.msra.mxu0 0.0
        %1754 = vmatprep.subr.mxu0 0.0
        %1755 = vmatpush1.msra.mxu0 0.0
        %1756 = vmatprep.subr.mxu0 0.0
        %1757 = vmatpush1.msra.mxu0 0.0
        %1758 = vmatprep.subr.mxu0 0.0
        %1759 = vmatpush1.msra.mxu0 0.0
        %1760 = vmatprep.subr.mxu0 0.0
        %1761 = vmatpush1.msra.mxu0 0.0
        %1762 = vmatprep.subr.mxu0 0.0
        %1763 = vmatpush1.msra.mxu0 0.0
        %1764 = vmatprep.subr.mxu0 0.0
        %1765 = vmatpush1.msra.mxu0 0.0
        %1766 = vmatprep.subr.mxu0 0.0
        %1767 = vmatpush1.msra.mxu0 0.0
        %1768 = vmatprep.subr.mxu0 0.0
        %1769 = vmatpush1.msra.mxu0 0.0
        %1770 = vmatprep.subr.mxu0 0.0
        %1771 = vmatpush1.msra.mxu0 0.0
        %1772 = vmatprep.subr.mxu0 0.0
        %1773 = vmatpush1.msra.mxu0 0.0
        %1774 = vmatprep.subr.mxu0 0.0
        %1775 = vmatpush1.msra.mxu0 0.0
        %1776 = vmatprep.subr.mxu0 0.0
        %1777 = vmatpush1.msra.mxu0 0.0
        %1778 = vmatprep.subr.mxu0 0.0
        %1779 = vmatpush1.msra.mxu0 0.0
        %1780 = vmatprep.subr.mxu0 0.0
        %1781 = vmatpush1.msra.mxu0 0.0
        %1782 = vmatprep.subr.mxu0 0.0
        %1783 = vmatpush1.msra.mxu0 0.0
        %1784 = vmatprep.subr.mxu0 0.0
        %1785 = vmatpush1.msra.mxu0 0.0
        %1786 = vmatprep.subr.mxu0 0.0
        %1787 = vmatpush1.msra.mxu0 0.0
        %1788 = vmatprep.subr.mxu0 0.0
        %1789 = vmatpush1.msra.mxu0 0.0
        %1790 = vmatprep.mubr.f32.mxu0 0.0
        %1791 = vmatmul.mubr.f32.gmra.mrb[0].mxu0 %v1703
        %v1792 = vpop.f32.mrb[0].mxu0
        %v1793 = vadd.f32 %v1664, %v1792
        %v1794 = vpop.f32.mrb[0].mxu0
        %1795 = vmatprep.mubr.f32.mxu0 0.0
        %1796 = vmatmul.mubr.f32.gmra.mrb[0].mxu0 %v1706
        %v1797 = vpop.f32.mrb[0].mxu0
        %v1798 = vadd.f32 %v1669, %v1797
        %v1799 = vpop.f32.mrb[0].mxu0
        %1800 = vmatprep.mubr.f32.mxu0 0.0
        %1801 = vmatmul.mubr.f32.gmra.mrb[0].mxu0 %v1709
        %v1802 = vpop.f32.mrb[0].mxu0
        %v1803 = vadd.f32 %v1674, %v1802
        %v1804 = vpop.f32.mrb[0].mxu0
        %1805 = vmatprep.mubr.f32.mxu0 0.0
        %1806 = vmatmul.mubr.f32.gmra.mrb[0].mxu0 %v1712
        %v1807 = vpop.f32.mrb[0].mxu0
        %v1808 = vadd.f32 %v1679, %v1807
        %v1809 = vpop.f32.mrb[0].mxu0
        %1810 = vmatprep.mubr.f32.mxu0 0.0
        %1811 = vmatmul.mubr.f32.gmra.mrb[0].mxu0 %v1715
        %v1812 = vpop.f32.mrb[0].mxu0
        %v1813 = vadd.f32 %v1684, %v1812
        %v1814 = vpop.f32.mrb[0].mxu0
        %1815 = vmatprep.mubr.f32.mxu0 0.0
        %1816 = vmatmul.mubr.f32.gmra.mrb[0].mxu0 %v1718
        %v1817 = vpop.f32.mrb[0].mxu0
        %v1818 = vadd.f32 %v1689, %v1817
        %v1819 = vpop.f32.mrb[0].mxu0
        %1820 = vmatprep.mubr.f32.mxu0 0.0
        %1821 = vmatmul.mubr.f32.gmra.mrb[0].mxu0 %v1721
        %v1822 = vpop.f32.mrb[0].mxu0
        %v1823 = vadd.f32 %v1694, %v1822
        %v1824 = vpop.f32.mrb[0].mxu0
        %1825 = vmatprep.mubr.f32.mxu0 0.0
        %1826 = vmatmul.mubr.f32.gmra.mrb[0].mxu0 %v1724
        %v1827 = vpop.f32.mrb[0].mxu0
        %v1828 = vadd.f32 %v1699, %v1827
        %v1829 = vpop.f32.mrb[0].mxu0
        %1830 = vdwg.mxu0
        %1831 = vrot.lane.b32.xlu0 %v728, 64
        %v1832 = vpop.permute.xlu0 %1831
        %1833 = vrot.lane.b32.xlu0 %v729, 64
        %v1834 = vpop.permute.xlu0 %1833
        %1835 = vrot.lane.b32.xlu0 %v730, 64
        %v1836 = vpop.permute.xlu0 %1835
        %1837 = vrot.lane.b32.xlu0 %v731, 64
        %v1838 = vpop.permute.xlu0 %1837
        %1839 = vrot.lane.b32.xlu0 %v732, 64
        %v1840 = vpop.permute.xlu0 %1839
        %1841 = vrot.lane.b32.xlu0 %v733, 64
        %v1842 = vpop.permute.xlu0 %1841
        %1843 = vrot.lane.b32.xlu0 %v734, 64
        %v1844 = vpop.permute.xlu0 %1843
        %1845 = vrot.lane.b32.xlu0 %v735, 64
        %v1846 = vpop.permute.xlu0 %1845
        %1847 = vrot.lane.b32.xlu0 %v736, 64
        %v1848 = vpop.permute.xlu0 %1847
        %1849 = vrot.lane.b32.xlu0 %v737, 64
        %v1850 = vpop.permute.xlu0 %1849
        %1851 = vrot.lane.b32.xlu0 %v738, 64
        %v1852 = vpop.permute.xlu0 %1851
        %1853 = vrot.lane.b32.xlu0 %v739, 64
        %v1854 = vpop.permute.xlu0 %1853
        %1855 = vrot.lane.b32.xlu0 %v740, 64
        %v1856 = vpop.permute.xlu0 %1855
        %1857 = vrot.lane.b32.xlu0 %v741, 64
        %v1858 = vpop.permute.xlu0 %1857
        %1859 = vrot.lane.b32.xlu0 %v742, 64
        %v1860 = vpop.permute.xlu0 %1859
        %1861 = vrot.lane.b32.xlu0 %v743, 64
        %v1862 = vpop.permute.xlu0 %1861
        %1863 = vrot.lane.b32.xlu0 %v744, 64
        %v1864 = vpop.permute.xlu0 %1863
        %1865 = vrot.lane.b32.xlu0 %v745, 64
        %v1866 = vpop.permute.xlu0 %1865
        %1867 = vrot.lane.b32.xlu0 %v746, 64
        %v1868 = vpop.permute.xlu0 %1867
        %1869 = vrot.lane.b32.xlu0 %v747, 64
        %v1870 = vpop.permute.xlu0 %1869
        %1871 = vrot.lane.b32.xlu0 %v748, 64
        %v1872 = vpop.permute.xlu0 %1871
        %1873 = vrot.lane.b32.xlu0 %v749, 64
        %v1874 = vpop.permute.xlu0 %1873
        %1875 = vrot.lane.b32.xlu0 %v750, 64
        %v1876 = vpop.permute.xlu0 %1875
        %1877 = vrot.lane.b32.xlu0 %v751, 64
        %v1878 = vpop.permute.xlu0 %1877
        %v1879 = vsel %vm768, %v1832, 0
        %v1881 = vsel %vm768, %v1834, 0
        %v1883 = vsel %vm768, %v1836, 0
        %v1885 = vsel %vm768, %v1838, 0
        %v1887 = vsel %vm768, %v1840, 0
        %v1889 = vsel %vm768, %v1842, 0
        %v1891 = vsel %vm768, %v1844, 0
        %v1893 = vsel %vm768, %v1846, 0
        %v1895 = vsel %vm768, %v1848, 0
        %v1897 = vsel %vm768, %v1850, 0
        %v1899 = vsel %vm768, %v1852, 0
        %v1901 = vsel %vm768, %v1854, 0
        %v1903 = vsel %vm768, %v1856, 0
        %v1905 = vsel %vm768, %v1858, 0
        %v1907 = vsel %vm768, %v1860, 0
        %v1909 = vsel %vm768, %v1862, 0
        %v1911 = vsel %vm768, %v1864, 0
        %v1913 = vsel %vm768, %v1866, 0
        %v1915 = vsel %vm768, %v1868, 0
        %v1917 = vsel %vm768, %v1870, 0
        %v1919 = vsel %vm768, %v1872, 0
        %v1921 = vsel %vm768, %v1874, 0
        %v1923 = vsel %vm768, %v1876, 0
        %v1925 = vsel %vm768, %v1878, 0
        %1927 = vmatprep.subr.mxu0 0.0
        %1928 = vmatpush1.xpose.msra.mxu0 %v1895
        %1929 = vmatprep.subr.mxu0 0.0
        %1930 = vmatpush1.xpose.msra.mxu0 %v1897
        %1931 = vmatprep.subr.mxu0 0.0
        %1932 = vmatpush1.xpose.msra.mxu0 %v1899
        %1933 = vmatprep.subr.mxu0 0.0
        %1934 = vmatpush1.xpose.msra.mxu0 %v1901
        %1935 = vmatprep.subr.mxu0 0.0
        %1936 = vmatpush1.xpose.msra.mxu0 %v1903
        %1937 = vmatprep.subr.mxu0 0.0
        %1938 = vmatpush1.xpose.msra.mxu0 %v1905
        %1939 = vmatprep.subr.mxu0 0.0
        %1940 = vmatpush1.xpose.msra.mxu0 %v1907
        %1941 = vmatprep.subr.mxu0 0.0
        %1942 = vmatpush1.xpose.msra.mxu0 %v1909
        %1943 = vmatprep.subr.mxu0 0.0
        %1944 = vmatpush1.xpose.msra.mxu0 %v1911
        %1945 = vmatprep.subr.mxu0 0.0
        %1946 = vmatpush1.xpose.msra.mxu0 %v1913
        %1947 = vmatprep.subr.mxu0 0.0
        %1948 = vmatpush1.xpose.msra.mxu0 %v1915
        %1949 = vmatprep.subr.mxu0 0.0
        %1950 = vmatpush1.xpose.msra.mxu0 %v1917
        %1951 = vmatprep.subr.mxu0 0.0
        %1952 = vmatpush1.xpose.msra.mxu0 %v1919
        %1953 = vmatprep.subr.mxu0 0.0
        %1954 = vmatpush1.xpose.msra.mxu0 %v1921
        %1955 = vmatprep.subr.mxu0 0.0
        %1956 = vmatpush1.xpose.msra.mxu0 %v1923
        %1957 = vmatprep.subr.mxu0 0.0
        %1958 = vmatpush1.xpose.msra.mxu0 %v1925
        %1959 = vmatprep.subr.mxu0 0.0
        %1960 = vmatpush1.xpose.msra.mxu0 0.0
        %1961 = vmatprep.subr.mxu0 0.0
        %1962 = vmatpush1.xpose.msra.mxu0 0.0
        %1963 = vmatprep.subr.mxu0 0.0
        %1964 = vmatpush1.xpose.msra.mxu0 0.0
        %1965 = vmatprep.subr.mxu0 0.0
        %1966 = vmatpush1.xpose.msra.mxu0 0.0
        %1967 = vmatprep.subr.mxu0 0.0
        %1968 = vmatpush1.xpose.msra.mxu0 0.0
        %1969 = vmatprep.subr.mxu0 0.0
        %1970 = vmatpush1.xpose.msra.mxu0 0.0
        %1971 = vmatprep.subr.mxu0 0.0
        %1972 = vmatpush1.xpose.msra.mxu0 0.0
        %1973 = vmatprep.subr.mxu0 0.0
        %1974 = vmatpush1.xpose.msra.mxu0 0.0
        %1975 = vmatprep.subr.mxu0 0.0
        %1976 = vmatpush1.xpose.msra.mxu0 0.0
        %1977 = vmatprep.subr.mxu0 0.0
        %1978 = vmatpush1.xpose.msra.mxu0 0.0
        %1979 = vmatprep.subr.mxu0 0.0
        %1980 = vmatpush1.xpose.msra.mxu0 0.0
        %1981 = vmatprep.subr.mxu0 0.0
        %1982 = vmatpush1.xpose.msra.mxu0 0.0
        %1983 = vmatprep.subr.mxu0 0.0
        %1984 = vmatpush1.xpose.msra.mxu0 0.0
        %1985 = vmatprep.subr.mxu0 0.0
        %1986 = vmatpush1.xpose.msra.mxu0 0.0
        %1987 = vmatprep.subr.mxu0 0.0
        %1988 = vmatpush1.xpose.msra.mxu0 0.0
        %1989 = vmatprep.subr.mxu0 0.0
        %1990 = vmatpush1.xpose.msra.mxu0 0.0
        %1991 = vmatprep.mubr.f32.mxu0 0.0
        %1992 = vmatmul.mubr.f32.gmra.mrb[0].mxu0 %v1879
        %v1993 = vpop.f32.mrb[0].mxu0
        %v1994 = vadd.f32 0.0, %v1993
        %v1995 = vpop.f32.mrb[0].mxu0
        %1996 = vmatprep.mubr.f32.mxu0 0.0
        %1997 = vmatmul.mubr.f32.gmra.mrb[0].mxu0 %v1881
        %v1998 = vpop.f32.mrb[0].mxu0
        %v1999 = vadd.f32 0.0, %v1998
        %v2000 = vpop.f32.mrb[0].mxu0
        %2001 = vmatprep.mubr.f32.mxu0 0.0
        %2002 = vmatmul.mubr.f32.gmra.mrb[0].mxu0 %v1883
        %v2003 = vpop.f32.mrb[0].mxu0
        %v2004 = vadd.f32 0.0, %v2003
        %v2005 = vpop.f32.mrb[0].mxu0
        %2006 = vmatprep.mubr.f32.mxu0 0.0
        %2007 = vmatmul.mubr.f32.gmra.mrb[0].mxu0 %v1885
        %v2008 = vpop.f32.mrb[0].mxu0
        %v2009 = vadd.f32 0.0, %v2008
        %v2010 = vpop.f32.mrb[0].mxu0
        %2011 = vmatprep.mubr.f32.mxu0 0.0
        %2012 = vmatmul.mubr.f32.gmra.mrb[0].mxu0 %v1887
        %v2013 = vpop.f32.mrb[0].mxu0
        %v2014 = vadd.f32 0.0, %v2013
        %v2015 = vpop.f32.mrb[0].mxu0
        %2016 = vmatprep.mubr.f32.mxu0 0.0
        %2017 = vmatmul.mubr.f32.gmra.mrb[0].mxu0 %v1889
        %v2018 = vpop.f32.mrb[0].mxu0
        %v2019 = vadd.f32 0.0, %v2018
        %v2020 = vpop.f32.mrb[0].mxu0
        %2021 = vmatprep.mubr.f32.mxu0 0.0
        %2022 = vmatmul.mubr.f32.gmra.mrb[0].mxu0 %v1891
        %v2023 = vpop.f32.mrb[0].mxu0
        %v2024 = vadd.f32 0.0, %v2023
        %v2025 = vpop.f32.mrb[0].mxu0
        %2026 = vmatprep.mubr.f32.mxu0 0.0
        %2027 = vmatmul.mubr.f32.gmra.mrb[0].mxu0 %v1893
        %v2028 = vpop.f32.mrb[0].mxu0
        %v2029 = vadd.f32 0.0, %v2028
        %v2030 = vpop.f32.mrb[0].mxu0
        %2031 = vdwg.mxu0
        %2032 = vmax.xlane.f32.xlu0 %v1994
        %v2033 = vpop.xlane.xlu0 %2032
        %2034 = vmax.xlane.f32.xlu0 %v1999
        %v2035 = vpop.xlane.xlu0 %2034
        %2036 = vmax.xlane.f32.xlu0 %v2004
        %v2037 = vpop.xlane.xlu0 %2036
        %2038 = vmax.xlane.f32.xlu0 %v2009
        %v2039 = vpop.xlane.xlu0 %2038
        %2040 = vmax.xlane.f32.xlu0 %v2014
        %v2041 = vpop.xlane.xlu0 %2040
        %2042 = vmax.xlane.f32.xlu0 %v2019
        %v2043 = vpop.xlane.xlu0 %2042
        %2044 = vmax.xlane.f32.xlu0 %v2024
        %v2045 = vpop.xlane.xlu0 %2044
        %2046 = vmax.xlane.f32.xlu0 %v2029
        %v2047 = vpop.xlane.xlu0 %2046
        %v2048 = vsub.f32 %v1994, %v2033
        %v2049 = vsub.f32 %v1999, %v2035
        %v2050 = vsub.f32 %v2004, %v2037
        %v2051 = vsub.f32 %v2009, %v2039
        %v2052 = vsub.f32 %v2014, %v2041
        %v2053 = vsub.f32 %v2019, %v2043
        %v2054 = vsub.f32 %v2024, %v2045
        %v2055 = vsub.f32 %v2029, %v2047
        %v2056 = vmul.f32 %v2048, 1.442695
        %v2057 = vpow.pop %v2056
        %v2058 = vmul.f32 %v2049, 1.442695
        %v2059 = vpow.pop %v2058
        %v2060 = vmul.f32 %v2050, 1.442695
        %v2061 = vpow.pop %v2060
        %v2062 = vmul.f32 %v2051, 1.442695
        %v2063 = vpow.pop %v2062
        %v2064 = vmul.f32 %v2052, 1.442695
        %v2065 = vpow.pop %v2064
        %v2066 = vmul.f32 %v2053, 1.442695
        %v2067 = vpow.pop %v2066
        %v2068 = vmul.f32 %v2054, 1.442695
        %v2069 = vpow.pop %v2068
        %v2070 = vmul.f32 %v2055, 1.442695
        %v2071 = vpow.pop %v2070
        %2072 = vadd.xlane.f32.xlu0 %v2057
        %v2073 = vpop.xlane.xlu0 %2072
        %2074 = vadd.xlane.f32.xlu0 %v2059
        %v2075 = vpop.xlane.xlu0 %2074
        %2076 = vadd.xlane.f32.xlu0 %v2061
        %v2077 = vpop.xlane.xlu0 %2076
        %2078 = vadd.xlane.f32.xlu0 %v2063
        %v2079 = vpop.xlane.xlu0 %2078
        %2080 = vadd.xlane.f32.xlu0 %v2065
        %v2081 = vpop.xlane.xlu0 %2080
        %2082 = vadd.xlane.f32.xlu0 %v2067
        %v2083 = vpop.xlane.xlu0 %2082
        %2084 = vadd.xlane.f32.xlu0 %v2069
        %v2085 = vpop.xlane.xlu0 %2084
        %2086 = vadd.xlane.f32.xlu0 %v2071
        %v2087 = vpop.xlane.xlu0 %2086
        %2088 = vrot.lane.b32.xlu0 %v752, 64
        %v2089 = vpop.permute.xlu0 %2088
        %2090 = vrot.lane.b32.xlu0 %v753, 64
        %v2091 = vpop.permute.xlu0 %2090
        %2092 = vrot.lane.b32.xlu0 %v754, 64
        %v2093 = vpop.permute.xlu0 %2092
        %2094 = vrot.lane.b32.xlu0 %v755, 64
        %v2095 = vpop.permute.xlu0 %2094
        %2096 = vrot.lane.b32.xlu0 %v756, 64
        %v2097 = vpop.permute.xlu0 %2096
        %2098 = vrot.lane.b32.xlu0 %v757, 64
        %v2099 = vpop.permute.xlu0 %2098
        %2100 = vrot.lane.b32.xlu0 %v758, 64
        %v2101 = vpop.permute.xlu0 %2100
        %2102 = vrot.lane.b32.xlu0 %v759, 64
        %v2103 = vpop.permute.xlu0 %2102
        %2104 = vrot.lane.b32.xlu0 %v760, 64
        %v2105 = vpop.permute.xlu0 %2104
        %2106 = vrot.lane.b32.xlu0 %v761, 64
        %v2107 = vpop.permute.xlu0 %2106
        %2108 = vrot.lane.b32.xlu0 %v762, 64
        %v2109 = vpop.permute.xlu0 %2108
        %2110 = vrot.lane.b32.xlu0 %v763, 64
        %v2111 = vpop.permute.xlu0 %2110
        %2112 = vrot.lane.b32.xlu0 %v764, 64
        %v2113 = vpop.permute.xlu0 %2112
        %2114 = vrot.lane.b32.xlu0 %v765, 64
        %v2115 = vpop.permute.xlu0 %2114
        %2116 = vrot.lane.b32.xlu0 %v766, 64
        %v2117 = vpop.permute.xlu0 %2116
        %2118 = vrot.lane.b32.xlu0 %v767, 64
        %v2119 = vpop.permute.xlu0 %2118
        %2136 = vmatprep.subr.mxu0 0.0
        %2137 = vmatpush1.msra.mxu0 %v2089
        %2138 = vmatprep.subr.mxu0 0.0
        %2139 = vmatpush1.msra.mxu0 %v2091
        %2140 = vmatprep.subr.mxu0 0.0
        %2141 = vmatpush1.msra.mxu0 %v2093
        %2142 = vmatprep.subr.mxu0 0.0
        %2143 = vmatpush1.msra.mxu0 %v2095
        %2144 = vmatprep.subr.mxu0 0.0
        %2145 = vmatpush1.msra.mxu0 %v2097
        %2146 = vmatprep.subr.mxu0 0.0
        %2147 = vmatpush1.msra.mxu0 %v2099
        %2148 = vmatprep.subr.mxu0 0.0
        %2149 = vmatpush1.msra.mxu0 %v2101
        %2150 = vmatprep.subr.mxu0 0.0
        %2151 = vmatpush1.msra.mxu0 %v2103
        %2152 = vmatprep.subr.mxu0 0.0
        %2153 = vmatpush1.msra.mxu0 %v2105
        %2154 = vmatprep.subr.mxu0 0.0
        %2155 = vmatpush1.msra.mxu0 %v2107
        %2156 = vmatprep.subr.mxu0 0.0
        %2157 = vmatpush1.msra.mxu0 %v2109
        %2158 = vmatprep.subr.mxu0 0.0
        %2159 = vmatpush1.msra.mxu0 %v2111
        %2160 = vmatprep.subr.mxu0 0.0
        %2161 = vmatpush1.msra.mxu0 %v2113
        %2162 = vmatprep.subr.mxu0 0.0
        %2163 = vmatpush1.msra.mxu0 %v2115
        %2164 = vmatprep.subr.mxu0 0.0
        %2165 = vmatpush1.msra.mxu0 %v2117
        %2166 = vmatprep.subr.mxu0 0.0
        %2167 = vmatpush1.msra.mxu0 %v2119
        %2168 = vmatprep.subr.mxu0 0.0
        %2169 = vmatpush1.msra.mxu0 0.0
        %2170 = vmatprep.subr.mxu0 0.0
        %2171 = vmatpush1.msra.mxu0 0.0
        %2172 = vmatprep.subr.mxu0 0.0
        %2173 = vmatpush1.msra.mxu0 0.0
        %2174 = vmatprep.subr.mxu0 0.0
        %2175 = vmatpush1.msra.mxu0 0.0
        %2176 = vmatprep.subr.mxu0 0.0
        %2177 = vmatpush1.msra.mxu0 0.0
        %2178 = vmatprep.subr.mxu0 0.0
        %2179 = vmatpush1.msra.mxu0 0.0
        %2180 = vmatprep.subr.mxu0 0.0
        %2181 = vmatpush1.msra.mxu0 0.0
        %2182 = vmatprep.subr.mxu0 0.0
        %2183 = vmatpush1.msra.mxu0 0.0
        %2184 = vmatprep.subr.mxu0 0.0
        %2185 = vmatpush1.msra.mxu0 0.0
        %2186 = vmatprep.subr.mxu0 0.0
        %2187 = vmatpush1.msra.mxu0 0.0
        %2188 = vmatprep.subr.mxu0 0.0
        %2189 = vmatpush1.msra.mxu0 0.0
        %2190 = vmatprep.subr.mxu0 0.0
        %2191 = vmatpush1.msra.mxu0 0.0
        %2192 = vmatprep.subr.mxu0 0.0
        %2193 = vmatpush1.msra.mxu0 0.0
        %2194 = vmatprep.subr.mxu0 0.0
        %2195 = vmatpush1.msra.mxu0 0.0
        %2196 = vmatprep.subr.mxu0 0.0
        %2197 = vmatpush1.msra.mxu0 0.0
        %2198 = vmatprep.subr.mxu0 0.0
        %2199 = vmatpush1.msra.mxu0 0.0
        %2200 = vmatprep.mubr.f32.mxu0 0.0
        %2201 = vmatmul.mubr.f32.gmra.mrb[0].mxu0 %v2057
        %v2202 = vpop.f32.mrb[0].mxu0
        %v2203 = vadd.f32 0.0, %v2202
        %v2204 = vpop.f32.mrb[0].mxu0
        %2205 = vmatprep.mubr.f32.mxu0 0.0
        %2206 = vmatmul.mubr.f32.gmra.mrb[0].mxu0 %v2059
        %v2207 = vpop.f32.mrb[0].mxu0
        %v2208 = vadd.f32 0.0, %v2207
        %v2209 = vpop.f32.mrb[0].mxu0
        %2210 = vmatprep.mubr.f32.mxu0 0.0
        %2211 = vmatmul.mubr.f32.gmra.mrb[0].mxu0 %v2061
        %v2212 = vpop.f32.mrb[0].mxu0
        %v2213 = vadd.f32 0.0, %v2212
        %v2214 = vpop.f32.mrb[0].mxu0
        %2215 = vmatprep.mubr.f32.mxu0 0.0
        %2216 = vmatmul.mubr.f32.gmra.mrb[0].mxu0 %v2063
        %v2217 = vpop.f32.mrb[0].mxu0
        %v2218 = vadd.f32 0.0, %v2217
        %v2219 = vpop.f32.mrb[0].mxu0
        %2220 = vmatprep.mubr.f32.mxu0 0.0
        %2221 = vmatmul.mubr.f32.gmra.mrb[0].mxu0 %v2065
        %v2222 = vpop.f32.mrb[0].mxu0
        %v2223 = vadd.f32 0.0, %v2222
        %v2224 = vpop.f32.mrb[0].mxu0
        %2225 = vmatprep.mubr.f32.mxu0 0.0
        %2226 = vmatmul.mubr.f32.gmra.mrb[0].mxu0 %v2067
        %v2227 = vpop.f32.mrb[0].mxu0
        %v2228 = vadd.f32 0.0, %v2227
        %v2229 = vpop.f32.mrb[0].mxu0
        %2230 = vmatprep.mubr.f32.mxu0 0.0
        %2231 = vmatmul.mubr.f32.gmra.mrb[0].mxu0 %v2069
        %v2232 = vpop.f32.mrb[0].mxu0
        %v2233 = vadd.f32 0.0, %v2232
        %v2234 = vpop.f32.mrb[0].mxu0
        %2235 = vmatprep.mubr.f32.mxu0 0.0
        %2236 = vmatmul.mubr.f32.gmra.mrb[0].mxu0 %v2071
        %v2237 = vpop.f32.mrb[0].mxu0
        %v2238 = vadd.f32 0.0, %v2237
        %v2239 = vpop.f32.mrb[0].mxu0
        %2240 = vdwg.mxu0
        %v2241 = vrcp.pop %v2073
        %v2242 = vrcp.pop %v2075
        %v2243 = vrcp.pop %v2077
        %v2244 = vrcp.pop %v2079
        %v2245 = vrcp.pop %v2081
        %v2246 = vrcp.pop %v2083
        %v2247 = vrcp.pop %v2085
        %v2248 = vrcp.pop %v2087
        %v2249 = vmul.f32 %v2203, %v2241
        %v2250 = vmul.f32 %v2208, %v2242
        %v2251 = vmul.f32 %v2213, %v2243
        %v2252 = vmul.f32 %v2218, %v2244
        %v2253 = vmul.f32 %v2223, %v2245
        %v2254 = vmul.f32 %v2228, %v2246
        %v2255 = vmul.f32 %v2233, %v2247
        %v2256 = vmul.f32 %v2238, %v2248
        %v2257 = vld [vmem:[#allocation10 + $0x40] sm:$0xff]
        %v2258 = vld [vmem:[#allocation10 + $0x48] sm:$0xff]
        %v2259 = vld [vmem:[#allocation10 + $0x50] sm:$0xff]
        %v2260 = vld [vmem:[#allocation10 + $0x58] sm:$0xff]
        %v2262 = vsel %vm768, %v2249, 0
        %v2265 = vsel %vm768, %v2250, 0
        %v2268 = vsel %vm768, %v2251, 0
        %v2271 = vsel %vm768, %v2252, 0
        %v2274 = vsel %vm768, %v2253, 0
        %v2277 = vsel %vm768, %v2254, 0
        %v2280 = vsel %vm768, %v2255, 0
        %v2283 = vsel %vm768, %v2256, 0
        %2285 = vmatprep.subr.mxu0 0.0
        %2286 = vmatpush1.msra.mxu0 %v2257
        %2287 = vmatprep.subr.mxu0 0.0
        %2288 = vmatpush1.msra.mxu0 %v2258
        %2289 = vmatprep.subr.mxu0 0.0
        %2290 = vmatpush1.msra.mxu0 %v2259
        %2291 = vmatprep.subr.mxu0 0.0
        %2292 = vmatpush1.msra.mxu0 %v2260
        %2293 = vmatprep.subr.mxu0 0.0
        %2294 = vmatpush1.msra.mxu0 0.0
        %2295 = vmatprep.subr.mxu0 0.0
        %2296 = vmatpush1.msra.mxu0 0.0
        %2297 = vmatprep.subr.mxu0 0.0
        %2298 = vmatpush1.msra.mxu0 0.0
        %2299 = vmatprep.subr.mxu0 0.0
        %2300 = vmatpush1.msra.mxu0 0.0
        %2301 = vmatprep.subr.mxu0 0.0
        %2302 = vmatpush1.msra.mxu0 0.0
        %2303 = vmatprep.subr.mxu0 0.0
        %2304 = vmatpush1.msra.mxu0 0.0
        %2305 = vmatprep.subr.mxu0 0.0
        %2306 = vmatpush1.msra.mxu0 0.0
        %2307 = vmatprep.subr.mxu0 0.0
        %2308 = vmatpush1.msra.mxu0 0.0
        %2309 = vmatprep.subr.mxu0 0.0
        %2310 = vmatpush1.msra.mxu0 0.0
        %2311 = vmatprep.subr.mxu0 0.0
        %2312 = vmatpush1.msra.mxu0 0.0
        %2313 = vmatprep.subr.mxu0 0.0
        %2314 = vmatpush1.msra.mxu0 0.0
        %2315 = vmatprep.subr.mxu0 0.0
        %2316 = vmatpush1.msra.mxu0 0.0
        %2317 = vmatprep.subr.mxu0 0.0
        %2318 = vmatpush1.msra.mxu0 0.0
        %2319 = vmatprep.subr.mxu0 0.0
        %2320 = vmatpush1.msra.mxu0 0.0
        %2321 = vmatprep.subr.mxu0 0.0
        %2322 = vmatpush1.msra.mxu0 0.0
        %2323 = vmatprep.subr.mxu0 0.0
        %2324 = vmatpush1.msra.mxu0 0.0
        %2325 = vmatprep.subr.mxu0 0.0
        %2326 = vmatpush1.msra.mxu0 0.0
        %2327 = vmatprep.subr.mxu0 0.0
        %2328 = vmatpush1.msra.mxu0 0.0
        %2329 = vmatprep.subr.mxu0 0.0
        %2330 = vmatpush1.msra.mxu0 0.0
        %2331 = vmatprep.subr.mxu0 0.0
        %2332 = vmatpush1.msra.mxu0 0.0
        %2333 = vmatprep.subr.mxu0 0.0
        %2334 = vmatpush1.msra.mxu0 0.0
        %2335 = vmatprep.subr.mxu0 0.0
        %2336 = vmatpush1.msra.mxu0 0.0
        %2337 = vmatprep.subr.mxu0 0.0
        %2338 = vmatpush1.msra.mxu0 0.0
        %2339 = vmatprep.subr.mxu0 0.0
        %2340 = vmatpush1.msra.mxu0 0.0
        %2341 = vmatprep.subr.mxu0 0.0
        %2342 = vmatpush1.msra.mxu0 0.0
        %2343 = vmatprep.subr.mxu0 0.0
        %2344 = vmatpush1.msra.mxu0 0.0
        %2345 = vmatprep.subr.mxu0 0.0
        %2346 = vmatpush1.msra.mxu0 0.0
        %2347 = vmatprep.subr.mxu0 0.0
        %2348 = vmatpush1.msra.mxu0 0.0
        %2349 = vmatprep.mubr.f32.mxu0 0.0
        %2350 = vmatmul.mubr.f32.gmra.mrb[0].mxu0 %v2262
        %v2351 = vpop.f32.mrb[0].mxu0
        %v2352 = vadd.f32 0.0, %v2351
        %v2353 = vpop.f32.mrb[0].mxu0
        %2354 = vmatprep.mubr.f32.mxu0 0.0
        %2355 = vmatmul.mubr.f32.gmra.mrb[0].mxu0 %v2265
        %v2356 = vpop.f32.mrb[0].mxu0
        %v2357 = vadd.f32 0.0, %v2356
        %v2358 = vpop.f32.mrb[0].mxu0
        %2359 = vmatprep.mubr.f32.mxu0 0.0
        %2360 = vmatmul.mubr.f32.gmra.mrb[0].mxu0 %v2268
        %v2361 = vpop.f32.mrb[0].mxu0
        %v2362 = vadd.f32 0.0, %v2361
        %v2363 = vpop.f32.mrb[0].mxu0
        %2364 = vmatprep.mubr.f32.mxu0 0.0
        %2365 = vmatmul.mubr.f32.gmra.mrb[0].mxu0 %v2271
        %v2366 = vpop.f32.mrb[0].mxu0
        %v2367 = vadd.f32 0.0, %v2366
        %v2368 = vpop.f32.mrb[0].mxu0
        %2369 = vmatprep.mubr.f32.mxu0 0.0
        %2370 = vmatmul.mubr.f32.gmra.mrb[0].mxu0 %v2274
        %v2371 = vpop.f32.mrb[0].mxu0
        %v2372 = vadd.f32 0.0, %v2371
        %v2373 = vpop.f32.mrb[0].mxu0
        %2374 = vmatprep.mubr.f32.mxu0 0.0
        %2375 = vmatmul.mubr.f32.gmra.mrb[0].mxu0 %v2277
        %v2376 = vpop.f32.mrb[0].mxu0
        %v2377 = vadd.f32 0.0, %v2376
        %v2378 = vpop.f32.mrb[0].mxu0
        %2379 = vmatprep.mubr.f32.mxu0 0.0
        %2380 = vmatmul.mubr.f32.gmra.mrb[0].mxu0 %v2280
        %v2381 = vpop.f32.mrb[0].mxu0
        %v2382 = vadd.f32 0.0, %v2381
        %v2383 = vpop.f32.mrb[0].mxu0
        %2384 = vmatprep.mubr.f32.mxu0 0.0
        %2385 = vmatmul.mubr.f32.gmra.mrb[0].mxu0 %v2283
        %v2386 = vpop.f32.mrb[0].mxu0
        %v2387 = vadd.f32 0.0, %v2386
        %v2388 = vpop.f32.mrb[0].mxu0
        %2389 = vdwg.mxu0
        %v2390 = vadd.f32 %v1793, %v2352
        %v2391 = vadd.f32 %v1798, %v2357
        %v2392 = vadd.f32 %v1803, %v2362
        %v2393 = vadd.f32 %v1808, %v2367
        %v2394 = vadd.f32 %v1813, %v2372
        %v2395 = vadd.f32 %v1818, %v2377
        %v2396 = vadd.f32 %v1823, %v2382
        %v2397 = vadd.f32 %v1828, %v2387
        %2398 = vrot.lane.b32.xlu0 %v728, 32
        %v2399 = vpop.permute.xlu0 %2398
        %2400 = vrot.lane.b32.xlu0 %v729, 32
        %v2401 = vpop.permute.xlu0 %2400
        %2402 = vrot.lane.b32.xlu0 %v730, 32
        %v2403 = vpop.permute.xlu0 %2402
        %2404 = vrot.lane.b32.xlu0 %v731, 32
        %v2405 = vpop.permute.xlu0 %2404
        %2406 = vrot.lane.b32.xlu0 %v732, 32
        %v2407 = vpop.permute.xlu0 %2406
        %2408 = vrot.lane.b32.xlu0 %v733, 32
        %v2409 = vpop.permute.xlu0 %2408
        %2410 = vrot.lane.b32.xlu0 %v734, 32
        %v2411 = vpop.permute.xlu0 %2410
        %2412 = vrot.lane.b32.xlu0 %v735, 32
        %v2413 = vpop.permute.xlu0 %2412
        %2414 = vrot.lane.b32.xlu0 %v736, 32
        %v2415 = vpop.permute.xlu0 %2414
        %2416 = vrot.lane.b32.xlu0 %v737, 32
        %v2417 = vpop.permute.xlu0 %2416
        %2418 = vrot.lane.b32.xlu0 %v738, 32
        %v2419 = vpop.permute.xlu0 %2418
        %2420 = vrot.lane.b32.xlu0 %v739, 32
        %v2421 = vpop.permute.xlu0 %2420
        %2422 = vrot.lane.b32.xlu0 %v740, 32
        %v2423 = vpop.permute.xlu0 %2422
        %2424 = vrot.lane.b32.xlu0 %v741, 32
        %v2425 = vpop.permute.xlu0 %2424
        %2426 = vrot.lane.b32.xlu0 %v742, 32
        %v2427 = vpop.permute.xlu0 %2426
        %2428 = vrot.lane.b32.xlu0 %v743, 32
        %v2429 = vpop.permute.xlu0 %2428
        %2430 = vrot.lane.b32.xlu0 %v744, 32
        %v2431 = vpop.permute.xlu0 %2430
        %2432 = vrot.lane.b32.xlu0 %v745, 32
        %v2433 = vpop.permute.xlu0 %2432
        %2434 = vrot.lane.b32.xlu0 %v746, 32
        %v2435 = vpop.permute.xlu0 %2434
        %2436 = vrot.lane.b32.xlu0 %v747, 32
        %v2437 = vpop.permute.xlu0 %2436
        %2438 = vrot.lane.b32.xlu0 %v748, 32
        %v2439 = vpop.permute.xlu0 %2438
        %2440 = vrot.lane.b32.xlu0 %v749, 32
        %v2441 = vpop.permute.xlu0 %2440
        %2442 = vrot.lane.b32.xlu0 %v750, 32
        %v2443 = vpop.permute.xlu0 %2442
        %2444 = vrot.lane.b32.xlu0 %v751, 32
        %v2445 = vpop.permute.xlu0 %2444
        %v2446 = vsel %vm768, %v2399, 0
        %v2448 = vsel %vm768, %v2401, 0
        %v2450 = vsel %vm768, %v2403, 0
        %v2452 = vsel %vm768, %v2405, 0
        %v2454 = vsel %vm768, %v2407, 0
        %v2456 = vsel %vm768, %v2409, 0
        %v2458 = vsel %vm768, %v2411, 0
        %v2460 = vsel %vm768, %v2413, 0
        %v2462 = vsel %vm768, %v2415, 0
        %v2464 = vsel %vm768, %v2417, 0
        %v2466 = vsel %vm768, %v2419, 0
        %v2468 = vsel %vm768, %v2421, 0
        %v2470 = vsel %vm768, %v2423, 0
        %v2472 = vsel %vm768, %v2425, 0
        %v2474 = vsel %vm768, %v2427, 0
        %v2476 = vsel %vm768, %v2429, 0
        %v2478 = vsel %vm768, %v2431, 0
        %v2480 = vsel %vm768, %v2433, 0
        %v2482 = vsel %vm768, %v2435, 0
        %v2484 = vsel %vm768, %v2437, 0
        %v2486 = vsel %vm768, %v2439, 0
        %v2488 = vsel %vm768, %v2441, 0
        %v2490 = vsel %vm768, %v2443, 0
        %v2492 = vsel %vm768, %v2445, 0
        %2494 = vmatprep.subr.mxu0 0.0
        %2495 = vmatpush1.xpose.msra.mxu0 %v2462
        %2496 = vmatprep.subr.mxu0 0.0
        %2497 = vmatpush1.xpose.msra.mxu0 %v2464
        %2498 = vmatprep.subr.mxu0 0.0
        %2499 = vmatpush1.xpose.msra.mxu0 %v2466
        %2500 = vmatprep.subr.mxu0 0.0
        %2501 = vmatpush1.xpose.msra.mxu0 %v2468
        %2502 = vmatprep.subr.mxu0 0.0
        %2503 = vmatpush1.xpose.msra.mxu0 %v2470
        %2504 = vmatprep.subr.mxu0 0.0
        %2505 = vmatpush1.xpose.msra.mxu0 %v2472
        %2506 = vmatprep.subr.mxu0 0.0
        %2507 = vmatpush1.xpose.msra.mxu0 %v2474
        %2508 = vmatprep.subr.mxu0 0.0
        %2509 = vmatpush1.xpose.msra.mxu0 %v2476
        %2510 = vmatprep.subr.mxu0 0.0
        %2511 = vmatpush1.xpose.msra.mxu0 %v2478
        %2512 = vmatprep.subr.mxu0 0.0
        %2513 = vmatpush1.xpose.msra.mxu0 %v2480
        %2514 = vmatprep.subr.mxu0 0.0
        %2515 = vmatpush1.xpose.msra.mxu0 %v2482
        %2516 = vmatprep.subr.mxu0 0.0
        %2517 = vmatpush1.xpose.msra.mxu0 %v2484
        %2518 = vmatprep.subr.mxu0 0.0
        %2519 = vmatpush1.xpose.msra.mxu0 %v2486
        %2520 = vmatprep.subr.mxu0 0.0
        %2521 = vmatpush1.xpose.msra.mxu0 %v2488
        %2522 = vmatprep.subr.mxu0 0.0
        %2523 = vmatpush1.xpose.msra.mxu0 %v2490
        %2524 = vmatprep.subr.mxu0 0.0
        %2525 = vmatpush1.xpose.msra.mxu0 %v2492
        %2526 = vmatprep.subr.mxu0 0.0
        %2527 = vmatpush1.xpose.msra.mxu0 0.0
        %2528 = vmatprep.subr.mxu0 0.0
        %2529 = vmatpush1.xpose.msra.mxu0 0.0
        %2530 = vmatprep.subr.mxu0 0.0
        %2531 = vmatpush1.xpose.msra.mxu0 0.0
        %2532 = vmatprep.subr.mxu0 0.0
        %2533 = vmatpush1.xpose.msra.mxu0 0.0
        %2534 = vmatprep.subr.mxu0 0.0
        %2535 = vmatpush1.xpose.msra.mxu0 0.0
        %2536 = vmatprep.subr.mxu0 0.0
        %2537 = vmatpush1.xpose.msra.mxu0 0.0
        %2538 = vmatprep.subr.mxu0 0.0
        %2539 = vmatpush1.xpose.msra.mxu0 0.0
        %2540 = vmatprep.subr.mxu0 0.0
        %2541 = vmatpush1.xpose.msra.mxu0 0.0
        %2542 = vmatprep.subr.mxu0 0.0
        %2543 = vmatpush1.xpose.msra.mxu0 0.0
        %2544 = vmatprep.subr.mxu0 0.0
        %2545 = vmatpush1.xpose.msra.mxu0 0.0
        %2546 = vmatprep.subr.mxu0 0.0
        %2547 = vmatpush1.xpose.msra.mxu0 0.0
        %2548 = vmatprep.subr.mxu0 0.0
        %2549 = vmatpush1.xpose.msra.mxu0 0.0
        %2550 = vmatprep.subr.mxu0 0.0
        %2551 = vmatpush1.xpose.msra.mxu0 0.0
        %2552 = vmatprep.subr.mxu0 0.0
        %2553 = vmatpush1.xpose.msra.mxu0 0.0
        %2554 = vmatprep.subr.mxu0 0.0
        %2555 = vmatpush1.xpose.msra.mxu0 0.0
        %2556 = vmatprep.subr.mxu0 0.0
        %2557 = vmatpush1.xpose.msra.mxu0 0.0
        %2558 = vmatprep.mubr.f32.mxu0 0.0
        %2559 = vmatmul.mubr.f32.gmra.mrb[0].mxu0 %v2446
        %v2560 = vpop.f32.mrb[0].mxu0
        %v2561 = vadd.f32 0.0, %v2560
        %v2562 = vpop.f32.mrb[0].mxu0
        %2563 = vmatprep.mubr.f32.mxu0 0.0
        %2564 = vmatmul.mubr.f32.gmra.mrb[0].mxu0 %v2448
        %v2565 = vpop.f32.mrb[0].mxu0
        %v2566 = vadd.f32 0.0, %v2565
        %v2567 = vpop.f32.mrb[0].mxu0
        %2568 = vmatprep.mubr.f32.mxu0 0.0
        %2569 = vmatmul.mubr.f32.gmra.mrb[0].mxu0 %v2450
        %v2570 = vpop.f32.mrb[0].mxu0
        %v2571 = vadd.f32 0.0, %v2570
        %v2572 = vpop.f32.mrb[0].mxu0
        %2573 = vmatprep.mubr.f32.mxu0 0.0
        %2574 = vmatmul.mubr.f32.gmra.mrb[0].mxu0 %v2452
        %v2575 = vpop.f32.mrb[0].mxu0
        %v2576 = vadd.f32 0.0, %v2575
        %v2577 = vpop.f32.mrb[0].mxu0
        %2578 = vmatprep.mubr.f32.mxu0 0.0
        %2579 = vmatmul.mubr.f32.gmra.mrb[0].mxu0 %v2454
        %v2580 = vpop.f32.mrb[0].mxu0
        %v2581 = vadd.f32 0.0, %v2580
        %v2582 = vpop.f32.mrb[0].mxu0
        %2583 = vmatprep.mubr.f32.mxu0 0.0
        %2584 = vmatmul.mubr.f32.gmra.mrb[0].mxu0 %v2456
        %v2585 = vpop.f32.mrb[0].mxu0
        %v2586 = vadd.f32 0.0, %v2585
        %v2587 = vpop.f32.mrb[0].mxu0
        %2588 = vmatprep.mubr.f32.mxu0 0.0
        %2589 = vmatmul.mubr.f32.gmra.mrb[0].mxu0 %v2458
        %v2590 = vpop.f32.mrb[0].mxu0
        %v2591 = vadd.f32 0.0, %v2590
        %v2592 = vpop.f32.mrb[0].mxu0
        %2593 = vmatprep.mubr.f32.mxu0 0.0
        %2594 = vmatmul.mubr.f32.gmra.mrb[0].mxu0 %v2460
        %v2595 = vpop.f32.mrb[0].mxu0
        %v2596 = vadd.f32 0.0, %v2595
        %v2597 = vpop.f32.mrb[0].mxu0
        %2598 = vdwg.mxu0
        %2599 = vmax.xlane.f32.xlu0 %v2561
        %v2600 = vpop.xlane.xlu0 %2599
        %2601 = vmax.xlane.f32.xlu0 %v2566
        %v2602 = vpop.xlane.xlu0 %2601
        %2603 = vmax.xlane.f32.xlu0 %v2571
        %v2604 = vpop.xlane.xlu0 %2603
        %2605 = vmax.xlane.f32.xlu0 %v2576
        %v2606 = vpop.xlane.xlu0 %2605
        %2607 = vmax.xlane.f32.xlu0 %v2581
        %v2608 = vpop.xlane.xlu0 %2607
        %2609 = vmax.xlane.f32.xlu0 %v2586
        %v2610 = vpop.xlane.xlu0 %2609
        %2611 = vmax.xlane.f32.xlu0 %v2591
        %v2612 = vpop.xlane.xlu0 %2611
        %2613 = vmax.xlane.f32.xlu0 %v2596
        %v2614 = vpop.xlane.xlu0 %2613
        %v2615 = vsub.f32 %v2561, %v2600
        %v2616 = vsub.f32 %v2566, %v2602
        %v2617 = vsub.f32 %v2571, %v2604
        %v2618 = vsub.f32 %v2576, %v2606
        %v2619 = vsub.f32 %v2581, %v2608
        %v2620 = vsub.f32 %v2586, %v2610
        %v2621 = vsub.f32 %v2591, %v2612
        %v2622 = vsub.f32 %v2596, %v2614
        %v2623 = vmul.f32 %v2615, 1.442695
        %v2624 = vpow.pop %v2623
        %v2625 = vmul.f32 %v2616, 1.442695
        %v2626 = vpow.pop %v2625
        %v2627 = vmul.f32 %v2617, 1.442695
        %v2628 = vpow.pop %v2627
        %v2629 = vmul.f32 %v2618, 1.442695
        %v2630 = vpow.pop %v2629
        %v2631 = vmul.f32 %v2619, 1.442695
        %v2632 = vpow.pop %v2631
        %v2633 = vmul.f32 %v2620, 1.442695
        %v2634 = vpow.pop %v2633
        %v2635 = vmul.f32 %v2621, 1.442695
        %v2636 = vpow.pop %v2635
        %v2637 = vmul.f32 %v2622, 1.442695
        %v2638 = vpow.pop %v2637
        %2639 = vadd.xlane.f32.xlu0 %v2624
        %v2640 = vpop.xlane.xlu0 %2639
        %2641 = vadd.xlane.f32.xlu0 %v2626
        %v2642 = vpop.xlane.xlu0 %2641
        %2643 = vadd.xlane.f32.xlu0 %v2628
        %v2644 = vpop.xlane.xlu0 %2643
        %2645 = vadd.xlane.f32.xlu0 %v2630
        %v2646 = vpop.xlane.xlu0 %2645
        %2647 = vadd.xlane.f32.xlu0 %v2632
        %v2648 = vpop.xlane.xlu0 %2647
        %2649 = vadd.xlane.f32.xlu0 %v2634
        %v2650 = vpop.xlane.xlu0 %2649
        %2651 = vadd.xlane.f32.xlu0 %v2636
        %v2652 = vpop.xlane.xlu0 %2651
        %2653 = vadd.xlane.f32.xlu0 %v2638
        %v2654 = vpop.xlane.xlu0 %2653
        %2655 = vrot.lane.b32.xlu0 %v752, 32
        %v2656 = vpop.permute.xlu0 %2655
        %2657 = vrot.lane.b32.xlu0 %v753, 32
        %v2658 = vpop.permute.xlu0 %2657
        %2659 = vrot.lane.b32.xlu0 %v754, 32
        %v2660 = vpop.permute.xlu0 %2659
        %2661 = vrot.lane.b32.xlu0 %v755, 32
        %v2662 = vpop.permute.xlu0 %2661
        %2663 = vrot.lane.b32.xlu0 %v756, 32
        %v2664 = vpop.permute.xlu0 %2663
        %2665 = vrot.lane.b32.xlu0 %v757, 32
        %v2666 = vpop.permute.xlu0 %2665
        %2667 = vrot.lane.b32.xlu0 %v758, 32
        %v2668 = vpop.permute.xlu0 %2667
        %2669 = vrot.lane.b32.xlu0 %v759, 32
        %v2670 = vpop.permute.xlu0 %2669
        %2671 = vrot.lane.b32.xlu0 %v760, 32
        %v2672 = vpop.permute.xlu0 %2671
        %2673 = vrot.lane.b32.xlu0 %v761, 32
        %v2674 = vpop.permute.xlu0 %2673
        %2675 = vrot.lane.b32.xlu0 %v762, 32
        %v2676 = vpop.permute.xlu0 %2675
        %2677 = vrot.lane.b32.xlu0 %v763, 32
        %v2678 = vpop.permute.xlu0 %2677
        %2679 = vrot.lane.b32.xlu0 %v764, 32
        %v2680 = vpop.permute.xlu0 %2679
        %2681 = vrot.lane.b32.xlu0 %v765, 32
        %v2682 = vpop.permute.xlu0 %2681
        %2683 = vrot.lane.b32.xlu0 %v766, 32
        %v2684 = vpop.permute.xlu0 %2683
        %2685 = vrot.lane.b32.xlu0 %v767, 32
        %v2686 = vpop.permute.xlu0 %2685
        %2703 = vmatprep.subr.mxu0 0.0
        %2704 = vmatpush1.msra.mxu0 %v2656
        %2705 = vmatprep.subr.mxu0 0.0
        %2706 = vmatpush1.msra.mxu0 %v2658
        %2707 = vmatprep.subr.mxu0 0.0
        %2708 = vmatpush1.msra.mxu0 %v2660
        %2709 = vmatprep.subr.mxu0 0.0
        %2710 = vmatpush1.msra.mxu0 %v2662
        %2711 = vmatprep.subr.mxu0 0.0
        %2712 = vmatpush1.msra.mxu0 %v2664
        %2713 = vmatprep.subr.mxu0 0.0
        %2714 = vmatpush1.msra.mxu0 %v2666
        %2715 = vmatprep.subr.mxu0 0.0
        %2716 = vmatpush1.msra.mxu0 %v2668
        %2717 = vmatprep.subr.mxu0 0.0
        %2718 = vmatpush1.msra.mxu0 %v2670
        %2719 = vmatprep.subr.mxu0 0.0
        %2720 = vmatpush1.msra.mxu0 %v2672
        %2721 = vmatprep.subr.mxu0 0.0
        %2722 = vmatpush1.msra.mxu0 %v2674
        %2723 = vmatprep.subr.mxu0 0.0
        %2724 = vmatpush1.msra.mxu0 %v2676
        %2725 = vmatprep.subr.mxu0 0.0
        %2726 = vmatpush1.msra.mxu0 %v2678
        %2727 = vmatprep.subr.mxu0 0.0
        %2728 = vmatpush1.msra.mxu0 %v2680
        %2729 = vmatprep.subr.mxu0 0.0
        %2730 = vmatpush1.msra.mxu0 %v2682
        %2731 = vmatprep.subr.mxu0 0.0
        %2732 = vmatpush1.msra.mxu0 %v2684
        %2733 = vmatprep.subr.mxu0 0.0
        %2734 = vmatpush1.msra.mxu0 %v2686
        %2735 = vmatprep.subr.mxu0 0.0
        %2736 = vmatpush1.msra.mxu0 0.0
        %2737 = vmatprep.subr.mxu0 0.0
        %2738 = vmatpush1.msra.mxu0 0.0
        %2739 = vmatprep.subr.mxu0 0.0
        %2740 = vmatpush1.msra.mxu0 0.0
        %2741 = vmatprep.subr.mxu0 0.0
        %2742 = vmatpush1.msra.mxu0 0.0
        %2743 = vmatprep.subr.mxu0 0.0
        %2744 = vmatpush1.msra.mxu0 0.0
        %2745 = vmatprep.subr.mxu0 0.0
        %2746 = vmatpush1.msra.mxu0 0.0
        %2747 = vmatprep.subr.mxu0 0.0
        %2748 = vmatpush1.msra.mxu0 0.0
        %2749 = vmatprep.subr.mxu0 0.0
        %2750 = vmatpush1.msra.mxu0 0.0
        %2751 = vmatprep.subr.mxu0 0.0
        %2752 = vmatpush1.msra.mxu0 0.0
        %2753 = vmatprep.subr.mxu0 0.0
        %2754 = vmatpush1.msra.mxu0 0.0
        %2755 = vmatprep.subr.mxu0 0.0
        %2756 = vmatpush1.msra.mxu0 0.0
        %2757 = vmatprep.subr.mxu0 0.0
        %2758 = vmatpush1.msra.mxu0 0.0
        %2759 = vmatprep.subr.mxu0 0.0
        %2760 = vmatpush1.msra.mxu0 0.0
        %2761 = vmatprep.subr.mxu0 0.0
        %2762 = vmatpush1.msra.mxu0 0.0
        %2763 = vmatprep.subr.mxu0 0.0
        %2764 = vmatpush1.msra.mxu0 0.0
        %2765 = vmatprep.subr.mxu0 0.0
        %2766 = vmatpush1.msra.mxu0 0.0
        %2767 = vmatprep.mubr.f32.mxu0 0.0
        %2768 = vmatmul.mubr.f32.gmra.mrb[0].mxu0 %v2624
        %v2769 = vpop.f32.mrb[0].mxu0
        %v2770 = vadd.f32 0.0, %v2769
        %v2771 = vpop.f32.mrb[0].mxu0
        %2772 = vmatprep.mubr.f32.mxu0 0.0
        %2773 = vmatmul.mubr.f32.gmra.mrb[0].mxu0 %v2626
        %v2774 = vpop.f32.mrb[0].mxu0
        %v2775 = vadd.f32 0.0, %v2774
        %v2776 = vpop.f32.mrb[0].mxu0
        %2777 = vmatprep.mubr.f32.mxu0 0.0
        %2778 = vmatmul.mubr.f32.gmra.mrb[0].mxu0 %v2628
        %v2779 = vpop.f32.mrb[0].mxu0
        %v2780 = vadd.f32 0.0, %v2779
        %v2781 = vpop.f32.mrb[0].mxu0
        %2782 = vmatprep.mubr.f32.mxu0 0.0
        %2783 = vmatmul.mubr.f32.gmra.mrb[0].mxu0 %v2630
        %v2784 = vpop.f32.mrb[0].mxu0
        %v2785 = vadd.f32 0.0, %v2784
        %v2786 = vpop.f32.mrb[0].mxu0
        %2787 = vmatprep.mubr.f32.mxu0 0.0
        %2788 = vmatmul.mubr.f32.gmra.mrb[0].mxu0 %v2632
        %v2789 = vpop.f32.mrb[0].mxu0
        %v2790 = vadd.f32 0.0, %v2789
        %v2791 = vpop.f32.mrb[0].mxu0
        %2792 = vmatprep.mubr.f32.mxu0 0.0
        %2793 = vmatmul.mubr.f32.gmra.mrb[0].mxu0 %v2634
        %v2794 = vpop.f32.mrb[0].mxu0
        %v2795 = vadd.f32 0.0, %v2794
        %v2796 = vpop.f32.mrb[0].mxu0
        %2797 = vmatprep.mubr.f32.mxu0 0.0
        %2798 = vmatmul.mubr.f32.gmra.mrb[0].mxu0 %v2636
        %v2799 = vpop.f32.mrb[0].mxu0
        %v2800 = vadd.f32 0.0, %v2799
        %v2801 = vpop.f32.mrb[0].mxu0
        %2802 = vmatprep.mubr.f32.mxu0 0.0
        %2803 = vmatmul.mubr.f32.gmra.mrb[0].mxu0 %v2638
        %v2804 = vpop.f32.mrb[0].mxu0
        %v2805 = vadd.f32 0.0, %v2804
        %v2806 = vpop.f32.mrb[0].mxu0
        %2807 = vdwg.mxu0
        %v2808 = vrcp.pop %v2640
        %v2809 = vrcp.pop %v2642
        %v2810 = vrcp.pop %v2644
        %v2811 = vrcp.pop %v2646
        %v2812 = vrcp.pop %v2648
        %v2813 = vrcp.pop %v2650
        %v2814 = vrcp.pop %v2652
        %v2815 = vrcp.pop %v2654
        %v2816 = vmul.f32 %v2770, %v2808
        %v2817 = vmul.f32 %v2775, %v2809
        %v2818 = vmul.f32 %v2780, %v2810
        %v2819 = vmul.f32 %v2785, %v2811
        %v2820 = vmul.f32 %v2790, %v2812
        %v2821 = vmul.f32 %v2795, %v2813
        %v2822 = vmul.f32 %v2800, %v2814
        %v2823 = vmul.f32 %v2805, %v2815
        %v2824 = vld [vmem:[#allocation10 + $0x60] sm:$0xff]
        %v2825 = vld [vmem:[#allocation10 + $0x68] sm:$0xff]
        %v2826 = vld [vmem:[#allocation10 + $0x70] sm:$0xff]
        %v2827 = vld [vmem:[#allocation10 + $0x78] sm:$0xff]
        %v2829 = vsel %vm768, %v2816, 0
        %v2832 = vsel %vm768, %v2817, 0
        %v2835 = vsel %vm768, %v2818, 0
        %v2838 = vsel %vm768, %v2819, 0
        %v2841 = vsel %vm768, %v2820, 0
        %v2844 = vsel %vm768, %v2821, 0
        %v2847 = vsel %vm768, %v2822, 0
        %v2850 = vsel %vm768, %v2823, 0
        %2852 = vmatprep.subr.mxu0 0.0
        %2853 = vmatpush1.msra.mxu0 %v2824
        %2854 = vmatprep.subr.mxu0 0.0
        %2855 = vmatpush1.msra.mxu0 %v2825
        %2856 = vmatprep.subr.mxu0 0.0
        %2857 = vmatpush1.msra.mxu0 %v2826
        %2858 = vmatprep.subr.mxu0 0.0
        %2859 = vmatpush1.msra.mxu0 %v2827
        %2860 = vmatprep.subr.mxu0 0.0
        %2861 = vmatpush1.msra.mxu0 0.0
        %2862 = vmatprep.subr.mxu0 0.0
        %2863 = vmatpush1.msra.mxu0 0.0
        %2864 = vmatprep.subr.mxu0 0.0
        %2865 = vmatpush1.msra.mxu0 0.0
        %2866 = vmatprep.subr.mxu0 0.0
        %2867 = vmatpush1.msra.mxu0 0.0
        %2868 = vmatprep.subr.mxu0 0.0
        %2869 = vmatpush1.msra.mxu0 0.0
        %2870 = vmatprep.subr.mxu0 0.0
        %2871 = vmatpush1.msra.mxu0 0.0
        %2872 = vmatprep.subr.mxu0 0.0
        %2873 = vmatpush1.msra.mxu0 0.0
        %2874 = vmatprep.subr.mxu0 0.0
        %2875 = vmatpush1.msra.mxu0 0.0
        %2876 = vmatprep.subr.mxu0 0.0
        %2877 = vmatpush1.msra.mxu0 0.0
        %2878 = vmatprep.subr.mxu0 0.0
        %2879 = vmatpush1.msra.mxu0 0.0
        %2880 = vmatprep.subr.mxu0 0.0
        %2881 = vmatpush1.msra.mxu0 0.0
        %2882 = vmatprep.subr.mxu0 0.0
        %2883 = vmatpush1.msra.mxu0 0.0
        %2884 = vmatprep.subr.mxu0 0.0
        %2885 = vmatpush1.msra.mxu0 0.0
        %2886 = vmatprep.subr.mxu0 0.0
        %2887 = vmatpush1.msra.mxu0 0.0
        %2888 = vmatprep.subr.mxu0 0.0
        %2889 = vmatpush1.msra.mxu0 0.0
        %2890 = vmatprep.subr.mxu0 0.0
        %2891 = vmatpush1.msra.mxu0 0.0
        %2892 = vmatprep.subr.mxu0 0.0
        %2893 = vmatpush1.msra.mxu0 0.0
        %2894 = vmatprep.subr.mxu0 0.0
        %2895 = vmatpush1.msra.mxu0 0.0
        %2896 = vmatprep.subr.mxu0 0.0
        %2897 = vmatpush1.msra.mxu0 0.0
        %2898 = vmatprep.subr.mxu0 0.0
        %2899 = vmatpush1.msra.mxu0 0.0
        %2900 = vmatprep.subr.mxu0 0.0
        %2901 = vmatpush1.msra.mxu0 0.0
        %2902 = vmatprep.subr.mxu0 0.0
        %2903 = vmatpush1.msra.mxu0 0.0
        %2904 = vmatprep.subr.mxu0 0.0
        %2905 = vmatpush1.msra.mxu0 0.0
        %2906 = vmatprep.subr.mxu0 0.0
        %2907 = vmatpush1.msra.mxu0 0.0
        %2908 = vmatprep.subr.mxu0 0.0
        %2909 = vmatpush1.msra.mxu0 0.0
        %2910 = vmatprep.subr.mxu0 0.0
        %2911 = vmatpush1.msra.mxu0 0.0
        %2912 = vmatprep.subr.mxu0 0.0
        %2913 = vmatpush1.msra.mxu0 0.0
        %2914 = vmatprep.subr.mxu0 0.0
        %2915 = vmatpush1.msra.mxu0 0.0
        %2916 = vmatprep.mubr.f32.mxu0 0.0
        %2917 = vmatmul.mubr.f32.gmra.mrb[0].mxu0 %v2829
        %v2918 = vpop.f32.mrb[0].mxu0
        %v2919 = vadd.f32 0.0, %v2918
        %v2920 = vpop.f32.mrb[0].mxu0
        %2921 = vmatprep.mubr.f32.mxu0 0.0
        %2922 = vmatmul.mubr.f32.gmra.mrb[0].mxu0 %v2832
        %v2923 = vpop.f32.mrb[0].mxu0
        %v2924 = vadd.f32 0.0, %v2923
        %v2925 = vpop.f32.mrb[0].mxu0
        %2926 = vmatprep.mubr.f32.mxu0 0.0
        %2927 = vmatmul.mubr.f32.gmra.mrb[0].mxu0 %v2835
        %v2928 = vpop.f32.mrb[0].mxu0
        %v2929 = vadd.f32 0.0, %v2928
        %v2930 = vpop.f32.mrb[0].mxu0
        %2931 = vmatprep.mubr.f32.mxu0 0.0
        %2932 = vmatmul.mubr.f32.gmra.mrb[0].mxu0 %v2838
        %v2933 = vpop.f32.mrb[0].mxu0
        %v2934 = vadd.f32 0.0, %v2933
        %v2935 = vpop.f32.mrb[0].mxu0
        %2936 = vmatprep.mubr.f32.mxu0 0.0
        %2937 = vmatmul.mubr.f32.gmra.mrb[0].mxu0 %v2841
        %v2938 = vpop.f32.mrb[0].mxu0
        %v2939 = vadd.f32 0.0, %v2938
        %v2940 = vpop.f32.mrb[0].mxu0
        %2941 = vmatprep.mubr.f32.mxu0 0.0
        %2942 = vmatmul.mubr.f32.gmra.mrb[0].mxu0 %v2844
        %v2943 = vpop.f32.mrb[0].mxu0
        %v2944 = vadd.f32 0.0, %v2943
        %v2945 = vpop.f32.mrb[0].mxu0
        %2946 = vmatprep.mubr.f32.mxu0 0.0
        %2947 = vmatmul.mubr.f32.gmra.mrb[0].mxu0 %v2847
        %v2948 = vpop.f32.mrb[0].mxu0
        %v2949 = vadd.f32 0.0, %v2948
        %v2950 = vpop.f32.mrb[0].mxu0
        %2951 = vmatprep.mubr.f32.mxu0 0.0
        %2952 = vmatmul.mubr.f32.gmra.mrb[0].mxu0 %v2850
        %v2953 = vpop.f32.mrb[0].mxu0
        %v2954 = vadd.f32 0.0, %v2953
        %v2955 = vpop.f32.mrb[0].mxu0
        %2956 = vdwg.mxu0
        %v2957 = vadd.f32 %v2390, %v2919
        %v2958 = vadd.f32 %v2391, %v2924
        %v2959 = vadd.f32 %v2392, %v2929
        %v2960 = vadd.f32 %v2393, %v2934
        %v2961 = vadd.f32 %v2394, %v2939
        %v2962 = vadd.f32 %v2395, %v2944
        %v2963 = vadd.f32 %v2396, %v2949
        %v2964 = vadd.f32 %v2397, %v2954
        %v2965 = vld [vmem:[%s4] sm:$0x1]
        %v2967 = vlaneseq
        %v2968 = vshrl.u32 %v2967, 7
        %v2969 = vsub.s32 0, %v2968
        %v2970 = vrot.slane %v2965, %v2969
        %v2972 = vadd.f32 %v2957, %v2970
        %v2973 = vadd.f32 %v2958, %v2970
        %v2974 = vadd.f32 %v2959, %v2970
        %v2975 = vadd.f32 %v2960, %v2970
        %v2976 = vadd.f32 %v2961, %v2970
        %v2977 = vadd.f32 %v2962, %v2970
        %v2978 = vadd.f32 %v2963, %v2970
        %v2979 = vadd.f32 %v2964, %v2970
        %2980 = vst [vmem:[%s285] sm:$0xff] %v2972
        %2981 = vst [vmem:[%s285 + $0x8] sm:$0xff] %v2973
        %2982 = vst [vmem:[%s285 + $0x10] sm:$0xff] %v2974
        %2983 = vst [vmem:[%s285 + $0x18] sm:$0xff] %v2975
        %2984 = vst [vmem:[%s285 + $0x20] sm:$0xff] %v2976
        %2985 = vst [vmem:[%s285 + $0x28] sm:$0xff] %v2977
        %2986 = vst [vmem:[%s285 + $0x30] sm:$0xff] %v2978
        %2987 = vst [vmem:[%s285 + $0x38] sm:$0xff] %v2979
        %s2988 = sand.u32 %s155, 1
        %s2989 = scalar_lea.sflag [#allocation7], %s2988
        %s2990 = sand.u32 %s155, 1
        %s2991 = smul.addr %s2990, 64
        %s2992 = scalar_lea.vmem [#allocation11], %s2991
        // Predicated region
        $region57: #{tpu_custom_call.1} parent=39 // pred_check
          %p2993 = pneg %p165
        $region58: #{tpu_custom_call.1} parent=39 // pred_check_branch
          %2995 = sbr.rel (%p2993) target = $region60
        $region59: #{tpu_custom_call.1} parent=39 // pred_region
          %s2996 = smul.u32 8, %s28
          %s2998 = ssub.s32 1024, 1024
          %2999 = vsyncadd %s2989, %s2998
          %s3000 = smul.addr %s27, 16
          %s3001 = sadd.s32 %s2996, %s3000
          %s3002 = smul.addr %s3001, 128
          %s3003 = scalar_lea.hbm %s5, %s3002
          %s3004 = sshll.u32 %s2992, 4
          %s3005 = int_to_ptr.vmem [resolvable:$true] %s3004
          %3010 = dma.vmem_to_hbm [thread:$0]  %s3005, 1024, %s3003, %s2989, 128, 128, 8
        $region60: #{tpu_custom_call.1} parent=39 // pred_fallthru
          _
      $region40: #{tpu_custom_call.1} parent=5 // pred_fallthru
        _
      %p3011 = scmp.le.s32.totalorder 2, %s18
      // Predicated region
      $region61: #{tpu_custom_call.1} parent=5 // pred_check
        %p3012 = pneg %p3011
      $region62: #{tpu_custom_call.1} parent=5 // pred_check_branch
        %3014 = sbr.rel (%p3012) target = $region64
      $region63: #{tpu_custom_call.1} parent=5 // pred_region
        %s3015 = ssub.s32 %s18, 2
        // Predicated region
        $region65: #{tpu_custom_call.1} parent=63 // pred_check
          %p3016 = pneg %p171
        $region66: #{tpu_custom_call.1} parent=63 // pred_check_branch
          %3018 = sbr.rel (%p3016) target = $region68
        $region67: #{tpu_custom_call.1} parent=63 // pred_region
          %s3019 = sand.u32 %s156, 1
          %s3020 = scalar_lea.sflag [#allocation7], %s3019
          %s3021 = sand.u32 %s156, 1
          %s3022 = smul.addr %s3021, 64
          %s3023 = scalar_lea.vmem [#allocation11], %s3022
          %3024 = dma.done %s3020, 1024
        $region68: #{tpu_custom_call.1} parent=63 // pred_fallthru
          _
      $region64: #{tpu_custom_call.1} parent=5 // pred_fallthru
        _
    $region6: #{tpu_custom_call.1} parent=1 // loop_footer
      %s22 = sadd.s32 1, %s18
    $region7: #{tpu_custom_call.1} parent=1 // loop_footer_branch
      %17 = sbr.rel target = $region3
    $region8: #{tpu_custom_call.1} parent=1 // loop_exit
      _
    %3025 = vsyncpa [#allocation6], 1
    %s3026 = scalar_lea.sflag [#allocation6], 1
    %3027 = vsyncpa %s3026, 1
    %3028 = vsyncpa [#allocation9], 1
    %3029 = vsyncpa [#allocation7], 1
    %s3030 = scalar_lea.sflag [#allocation7], 1
    %3031 = vsyncpa %s3030, 1

</llo_original>
